<compile_context>
chip_gen: v7x
topology: tpu7x:2x2x1
jax: 0.10.0
libtpu: 0.0.40
codegen_flags: <defaults>
</compile_context>

<pallas_src>
import numpy as np
import jax
import jax.numpy as jnp
from jax import lax
from jax.experimental import pallas as pl
from jax.experimental.pallas import tpu as pltpu

# ----------------------------- problem sizes -----------------------------
DIST_DIM = 5941          # nn.Linear(5941, 32) input dim (from __init__)
LIN_OUT = 32             # nn.Linear(5941, 32) output dim
H = 8                    # edge-representation hidden dim (small synthetic choice)
D = H + LIN_OUT          # concat([edge_rep, linear(dist)]) -> 40
P = D                    # candidates per case; torch.mm in 2nd loop requires P == D
E = 64                   # number of edges / links in the synthetic graph
CAND_LEN = 7             # candidate_length[case_id]; indices has CAND_LEN-1 rows
S1 = CAND_LEN - 1        # output rows per case
PN_MAX = 3               # max passenger_nums ((2,5) vs (3,7) in the reference)

# gather rows per case:
#   [ link_idx (P) | drv_link (1) | edge_ids (P) | drv_edge (1) | pad ]
R2 = ((2 * P + 2 + 7) // 8) * 8          # 88 (sublane-aligned)


# ----------------------------- linear kernel -----------------------------
# lin_all = distance_matrix @ W + b applied ONCE to every distance row (the
# linear is row-wise, so per-case gather + linear is identical).  Single grid
# step (everything fits VMEM), bf16 operands, f32 accumulation via
# preferred_element_type -> HBM bytes halved vs f32, no pipeline overhead.
def _linear_kernel(x_ref, w_ref, b_ref, o_ref):
    o_ref[...] = (jnp.dot(x_ref[...], w_ref[...],
                          preferred_element_type=jnp.float32)
                  + b_ref[...])


def linear_all_pallas(x_bf16, w_bf16, b):
    n, k = x_bf16.shape
    m = w_bf16.shape[1]
    cost = pl.CostEstimate(
        flops=2 * n * k * m,
        transcendentals=0,
        bytes_accessed=2 * (n * k + k * m) + 4 * (m + n * m))
    return pl.pallas_call(
        _linear_kernel,
        out_shape=jax.ShapeDtypeStruct((n, m), jnp.float32),
        grid=(1,),
        in_specs=[
            pl.BlockSpec((n, k), lambda i: (0, 0)),
            pl.BlockSpec((k, m), lambda i: (0, 0)),
            pl.BlockSpec((1, m), lambda i: (0, 0)),
        ],
        out_specs=pl.BlockSpec((n, m), lambda i: (0, 0)),
        compiler_params=pltpu.CompilerParams(
            dimension_semantics=("arbitrary",)),
        cost_estimate=cost,
    )(x_bf16, w_bf16, b)


# ----------------------------- decode kernel -----------------------------
def make_decode_kernel(p, e, h, lm, r2, s1, pn_max):
    HI = lax.Precision.HIGHEST   # one-hot gathers / argmax chain stay f32-exact

    def dot_std(x, y):           # x @ y
        return lax.dot_general(x, y, (((1,), (0,)), ((), ())),
                               preferred_element_type=jnp.float32, precision=HI)

    def dot_t(x, y):             # x @ y.T (contract last dims)
        return lax.dot_general(x, y, (((1,), (1,)), ((), ())),
                               preferred_element_type=jnp.float32, precision=HI)

    def kernel(meta_ref, isd_ref, gidx_ref, lin_ref, rep_ref, out_ref):
        c = pl.program_id(0)
        pn = meta_ref[c]             # passenger_nums (2 or 3), 1-D SMEM

        out_ref[...] = jnp.zeros_like(out_ref)      # indices = torch.zeros(...)

        isd = isd_ref[...]           # (1, p)   is_driver codes of passengers
        gcol = gidx_ref[...]         # (r2, 1)  gather row ids
        lin_all = lin_ref[...]       # (e, 32)  linear(distance_matrix) rows
        rep = rep_ref[...]           # (e, h)   per-case edge representation

        # ---- single one-hot gather against the resident tables (MXU) ----
        sel = (gcol == lax.broadcasted_iota(jnp.int32, (r2, e), 1)
               ).astype(jnp.float32)                 # (r2, e)
        lin_g = dot_std(sel, lin_all)                # (r2, 32)
        rep_g = dot_std(sel, rep)                    # (r2, h)

        pass_rep = rep_g[0:p]                        # rep[link_idx]        (p, h)
        pass_lin = lin_g[0:p]                        # lin[link_idx]        (p, 32)
        rep_ext = rep_g[0:p + 1]                     # cand+driver rep rows (p+1, h)
        lin_ext = lin_g[p + 1:2 * p + 2]             # cand+driver lin rows (p+1, 32)

        # pass_reps = [pass_rep | pass_lin]; cand/driver reps = [rep_ext | lin_ext].
        # The concatenation is never materialized; inner products are split over
        # the two halves.  Row q<p of A_ext is the score row of candidate q's
        # next-driver rep; row p is the initial driver's attention row.
        A_ext = dot_t(rep_ext, pass_rep) + dot_t(lin_ext, pass_lin)   # (p+1, p)
        A = A_ext[0:p]                               # (p, p)
        attn = A_ext[p:p + 1]                        # (1, p)

        ii = lax.broadcasted_iota(jnp.int32, (1, p), 1)
        maskon = jnp.ones((1, p), jnp.float32)                 # mask_on.repeat(shape_0)
        mask1 = (isd == 2.0) | (isd == 4.0) | (isd == 6.0)     # pickup mask

        def first_argmax(row):
            m = jnp.max(row, axis=1, keepdims=True)
            idx = jnp.min(jnp.where(row == m, ii, p), axis=1, keepdims=True)
            return idx, m

        # ---------------- loop 1 ("on" / pickup pointers) ----------------
        for i in range(pn_max):
            maskon = jnp.where(mask1, maskon, 0.0)             # mask_on[~mask] = 0
            pred, m = first_argmax(attn)                       # attn.argmax()
            onehot = (ii == pred).astype(jnp.float32)
            isd_pred = jnp.sum(onehot * isd, axis=1, keepdims=True)
            mask1 = mask1 & (isd != isd_pred)
            ex = jnp.exp(attn - m)                             # softmax over passengers
            prob = ex / jnp.sum(ex, axis=1, keepdims=True)     # exact divide (fidelity)

            @pl.when(i < pn)                                   # rows beyond pn stay zero
            def _():
                out_ref[pl.ds(i, 1), :] = prob

            masked = attn * maskon                             # attn * mask_on.T
            idx2, _ = first_argmax(masked)
            maskon = maskon * (1.0 - (ii == idx2).astype(jnp.float32))
            if i + 1 < pn_max:
                # next driver's attention row = row pred of A, single M=1 matmul
                attn = dot_std(onehot, A)

        # ---------------- loop 2 ("off" / dropoff pointers) ----------------
        # The reference's `torch.mm(ones_like(passenger_reps)[not_mask], attn)` is
        # only shape-valid when n_not_mask == P == D; then every entry equals
        # sum(attn): argmax -> 0, softmax -> uniform 1/n_not_mask.
        # TODO(synk): the dynamic boolean row-selection of the reference has no
        # static-shape Pallas equivalent; only the shape-valid case is kept.
        mask2 = (isd == 3.0) | (isd == 5.0) | (isd == 7.0)
        isd_pred0 = isd[0:1, 0:1]            # pred is always 0  ->  isd[0]
        for i in range(pn_max):
            n_nm = jnp.sum(jnp.logical_not(mask2).astype(jnp.float32),
                           axis=1, keepdims=True)
            row = jnp.ones((1, p), jnp.float32) / n_nm

            @pl.when(i < pn)
            def _():
                out_ref[pl.ds(pn + i, 1), :] = row

            mask2 = mask2 & (isd != isd_pred0)

    return kernel


def decode_pallas(meta, isd, gidx, lin_all, rep_stack):
    num_cases, _, p = isd.shape
    e, lm = lin_all.shape
    h = rep_stack.shape[2]
    r2 = gidx.shape[1]
    cost = pl.CostEstimate(
        flops=num_cases * 2 * (r2 * e * (lm + h)
                               + (p + 1) * p * (lm + h)
                               + PN_MAX * p * p),
        transcendentals=num_cases * PN_MAX * p,
        bytes_accessed=4 * (num_cases * (p + r2 + e * h + S1 * p + 1)
                            + e * lm))
    # NOTE: at larger num_cases, block C_BLK cases per grid step (amortize the
    # ~0.35-0.6 us fixed step cost, fill MXU sublanes) and pad the P axis of the
    # output to 128 for lane-dense writeback; negligible at 2 cases.
    return pl.pallas_call(
        make_decode_kernel(p, e, h, lm, r2, S1, PN_MAX),
        out_shape=jax.ShapeDtypeStruct((num_cases, S1, p), jnp.float32),
        grid_spec=pltpu.PrefetchScalarGridSpec(
            num_scalar_prefetch=1,                 # 1-D per-case passenger_nums
            grid=(num_cases,),
            in_specs=[
                pl.BlockSpec((None, 1, p), lambda c, m: (c, 0, 0)),
                pl.BlockSpec((None, r2, 1), lambda c, m: (c, 0, 0)),
                pl.BlockSpec((e, lm), lambda c, m: (0, 0)),      # resident across cases
                pl.BlockSpec((None, e, h), lambda c, m: (c, 0, 0)),
            ],
            out_specs=pl.BlockSpec((None, S1, p), lambda c, m: (c, 0, 0)),
        ),
        compiler_params=pltpu.CompilerParams(
            dimension_semantics=("parallel",)),    # shard cases across v7x TCs
        cost_estimate=cost,
    )(meta, isd, gidx, lin_all, rep_stack)


# ----------------------------- forward wrapper -----------------------------
def decoder_forward(edge_rep, cases, link2edge, distance_matrix, W, b):
    """Mirrors Decoder.forward: returns {case_id: indices (candidate_length-1, shape_0)}."""
    case_ids = sorted(cases.keys())
    num_cases = len(case_ids)

    # --- stage 1: row-wise nn.Linear applied once to every distance row.
    # bf16 operands (HBM-bound matmul; conscious speed-over-bit-exact decision),
    # f32 accumulation inside the kernel.
    lin_all = linear_all_pallas(distance_matrix.astype(jnp.bfloat16),
                                W.astype(jnp.bfloat16), b)            # (E, 32) f32

    rep_stack = jnp.stack([edge_rep[cid] for cid in case_ids])        # (C, E, H)

    # --- stage 2: per-case metadata (host-side, tiny) for the batched decode.
    meta_np = np.zeros((num_cases,), np.int32)             # passenger_nums only
    isd_np = np.zeros((num_cases, 1, P), np.float32)
    gidx_np = np.zeros((num_cases, R2, 1), np.int32)
    for ci, cid in enumerate(case_ids):
        cd = cases[cid]
        p_edge_ids = np.asarray(cd["pass_edge_ids"], np.int32)
        link_idx = link2edge[p_edge_ids]
        drv_edge = int(cd["driver_edge_id"])
        meta_np[ci] = 2 if cd["max_is_driver"] == 5 else 3            # (2,5) vs (3,7)
        isd_np[ci, 0, :] = cd["pass_is_driver"].astype(np.float32)
        gidx_np[ci, 0:P, 0] = link_idx                    # pass_rep / pass_lin rows
        gidx_np[ci, P, 0] = int(link2edge[drv_edge])      # driver rep row
        gidx_np[ci, P + 1:2 * P + 1, 0] = p_edge_ids      # candidate lin rows
        gidx_np[ci, 2 * P + 1, 0] = drv_edge              # driver lin row

    out = decode_pallas(jnp.asarray(meta_np), jnp.asarray(isd_np),
                        jnp.asarray(gidx_np), lin_all, rep_stack)
    return {cid: out[ci] for ci, cid in enumerate(case_ids)}


# ----------------------------- main -----------------------------
if __name__ == "__main__":
    key = jax.random.PRNGKey(0)
    kW, kb, kdist, krep0, krep1 = jax.random.split(key, 5)

    # nn.Linear(5941, 32): weight stored pre-transposed (5941, 32), bias (1, 32)
    W = jax.random.normal(kW, (DIST_DIM, LIN_OUT), jnp.float32) * 0.02
    b = jax.random.normal(kb, (1, LIN_OUT), jnp.float32) * 0.02

    distance_matrix = jax.random.normal(kdist, (E, DIST_DIM), jnp.float32)
    link2edge = np.random.RandomState(0).permutation(E).astype(np.int32)
    edge_rep = {
        0: jax.random.normal(krep0, (E, H), jnp.float32),
        1: jax.random.normal(krep1, (E, H), jnp.float32),
    }

    rng = np.random.RandomState(1)
    cases = {}
    for cid in (0, 1):
        pass_edge_ids = rng.choice(E, size=P, replace=False).astype(np.int32)
        # passenger codes in {2,4,6} (pickup set); loop-2 mask stays all-False,
        # which is exactly the shape-valid case of the reference code.
        pass_is_driver = rng.choice(np.array([2, 4, 6], dtype=np.int32), size=P)
        driver_edge_id = int(rng.randint(0, E))
        cases[cid] = dict(
            pass_edge_ids=pass_edge_ids,
            pass_is_driver=pass_is_driver,
            driver_edge_id=driver_edge_id,
            max_is_driver=int(max(1, int(pass_is_driver.max()))),
            candidate_length=CAND_LEN,
        )

    out = decoder_forward(edge_rep, cases, link2edge, distance_matrix, W, b)
    for cid, arr in out.items():
        jax.block_until_ready(arr)
        assert arr.shape == (CAND_LEN - 1, P)
        assert bool(jnp.all(jnp.isfinite(arr)))
    print("KERNEL_OK")
</pallas_src>

<mosaic_0001>
module attributes {stable_mosaic.version = 11 : i64} {
  func.func @_linear_kernel(%arg0: i32, %arg1: memref<64x5941xbf16, #tpu.memory_space<vmem>>, %arg2: memref<5941x32xbf16, #tpu.memory_space<vmem>>, %arg3: memref<1x32xf32, #tpu.memory_space<vmem>>, %arg4: memref<64x32xf32, #tpu.memory_space<vmem>>) attributes {dimension_semantics = [#tpu.dimension_semantics<arbitrary>], iteration_bounds = array<i64: 1>, scalar_prefetch = 0 : i64, scratch_operands = 0 : i64, tpu.core_type = #tpu.core_type<tc>, window_params = [{pipeline_mode = #tpu.pipeline_mode<synchronous>, transform_indices = @transform_0, window_bounds = array<i64: 64, 5941>}, {pipeline_mode = #tpu.pipeline_mode<synchronous>, transform_indices = @transform_1, window_bounds = array<i64: 5941, 32>}, {pipeline_mode = #tpu.pipeline_mode<synchronous>, transform_indices = @transform_2, window_bounds = array<i64: 1, 32>}, {pipeline_mode = #tpu.pipeline_mode<synchronous>, transform_indices = @transform_3, window_bounds = array<i64: 64, 32>}]} {
    %c0 = arith.constant 0 : index
    %c0_0 = arith.constant 0 : index
    %0 = vector.load %arg1[%c0, %c0_0] : memref<64x5941xbf16, #tpu.memory_space<vmem>>, vector<64x5941xbf16>
    %c0_1 = arith.constant 0 : index
    %c0_2 = arith.constant 0 : index
    %1 = vector.load %arg2[%c0_1, %c0_2] : memref<5941x32xbf16, #tpu.memory_space<vmem>>, vector<5941x32xbf16>
    %cst = arith.constant dense<0.000000e+00> : vector<64x32xf32>
    %2 = tpu.matmul %0, %1, %cst {dimension_numbers = #tpu.dot_dimension_numbers<[1], [0], [0], [1], [0, 0, 1, 1], [], []>} : vector<64x5941xbf16>, vector<5941x32xbf16>, vector<64x32xf32> -> vector<64x32xf32>
    %c0_3 = arith.constant 0 : index
    %c0_4 = arith.constant 0 : index
    %3 = vector.load %arg3[%c0_3, %c0_4] : memref<1x32xf32, #tpu.memory_space<vmem>>, vector<1x32xf32>
    %4 = vector.broadcast %3 : vector<1x32xf32> to vector<64x32xf32>
    %5 = arith.addf %2, %4 : vector<64x32xf32>
    %c0_5 = arith.constant 0 : index
    %c0_6 = arith.constant 0 : index
    %6 = vector.load %arg4[%c0_5, %c0_6] : memref<64x32xf32, #tpu.memory_space<vmem>>, vector<64x32xf32>
    tpu.vector_store %arg4[%c0_5, %c0_6], %5 {strides = array<i32>} : memref<64x32xf32, #tpu.memory_space<vmem>>, vector<64x32xf32>,
    return
  }
  func.func @transform_0(%arg0: i32) -> (i32, i32) {
    %c0_i32 = arith.constant 0 : i32
    %c0_i32_0 = arith.constant 0 : i32
    %c0_i32_1 = arith.constant 0 : i32
    return %c0_i32, %c0_i32_0 : i32, i32
  }
  func.func @transform_1(%arg0: i32) -> (i32, i32) {
    %c0_i32 = arith.constant 0 : i32
    %c0_i32_0 = arith.constant 0 : i32
    %c0_i32_1 = arith.constant 0 : i32
    return %c0_i32, %c0_i32_0 : i32, i32
  }
  func.func @transform_2(%arg0: i32) -> (i32, i32) {
    %c0_i32 = arith.constant 0 : i32
    %c0_i32_0 = arith.constant 0 : i32
    %c0_i32_1 = arith.constant 0 : i32
    return %c0_i32, %c0_i32_0 : i32, i32
  }
  func.func @transform_3(%arg0: i32) -> (i32, i32) {
    %c0_i32 = arith.constant 0 : i32
    %c0_i32_0 = arith.constant 0 : i32
    %c0_i32_1 = arith.constant 0 : i32
    return %c0_i32, %c0_i32_0 : i32, i32
  }
}

</mosaic_0001>

<llo_original>
// kernel: tpu_custom_call.1
$region0: #{tpu_custom_call.1}
  #allocation0 [shape = 'u32[]', space=smem, size = 0x4, offset = 0x4, fixed_abs, tag = 'smem constant byte address 0x4 - core index']
  #allocation1 [shape = 'u32[144,128]{1,0:T(1,128)}', space=vmem, size = 0x12000, scoped, tag = 'internal scratch']
  %s0 = inlined_call_operand.vmem [shape: bf16[64,5941], index: 0, kind: input, shape index: {}]
  %s1 = inlined_call_operand.vmem [shape: bf16[5941,32], index: 1, kind: input, shape index: {}]
  %s2 = inlined_call_operand.vmem [shape: f32[1,32], index: 2, kind: input, shape index: {}]
  %s3 = inlined_call_operand.vmem [shape: f32[64,32], index: 3, kind: output, shape index: {}]
  %s4 = sld [smem:[#allocation0]]
  $region22: #{tpu_custom_call.1} parent=0
    _
  %s6 = ssub.s32 1, %s4
  %s7 = scalar_select 0, %s6, %s4
  // Predicated region
  $region2: #{tpu_custom_call.1} parent=0 // pred_check
    _
  $region3: #{tpu_custom_call.1} parent=0 // pred_check_branch
    %9 = sbr.rel (0) target = $region5
  $region4: #{tpu_custom_call.1} parent=0 // pred_region
    _
  $region5: #{tpu_custom_call.1} parent=0 // pred_fallthru
    _
  // Predicated region
  $region6: #{tpu_custom_call.1} parent=0 // pred_check
    _
  $region7: #{tpu_custom_call.1} parent=0 // pred_check_branch
    %11 = sbr.rel (0) target = $region9
  $region8: #{tpu_custom_call.1} parent=0 // pred_region
    _
  $region9: #{tpu_custom_call.1} parent=0 // pred_fallthru
    _
  // Predicated region
  $region10: #{tpu_custom_call.1} parent=0 // pred_check
    _
  $region11: #{tpu_custom_call.1} parent=0 // pred_check_branch
    %13 = sbr.rel (0) target = $region13
  $region12: #{tpu_custom_call.1} parent=0 // pred_region
    _
  $region13: #{tpu_custom_call.1} parent=0 // pred_fallthru
    _
  %v15 = vld [vmem:[%s0] sm:$0xff]
  %v16 = vld [vmem:[%s0 + $0x8] sm:$0xff]
  %v17 = vld [vmem:[%s0 + $0x10] sm:$0xff]
  %v18 = vld [vmem:[%s0 + $0x18] sm:$0xff]
  %v19 = vld [vmem:[%s0 + $0x20] sm:$0xff]
  %v20 = vld [vmem:[%s0 + $0x28] sm:$0xff]
  %v21 = vld [vmem:[%s0 + $0x30] sm:$0xff]
  %v22 = vld [vmem:[%s0 + $0x38] sm:$0xff]
  %v23 = vld [vmem:[%s0 + $0x40] sm:$0xff]
  %v24 = vld [vmem:[%s0 + $0x48] sm:$0xff]
  %v25 = vld [vmem:[%s0 + $0x50] sm:$0xff]
  %v26 = vld [vmem:[%s0 + $0x58] sm:$0xff]
  %v27 = vld [vmem:[%s0 + $0x60] sm:$0xff]
  %v28 = vld [vmem:[%s0 + $0x68] sm:$0xff]
  %v29 = vld [vmem:[%s0 + $0x70] sm:$0xff]
  %v30 = vld [vmem:[%s0 + $0x78] sm:$0xff]
  %v31 = vld [vmem:[%s0 + $0x80] sm:$0xff]
  %v32 = vld [vmem:[%s0 + $0x88] sm:$0xff]
  %v33 = vld [vmem:[%s0 + $0x90] sm:$0xff]
  %v34 = vld [vmem:[%s0 + $0x98] sm:$0xff]
  %v35 = vld [vmem:[%s0 + $0xa0] sm:$0xff]
  %v36 = vld [vmem:[%s0 + $0xa8] sm:$0xff]
  %v37 = vld [vmem:[%s0 + $0xb0] sm:$0xff]
  %v38 = vld [vmem:[%s0 + $0xb8] sm:$0xf]
  %v39 = vld [vmem:[%s0 + $0xbc] sm:$0xff]
  %v40 = vld [vmem:[%s0 + $0xc4] sm:$0xff]
  %v41 = vld [vmem:[%s0 + $0xcc] sm:$0xff]
  %v42 = vld [vmem:[%s0 + $0xd4] sm:$0xff]
  %v43 = vld [vmem:[%s0 + $0xdc] sm:$0xff]
  %v44 = vld [vmem:[%s0 + $0xe4] sm:$0xff]
  %v45 = vld [vmem:[%s0 + $0xec] sm:$0xff]
  %v46 = vld [vmem:[%s0 + $0xf4] sm:$0xff]
  %v47 = vld [vmem:[%s0 + $0xfc] sm:$0xff]
  %v48 = vld [vmem:[%s0 + $0x104] sm:$0xff]
  %v49 = vld [vmem:[%s0 + $0x10c] sm:$0xff]
  %v50 = vld [vmem:[%s0 + $0x114] sm:$0xff]
  %v51 = vld [vmem:[%s0 + $0x11c] sm:$0xff]
  %v52 = vld [vmem:[%s0 + $0x124] sm:$0xff]
  %v53 = vld [vmem:[%s0 + $0x12c] sm:$0xff]
  %v54 = vld [vmem:[%s0 + $0x134] sm:$0xff]
  %v55 = vld [vmem:[%s0 + $0x13c] sm:$0xff]
  %v56 = vld [vmem:[%s0 + $0x144] sm:$0xff]
  %v57 = vld [vmem:[%s0 + $0x14c] sm:$0xff]
  %v58 = vld [vmem:[%s0 + $0x154] sm:$0xff]
  %v59 = vld [vmem:[%s0 + $0x15c] sm:$0xff]
  %v60 = vld [vmem:[%s0 + $0x164] sm:$0xff]
  %v61 = vld [vmem:[%s0 + $0x16c] sm:$0xff]
  %v62 = vld [vmem:[%s0 + $0x174] sm:$0xf]
  %v63 = vld [vmem:[%s0 + $0x178] sm:$0xff]
  %v64 = vld [vmem:[%s0 + $0x180] sm:$0xff]
  %v65 = vld [vmem:[%s0 + $0x188] sm:$0xff]
  %v66 = vld [vmem:[%s0 + $0x190] sm:$0xff]
  %v67 = vld [vmem:[%s0 + $0x198] sm:$0xff]
  %v68 = vld [vmem:[%s0 + $0x1a0] sm:$0xff]
  %v69 = vld [vmem:[%s0 + $0x1a8] sm:$0xff]
  %v70 = vld [vmem:[%s0 + $0x1b0] sm:$0xff]
  %v71 = vld [vmem:[%s0 + $0x1b8] sm:$0xff]
  %v72 = vld [vmem:[%s0 + $0x1c0] sm:$0xff]
  %v73 = vld [vmem:[%s0 + $0x1c8] sm:$0xff]
  %v74 = vld [vmem:[%s0 + $0x1d0] sm:$0xff]
  %v75 = vld [vmem:[%s0 + $0x1d8] sm:$0xff]
  %v76 = vld [vmem:[%s0 + $0x1e0] sm:$0xff]
  %v77 = vld [vmem:[%s0 + $0x1e8] sm:$0xff]
  %v78 = vld [vmem:[%s0 + $0x1f0] sm:$0xff]
  %v79 = vld [vmem:[%s0 + $0x1f8] sm:$0xff]
  %v80 = vld [vmem:[%s0 + $0x200] sm:$0xff]
  %v81 = vld [vmem:[%s0 + $0x208] sm:$0xff]
  %v82 = vld [vmem:[%s0 + $0x210] sm:$0xff]
  %v83 = vld [vmem:[%s0 + $0x218] sm:$0xff]
  %v84 = vld [vmem:[%s0 + $0x220] sm:$0xff]
  %v85 = vld [vmem:[%s0 + $0x228] sm:$0xff]
  %v86 = vld [vmem:[%s0 + $0x230] sm:$0xf]
  %v87 = vld [vmem:[%s0 + $0x234] sm:$0xff]
  %v88 = vld [vmem:[%s0 + $0x23c] sm:$0xff]
  %v89 = vld [vmem:[%s0 + $0x244] sm:$0xff]
  %v90 = vld [vmem:[%s0 + $0x24c] sm:$0xff]
  %v91 = vld [vmem:[%s0 + $0x254] sm:$0xff]
  %v92 = vld [vmem:[%s0 + $0x25c] sm:$0xff]
  %v93 = vld [vmem:[%s0 + $0x264] sm:$0xff]
  %v94 = vld [vmem:[%s0 + $0x26c] sm:$0xff]
  %v95 = vld [vmem:[%s0 + $0x274] sm:$0xff]
  %v96 = vld [vmem:[%s0 + $0x27c] sm:$0xff]
  %v97 = vld [vmem:[%s0 + $0x284] sm:$0xff]
  %v98 = vld [vmem:[%s0 + $0x28c] sm:$0xff]
  %v99 = vld [vmem:[%s0 + $0x294] sm:$0xff]
  %v100 = vld [vmem:[%s0 + $0x29c] sm:$0xff]
  %v101 = vld [vmem:[%s0 + $0x2a4] sm:$0xff]
  %v102 = vld [vmem:[%s0 + $0x2ac] sm:$0xff]
  %v103 = vld [vmem:[%s0 + $0x2b4] sm:$0xff]
  %v104 = vld [vmem:[%s0 + $0x2bc] sm:$0xff]
  %v105 = vld [vmem:[%s0 + $0x2c4] sm:$0xff]
  %v106 = vld [vmem:[%s0 + $0x2cc] sm:$0xff]
  %v107 = vld [vmem:[%s0 + $0x2d4] sm:$0xff]
  %v108 = vld [vmem:[%s0 + $0x2dc] sm:$0xff]
  %v109 = vld [vmem:[%s0 + $0x2e4] sm:$0xff]
  %v110 = vld [vmem:[%s0 + $0x2ec] sm:$0xf]
  %v111 = vld [vmem:[%s0 + $0x2f0] sm:$0xff]
  %v112 = vld [vmem:[%s0 + $0x2f8] sm:$0xff]
  %v113 = vld [vmem:[%s0 + $0x300] sm:$0xff]
  %v114 = vld [vmem:[%s0 + $0x308] sm:$0xff]
  %v115 = vld [vmem:[%s0 + $0x310] sm:$0xff]
  %v116 = vld [vmem:[%s0 + $0x318] sm:$0xff]
  %v117 = vld [vmem:[%s0 + $0x320] sm:$0xff]
  %v118 = vld [vmem:[%s0 + $0x328] sm:$0xff]
  %v119 = vld [vmem:[%s0 + $0x330] sm:$0xff]
  %v120 = vld [vmem:[%s0 + $0x338] sm:$0xff]
  %v121 = vld [vmem:[%s0 + $0x340] sm:$0xff]
  %v122 = vld [vmem:[%s0 + $0x348] sm:$0xff]
  %v123 = vld [vmem:[%s0 + $0x350] sm:$0xff]
  %v124 = vld [vmem:[%s0 + $0x358] sm:$0xff]
  %v125 = vld [vmem:[%s0 + $0x360] sm:$0xff]
  %v126 = vld [vmem:[%s0 + $0x368] sm:$0xff]
  %v127 = vld [vmem:[%s0 + $0x370] sm:$0xff]
  %v128 = vld [vmem:[%s0 + $0x378] sm:$0xff]
  %v129 = vld [vmem:[%s0 + $0x380] sm:$0xff]
  %v130 = vld [vmem:[%s0 + $0x388] sm:$0xff]
  %v131 = vld [vmem:[%s0 + $0x390] sm:$0xff]
  %v132 = vld [vmem:[%s0 + $0x398] sm:$0xff]
  %v133 = vld [vmem:[%s0 + $0x3a0] sm:$0xff]
  %v134 = vld [vmem:[%s0 + $0x3a8] sm:$0xf]
  %v135 = vld [vmem:[%s0 + $0x3ac] sm:$0xff]
  %v136 = vld [vmem:[%s0 + $0x3b4] sm:$0xff]
  %v137 = vld [vmem:[%s0 + $0x3bc] sm:$0xff]
  %v138 = vld [vmem:[%s0 + $0x3c4] sm:$0xff]
  %v139 = vld [vmem:[%s0 + $0x3cc] sm:$0xff]
  %v140 = vld [vmem:[%s0 + $0x3d4] sm:$0xff]
  %v141 = vld [vmem:[%s0 + $0x3dc] sm:$0xff]
  %v142 = vld [vmem:[%s0 + $0x3e4] sm:$0xff]
  %v143 = vld [vmem:[%s0 + $0x3ec] sm:$0xff]
  %v144 = vld [vmem:[%s0 + $0x3f4] sm:$0xff]
  %v145 = vld [vmem:[%s0 + $0x3fc] sm:$0xff]
  %v146 = vld [vmem:[%s0 + $0x404] sm:$0xff]
  %v147 = vld [vmem:[%s0 + $0x40c] sm:$0xff]
  %v148 = vld [vmem:[%s0 + $0x414] sm:$0xff]
  %v149 = vld [vmem:[%s0 + $0x41c] sm:$0xff]
  %v150 = vld [vmem:[%s0 + $0x424] sm:$0xff]
  %v151 = vld [vmem:[%s0 + $0x42c] sm:$0xff]
  %v152 = vld [vmem:[%s0 + $0x434] sm:$0xff]
  %v153 = vld [vmem:[%s0 + $0x43c] sm:$0xff]
  %v154 = vld [vmem:[%s0 + $0x444] sm:$0xff]
  %v155 = vld [vmem:[%s0 + $0x44c] sm:$0xff]
  %v156 = vld [vmem:[%s0 + $0x454] sm:$0xff]
  %v157 = vld [vmem:[%s0 + $0x45c] sm:$0xff]
  %v158 = vld [vmem:[%s0 + $0x464] sm:$0xf]
  %v159 = vld [vmem:[%s0 + $0x468] sm:$0xff]
  %v160 = vld [vmem:[%s0 + $0x470] sm:$0xff]
  %v161 = vld [vmem:[%s0 + $0x478] sm:$0xff]
  %v162 = vld [vmem:[%s0 + $0x480] sm:$0xff]
  %v163 = vld [vmem:[%s0 + $0x488] sm:$0xff]
  %v164 = vld [vmem:[%s0 + $0x490] sm:$0xff]
  %v165 = vld [vmem:[%s0 + $0x498] sm:$0xff]
  %v166 = vld [vmem:[%s0 + $0x4a0] sm:$0xff]
  %v167 = vld [vmem:[%s0 + $0x4a8] sm:$0xff]
  %v168 = vld [vmem:[%s0 + $0x4b0] sm:$0xff]
  %v169 = vld [vmem:[%s0 + $0x4b8] sm:$0xff]
  %v170 = vld [vmem:[%s0 + $0x4c0] sm:$0xff]
  %v171 = vld [vmem:[%s0 + $0x4c8] sm:$0xff]
  %v172 = vld [vmem:[%s0 + $0x4d0] sm:$0xff]
  %v173 = vld [vmem:[%s0 + $0x4d8] sm:$0xff]
  %v174 = vld [vmem:[%s0 + $0x4e0] sm:$0xff]
  %v175 = vld [vmem:[%s0 + $0x4e8] sm:$0xff]
  %v176 = vld [vmem:[%s0 + $0x4f0] sm:$0xff]
  %v177 = vld [vmem:[%s0 + $0x4f8] sm:$0xff]
  %v178 = vld [vmem:[%s0 + $0x500] sm:$0xff]
  %v179 = vld [vmem:[%s0 + $0x508] sm:$0xff]
  %v180 = vld [vmem:[%s0 + $0x510] sm:$0xff]
  %v181 = vld [vmem:[%s0 + $0x518] sm:$0xff]
  %v182 = vld [vmem:[%s0 + $0x520] sm:$0xf]
  %v183 = vld [vmem:[%s0 + $0x524] sm:$0xff]
  %v184 = vld [vmem:[%s0 + $0x52c] sm:$0xff]
  %v185 = vld [vmem:[%s0 + $0x534] sm:$0xff]
  %v186 = vld [vmem:[%s0 + $0x53c] sm:$0xff]
  %v187 = vld [vmem:[%s0 + $0x544] sm:$0xff]
  %v188 = vld [vmem:[%s0 + $0x54c] sm:$0xff]
  %v189 = vld [vmem:[%s0 + $0x554] sm:$0xff]
  %v190 = vld [vmem:[%s0 + $0x55c] sm:$0xff]
  %v191 = vld [vmem:[%s0 + $0x564] sm:$0xff]
  %v192 = vld [vmem:[%s0 + $0x56c] sm:$0xff]
  %v193 = vld [vmem:[%s0 + $0x574] sm:$0xff]
  %v194 = vld [vmem:[%s0 + $0x57c] sm:$0xff]
  %v195 = vld [vmem:[%s0 + $0x584] sm:$0xff]
  %v196 = vld [vmem:[%s0 + $0x58c] sm:$0xff]
  %v197 = vld [vmem:[%s0 + $0x594] sm:$0xff]
  %v198 = vld [vmem:[%s0 + $0x59c] sm:$0xff]
  %v199 = vld [vmem:[%s0 + $0x5a4] sm:$0xff]
  %v200 = vld [vmem:[%s0 + $0x5ac] sm:$0xff]
  %v201 = vld [vmem:[%s0 + $0x5b4] sm:$0xff]
  %v202 = vld [vmem:[%s0 + $0x5bc] sm:$0xff]
  %v203 = vld [vmem:[%s0 + $0x5c4] sm:$0xff]
  %v204 = vld [vmem:[%s0 + $0x5cc] sm:$0xff]
  %v205 = vld [vmem:[%s0 + $0x5d4] sm:$0xff]
  %v206 = vld [vmem:[%s0 + $0x5dc] sm:$0xf]
  %v207 = vld [vmem:[%s1] sm:$0xf]
  %v208 = vld [vmem:[%s1 + $0x4] sm:$0xf]
  %v209 = vld [vmem:[%s1 + $0x8] sm:$0xf]
  %v210 = vld [vmem:[%s1 + $0xc] sm:$0xf]
  %v211 = vld [vmem:[%s1 + $0x10] sm:$0xf]
  %v212 = vld [vmem:[%s1 + $0x14] sm:$0xf]
  %v213 = vld [vmem:[%s1 + $0x18] sm:$0xf]
  %v214 = vld [vmem:[%s1 + $0x1c] sm:$0xf]
  %v215 = vld [vmem:[%s1 + $0x20] sm:$0xf]
  %v216 = vld [vmem:[%s1 + $0x24] sm:$0xf]
  %v217 = vld [vmem:[%s1 + $0x28] sm:$0xf]
  %v218 = vld [vmem:[%s1 + $0x2c] sm:$0xf]
  %v219 = vld [vmem:[%s1 + $0x30] sm:$0xf]
  %v220 = vld [vmem:[%s1 + $0x34] sm:$0xf]
  %v221 = vld [vmem:[%s1 + $0x38] sm:$0xf]
  %v222 = vld [vmem:[%s1 + $0x3c] sm:$0xf]
  %v223 = vld [vmem:[%s1 + $0x40] sm:$0xf]
  %v224 = vld [vmem:[%s1 + $0x44] sm:$0xf]
  %v225 = vld [vmem:[%s1 + $0x48] sm:$0xf]
  %v226 = vld [vmem:[%s1 + $0x4c] sm:$0xf]
  %v227 = vld [vmem:[%s1 + $0x50] sm:$0xf]
  %v228 = vld [vmem:[%s1 + $0x54] sm:$0xf]
  %v229 = vld [vmem:[%s1 + $0x58] sm:$0xf]
  %v230 = vld [vmem:[%s1 + $0x5c] sm:$0xf]
  %v231 = vld [vmem:[%s1 + $0x60] sm:$0xf]
  %v232 = vld [vmem:[%s1 + $0x64] sm:$0xf]
  %v233 = vld [vmem:[%s1 + $0x68] sm:$0xf]
  %v234 = vld [vmem:[%s1 + $0x6c] sm:$0xf]
  %v235 = vld [vmem:[%s1 + $0x70] sm:$0xf]
  %v236 = vld [vmem:[%s1 + $0x74] sm:$0xf]
  %v237 = vld [vmem:[%s1 + $0x78] sm:$0xf]
  %v238 = vld [vmem:[%s1 + $0x7c] sm:$0xf]
  %v239 = vld [vmem:[%s1 + $0x80] sm:$0xf]
  %v240 = vld [vmem:[%s1 + $0x84] sm:$0xf]
  %v241 = vld [vmem:[%s1 + $0x88] sm:$0xf]
  %v242 = vld [vmem:[%s1 + $0x8c] sm:$0xf]
  %v243 = vld [vmem:[%s1 + $0x90] sm:$0xf]
  %v244 = vld [vmem:[%s1 + $0x94] sm:$0xf]
  %v245 = vld [vmem:[%s1 + $0x98] sm:$0xf]
  %v246 = vld [vmem:[%s1 + $0x9c] sm:$0xf]
  %v247 = vld [vmem:[%s1 + $0xa0] sm:$0xf]
  %v248 = vld [vmem:[%s1 + $0xa4] sm:$0xf]
  %v249 = vld [vmem:[%s1 + $0xa8] sm:$0xf]
  %v250 = vld [vmem:[%s1 + $0xac] sm:$0xf]
  %v251 = vld [vmem:[%s1 + $0xb0] sm:$0xf]
  %v252 = vld [vmem:[%s1 + $0xb4] sm:$0xf]
  %v253 = vld [vmem:[%s1 + $0xb8] sm:$0xf]
  %v254 = vld [vmem:[%s1 + $0xbc] sm:$0xf]
  %v255 = vld [vmem:[%s1 + $0xc0] sm:$0xf]
  %v256 = vld [vmem:[%s1 + $0xc4] sm:$0xf]
  %v257 = vld [vmem:[%s1 + $0xc8] sm:$0xf]
  %v258 = vld [vmem:[%s1 + $0xcc] sm:$0xf]
  %v259 = vld [vmem:[%s1 + $0xd0] sm:$0xf]
  %v260 = vld [vmem:[%s1 + $0xd4] sm:$0xf]
  %v261 = vld [vmem:[%s1 + $0xd8] sm:$0xf]
  %v262 = vld [vmem:[%s1 + $0xdc] sm:$0xf]
  %v263 = vld [vmem:[%s1 + $0xe0] sm:$0xf]
  %v264 = vld [vmem:[%s1 + $0xe4] sm:$0xf]
  %v265 = vld [vmem:[%s1 + $0xe8] sm:$0xf]
  %v266 = vld [vmem:[%s1 + $0xec] sm:$0xf]
  %v267 = vld [vmem:[%s1 + $0xf0] sm:$0xf]
  %v268 = vld [vmem:[%s1 + $0xf4] sm:$0xf]
  %v269 = vld [vmem:[%s1 + $0xf8] sm:$0xf]
  %v270 = vld [vmem:[%s1 + $0xfc] sm:$0xf]
  %v271 = vld [vmem:[%s1 + $0x100] sm:$0xf]
  %v272 = vld [vmem:[%s1 + $0x104] sm:$0xf]
  %v273 = vld [vmem:[%s1 + $0x108] sm:$0xf]
  %v274 = vld [vmem:[%s1 + $0x10c] sm:$0xf]
  %v275 = vld [vmem:[%s1 + $0x110] sm:$0xf]
  %v276 = vld [vmem:[%s1 + $0x114] sm:$0xf]
  %v277 = vld [vmem:[%s1 + $0x118] sm:$0xf]
  %v278 = vld [vmem:[%s1 + $0x11c] sm:$0xf]
  %v279 = vld [vmem:[%s1 + $0x120] sm:$0xf]
  %v280 = vld [vmem:[%s1 + $0x124] sm:$0xf]
  %v281 = vld [vmem:[%s1 + $0x128] sm:$0xf]
  %v282 = vld [vmem:[%s1 + $0x12c] sm:$0xf]
  %v283 = vld [vmem:[%s1 + $0x130] sm:$0xf]
  %v284 = vld [vmem:[%s1 + $0x134] sm:$0xf]
  %v285 = vld [vmem:[%s1 + $0x138] sm:$0xf]
  %v286 = vld [vmem:[%s1 + $0x13c] sm:$0xf]
  %v287 = vld [vmem:[%s1 + $0x140] sm:$0xf]
  %v288 = vld [vmem:[%s1 + $0x144] sm:$0xf]
  %v289 = vld [vmem:[%s1 + $0x148] sm:$0xf]
  %v290 = vld [vmem:[%s1 + $0x14c] sm:$0xf]
  %v291 = vld [vmem:[%s1 + $0x150] sm:$0xf]
  %v292 = vld [vmem:[%s1 + $0x154] sm:$0xf]
  %v293 = vld [vmem:[%s1 + $0x158] sm:$0xf]
  %v294 = vld [vmem:[%s1 + $0x15c] sm:$0xf]
  %v295 = vld [vmem:[%s1 + $0x160] sm:$0xf]
  %v296 = vld [vmem:[%s1 + $0x164] sm:$0xf]
  %v297 = vld [vmem:[%s1 + $0x168] sm:$0xf]
  %v298 = vld [vmem:[%s1 + $0x16c] sm:$0xf]
  %v299 = vld [vmem:[%s1 + $0x170] sm:$0xf]
  %v300 = vld [vmem:[%s1 + $0x174] sm:$0xf]
  %v301 = vld [vmem:[%s1 + $0x178] sm:$0xf]
  %v302 = vld [vmem:[%s1 + $0x17c] sm:$0xf]
  %v303 = vld [vmem:[%s1 + $0x180] sm:$0xf]
  %v304 = vld [vmem:[%s1 + $0x184] sm:$0xf]
  %v305 = vld [vmem:[%s1 + $0x188] sm:$0xf]
  %v306 = vld [vmem:[%s1 + $0x18c] sm:$0xf]
  %v307 = vld [vmem:[%s1 + $0x190] sm:$0xf]
  %v308 = vld [vmem:[%s1 + $0x194] sm:$0xf]
  %v309 = vld [vmem:[%s1 + $0x198] sm:$0xf]
  %v310 = vld [vmem:[%s1 + $0x19c] sm:$0xf]
  %v311 = vld [vmem:[%s1 + $0x1a0] sm:$0xf]
  %v312 = vld [vmem:[%s1 + $0x1a4] sm:$0xf]
  %v313 = vld [vmem:[%s1 + $0x1a8] sm:$0xf]
  %v314 = vld [vmem:[%s1 + $0x1ac] sm:$0xf]
  %v315 = vld [vmem:[%s1 + $0x1b0] sm:$0xf]
  %v316 = vld [vmem:[%s1 + $0x1b4] sm:$0xf]
  %v317 = vld [vmem:[%s1 + $0x1b8] sm:$0xf]
  %v318 = vld [vmem:[%s1 + $0x1bc] sm:$0xf]
  %v319 = vld [vmem:[%s1 + $0x1c0] sm:$0xf]
  %v320 = vld [vmem:[%s1 + $0x1c4] sm:$0xf]
  %v321 = vld [vmem:[%s1 + $0x1c8] sm:$0xf]
  %v322 = vld [vmem:[%s1 + $0x1cc] sm:$0xf]
  %v323 = vld [vmem:[%s1 + $0x1d0] sm:$0xf]
  %v324 = vld [vmem:[%s1 + $0x1d4] sm:$0xf]
  %v325 = vld [vmem:[%s1 + $0x1d8] sm:$0xf]
  %v326 = vld [vmem:[%s1 + $0x1dc] sm:$0xf]
  %v327 = vld [vmem:[%s1 + $0x1e0] sm:$0xf]
  %v328 = vld [vmem:[%s1 + $0x1e4] sm:$0xf]
  %v329 = vld [vmem:[%s1 + $0x1e8] sm:$0xf]
  %v330 = vld [vmem:[%s1 + $0x1ec] sm:$0xf]
  %v331 = vld [vmem:[%s1 + $0x1f0] sm:$0xf]
  %v332 = vld [vmem:[%s1 + $0x1f4] sm:$0xf]
  %v333 = vld [vmem:[%s1 + $0x1f8] sm:$0xf]
  %v334 = vld [vmem:[%s1 + $0x1fc] sm:$0xf]
  %v335 = vld [vmem:[%s1 + $0x200] sm:$0xf]
  %v336 = vld [vmem:[%s1 + $0x204] sm:$0xf]
  %v337 = vld [vmem:[%s1 + $0x208] sm:$0xf]
  %v338 = vld [vmem:[%s1 + $0x20c] sm:$0xf]
  %v339 = vld [vmem:[%s1 + $0x210] sm:$0xf]
  %v340 = vld [vmem:[%s1 + $0x214] sm:$0xf]
  %v341 = vld [vmem:[%s1 + $0x218] sm:$0xf]
  %v342 = vld [vmem:[%s1 + $0x21c] sm:$0xf]
  %v343 = vld [vmem:[%s1 + $0x220] sm:$0xf]
  %v344 = vld [vmem:[%s1 + $0x224] sm:$0xf]
  %v345 = vld [vmem:[%s1 + $0x228] sm:$0xf]
  %v346 = vld [vmem:[%s1 + $0x22c] sm:$0xf]
  %v347 = vld [vmem:[%s1 + $0x230] sm:$0xf]
  %v348 = vld [vmem:[%s1 + $0x234] sm:$0xf]
  %v349 = vld [vmem:[%s1 + $0x238] sm:$0xf]
  %v350 = vld [vmem:[%s1 + $0x23c] sm:$0xf]
  %v351 = vld [vmem:[%s1 + $0x240] sm:$0xf]
  %v352 = vld [vmem:[%s1 + $0x244] sm:$0xf]
  %v353 = vld [vmem:[%s1 + $0x248] sm:$0xf]
  %v354 = vld [vmem:[%s1 + $0x24c] sm:$0xf]
  %v355 = vld [vmem:[%s1 + $0x250] sm:$0xf]
  %v356 = vld [vmem:[%s1 + $0x254] sm:$0xf]
  %v357 = vld [vmem:[%s1 + $0x258] sm:$0xf]
  %v358 = vld [vmem:[%s1 + $0x25c] sm:$0xf]
  %v359 = vld [vmem:[%s1 + $0x260] sm:$0xf]
  %v360 = vld [vmem:[%s1 + $0x264] sm:$0xf]
  %v361 = vld [vmem:[%s1 + $0x268] sm:$0xf]
  %v362 = vld [vmem:[%s1 + $0x26c] sm:$0xf]
  %v363 = vld [vmem:[%s1 + $0x270] sm:$0xf]
  %v364 = vld [vmem:[%s1 + $0x274] sm:$0xf]
  %v365 = vld [vmem:[%s1 + $0x278] sm:$0xf]
  %v366 = vld [vmem:[%s1 + $0x27c] sm:$0xf]
  %v367 = vld [vmem:[%s1 + $0x280] sm:$0xf]
  %v368 = vld [vmem:[%s1 + $0x284] sm:$0xf]
  %v369 = vld [vmem:[%s1 + $0x288] sm:$0xf]
  %v370 = vld [vmem:[%s1 + $0x28c] sm:$0xf]
  %v371 = vld [vmem:[%s1 + $0x290] sm:$0xf]
  %v372 = vld [vmem:[%s1 + $0x294] sm:$0xf]
  %v373 = vld [vmem:[%s1 + $0x298] sm:$0xf]
  %v374 = vld [vmem:[%s1 + $0x29c] sm:$0xf]
  %v375 = vld [vmem:[%s1 + $0x2a0] sm:$0xf]
  %v376 = vld [vmem:[%s1 + $0x2a4] sm:$0xf]
  %v377 = vld [vmem:[%s1 + $0x2a8] sm:$0xf]
  %v378 = vld [vmem:[%s1 + $0x2ac] sm:$0xf]
  %v379 = vld [vmem:[%s1 + $0x2b0] sm:$0xf]
  %v380 = vld [vmem:[%s1 + $0x2b4] sm:$0xf]
  %v381 = vld [vmem:[%s1 + $0x2b8] sm:$0xf]
  %v382 = vld [vmem:[%s1 + $0x2bc] sm:$0xf]
  %v383 = vld [vmem:[%s1 + $0x2c0] sm:$0xf]
  %v384 = vld [vmem:[%s1 + $0x2c4] sm:$0xf]
  %v385 = vld [vmem:[%s1 + $0x2c8] sm:$0xf]
  %v386 = vld [vmem:[%s1 + $0x2cc] sm:$0xf]
  %v387 = vld [vmem:[%s1 + $0x2d0] sm:$0xf]
  %v388 = vld [vmem:[%s1 + $0x2d4] sm:$0xf]
  %v389 = vld [vmem:[%s1 + $0x2d8] sm:$0xf]
  %v390 = vld [vmem:[%s1 + $0x2dc] sm:$0xf]
  %v391 = vld [vmem:[%s1 + $0x2e0] sm:$0xf]
  %v392 = vld [vmem:[%s1 + $0x2e4] sm:$0xf]
  %v393 = vld [vmem:[%s1 + $0x2e8] sm:$0xf]
  %v394 = vld [vmem:[%s1 + $0x2ec] sm:$0xf]
  %v395 = vld [vmem:[%s1 + $0x2f0] sm:$0xf]
  %v396 = vld [vmem:[%s1 + $0x2f4] sm:$0xf]
  %v397 = vld [vmem:[%s1 + $0x2f8] sm:$0xf]
  %v398 = vld [vmem:[%s1 + $0x2fc] sm:$0xf]
  %v399 = vld [vmem:[%s1 + $0x300] sm:$0xf]
  %v400 = vld [vmem:[%s1 + $0x304] sm:$0xf]
  %v401 = vld [vmem:[%s1 + $0x308] sm:$0xf]
  %v402 = vld [vmem:[%s1 + $0x30c] sm:$0xf]
  %v403 = vld [vmem:[%s1 + $0x310] sm:$0xf]
  %v404 = vld [vmem:[%s1 + $0x314] sm:$0xf]
  %v405 = vld [vmem:[%s1 + $0x318] sm:$0xf]
  %v406 = vld [vmem:[%s1 + $0x31c] sm:$0xf]
  %v407 = vld [vmem:[%s1 + $0x320] sm:$0xf]
  %v408 = vld [vmem:[%s1 + $0x324] sm:$0xf]
  %v409 = vld [vmem:[%s1 + $0x328] sm:$0xf]
  %v410 = vld [vmem:[%s1 + $0x32c] sm:$0xf]
  %v411 = vld [vmem:[%s1 + $0x330] sm:$0xf]
  %v412 = vld [vmem:[%s1 + $0x334] sm:$0xf]
  %v413 = vld [vmem:[%s1 + $0x338] sm:$0xf]
  %v414 = vld [vmem:[%s1 + $0x33c] sm:$0xf]
  %v415 = vld [vmem:[%s1 + $0x340] sm:$0xf]
  %v416 = vld [vmem:[%s1 + $0x344] sm:$0xf]
  %v417 = vld [vmem:[%s1 + $0x348] sm:$0xf]
  %v418 = vld [vmem:[%s1 + $0x34c] sm:$0xf]
  %v419 = vld [vmem:[%s1 + $0x350] sm:$0xf]
  %v420 = vld [vmem:[%s1 + $0x354] sm:$0xf]
  %v421 = vld [vmem:[%s1 + $0x358] sm:$0xf]
  %v422 = vld [vmem:[%s1 + $0x35c] sm:$0xf]
  %v423 = vld [vmem:[%s1 + $0x360] sm:$0xf]
  %v424 = vld [vmem:[%s1 + $0x364] sm:$0xf]
  %v425 = vld [vmem:[%s1 + $0x368] sm:$0xf]
  %v426 = vld [vmem:[%s1 + $0x36c] sm:$0xf]
  %v427 = vld [vmem:[%s1 + $0x370] sm:$0xf]
  %v428 = vld [vmem:[%s1 + $0x374] sm:$0xf]
  %v429 = vld [vmem:[%s1 + $0x378] sm:$0xf]
  %v430 = vld [vmem:[%s1 + $0x37c] sm:$0xf]
  %v431 = vld [vmem:[%s1 + $0x380] sm:$0xf]
  %v432 = vld [vmem:[%s1 + $0x384] sm:$0xf]
  %v433 = vld [vmem:[%s1 + $0x388] sm:$0xf]
  %v434 = vld [vmem:[%s1 + $0x38c] sm:$0xf]
  %v435 = vld [vmem:[%s1 + $0x390] sm:$0xf]
  %v436 = vld [vmem:[%s1 + $0x394] sm:$0xf]
  %v437 = vld [vmem:[%s1 + $0x398] sm:$0xf]
  %v438 = vld [vmem:[%s1 + $0x39c] sm:$0xf]
  %v439 = vld [vmem:[%s1 + $0x3a0] sm:$0xf]
  %v440 = vld [vmem:[%s1 + $0x3a4] sm:$0xf]
  %v441 = vld [vmem:[%s1 + $0x3a8] sm:$0xf]
  %v442 = vld [vmem:[%s1 + $0x3ac] sm:$0xf]
  %v443 = vld [vmem:[%s1 + $0x3b0] sm:$0xf]
  %v444 = vld [vmem:[%s1 + $0x3b4] sm:$0xf]
  %v445 = vld [vmem:[%s1 + $0x3b8] sm:$0xf]
  %v446 = vld [vmem:[%s1 + $0x3bc] sm:$0xf]
  %v447 = vld [vmem:[%s1 + $0x3c0] sm:$0xf]
  %v448 = vld [vmem:[%s1 + $0x3c4] sm:$0xf]
  %v449 = vld [vmem:[%s1 + $0x3c8] sm:$0xf]
  %v450 = vld [vmem:[%s1 + $0x3cc] sm:$0xf]
  %v451 = vld [vmem:[%s1 + $0x3d0] sm:$0xf]
  %v452 = vld [vmem:[%s1 + $0x3d4] sm:$0xf]
  %v453 = vld [vmem:[%s1 + $0x3d8] sm:$0xf]
  %v454 = vld [vmem:[%s1 + $0x3dc] sm:$0xf]
  %v455 = vld [vmem:[%s1 + $0x3e0] sm:$0xf]
  %v456 = vld [vmem:[%s1 + $0x3e4] sm:$0xf]
  %v457 = vld [vmem:[%s1 + $0x3e8] sm:$0xf]
  %v458 = vld [vmem:[%s1 + $0x3ec] sm:$0xf]
  %v459 = vld [vmem:[%s1 + $0x3f0] sm:$0xf]
  %v460 = vld [vmem:[%s1 + $0x3f4] sm:$0xf]
  %v461 = vld [vmem:[%s1 + $0x3f8] sm:$0xf]
  %v462 = vld [vmem:[%s1 + $0x3fc] sm:$0xf]
  %v463 = vld [vmem:[%s1 + $0x400] sm:$0xf]
  %v464 = vld [vmem:[%s1 + $0x404] sm:$0xf]
  %v465 = vld [vmem:[%s1 + $0x408] sm:$0xf]
  %v466 = vld [vmem:[%s1 + $0x40c] sm:$0xf]
  %v467 = vld [vmem:[%s1 + $0x410] sm:$0xf]
  %v468 = vld [vmem:[%s1 + $0x414] sm:$0xf]
  %v469 = vld [vmem:[%s1 + $0x418] sm:$0xf]
  %v470 = vld [vmem:[%s1 + $0x41c] sm:$0xf]
  %v471 = vld [vmem:[%s1 + $0x420] sm:$0xf]
  %v472 = vld [vmem:[%s1 + $0x424] sm:$0xf]
  %v473 = vld [vmem:[%s1 + $0x428] sm:$0xf]
  %v474 = vld [vmem:[%s1 + $0x42c] sm:$0xf]
  %v475 = vld [vmem:[%s1 + $0x430] sm:$0xf]
  %v476 = vld [vmem:[%s1 + $0x434] sm:$0xf]
  %v477 = vld [vmem:[%s1 + $0x438] sm:$0xf]
  %v478 = vld [vmem:[%s1 + $0x43c] sm:$0xf]
  %v479 = vld [vmem:[%s1 + $0x440] sm:$0xf]
  %v480 = vld [vmem:[%s1 + $0x444] sm:$0xf]
  %v481 = vld [vmem:[%s1 + $0x448] sm:$0xf]
  %v482 = vld [vmem:[%s1 + $0x44c] sm:$0xf]
  %v483 = vld [vmem:[%s1 + $0x450] sm:$0xf]
  %v484 = vld [vmem:[%s1 + $0x454] sm:$0xf]
  %v485 = vld [vmem:[%s1 + $0x458] sm:$0xf]
  %v486 = vld [vmem:[%s1 + $0x45c] sm:$0xf]
  %v487 = vld [vmem:[%s1 + $0x460] sm:$0xf]
  %v488 = vld [vmem:[%s1 + $0x464] sm:$0xf]
  %v489 = vld [vmem:[%s1 + $0x468] sm:$0xf]
  %v490 = vld [vmem:[%s1 + $0x46c] sm:$0xf]
  %v491 = vld [vmem:[%s1 + $0x470] sm:$0xf]
  %v492 = vld [vmem:[%s1 + $0x474] sm:$0xf]
  %v493 = vld [vmem:[%s1 + $0x478] sm:$0xf]
  %v494 = vld [vmem:[%s1 + $0x47c] sm:$0xf]
  %v495 = vld [vmem:[%s1 + $0x480] sm:$0xf]
  %v496 = vld [vmem:[%s1 + $0x484] sm:$0xf]
  %v497 = vld [vmem:[%s1 + $0x488] sm:$0xf]
  %v498 = vld [vmem:[%s1 + $0x48c] sm:$0xf]
  %v499 = vld [vmem:[%s1 + $0x490] sm:$0xf]
  %v500 = vld [vmem:[%s1 + $0x494] sm:$0xf]
  %v501 = vld [vmem:[%s1 + $0x498] sm:$0xf]
  %v502 = vld [vmem:[%s1 + $0x49c] sm:$0xf]
  %v503 = vld [vmem:[%s1 + $0x4a0] sm:$0xf]
  %v504 = vld [vmem:[%s1 + $0x4a4] sm:$0xf]
  %v505 = vld [vmem:[%s1 + $0x4a8] sm:$0xf]
  %v506 = vld [vmem:[%s1 + $0x4ac] sm:$0xf]
  %v507 = vld [vmem:[%s1 + $0x4b0] sm:$0xf]
  %v508 = vld [vmem:[%s1 + $0x4b4] sm:$0xf]
  %v509 = vld [vmem:[%s1 + $0x4b8] sm:$0xf]
  %v510 = vld [vmem:[%s1 + $0x4bc] sm:$0xf]
  %v511 = vld [vmem:[%s1 + $0x4c0] sm:$0xf]
  %v512 = vld [vmem:[%s1 + $0x4c4] sm:$0xf]
  %v513 = vld [vmem:[%s1 + $0x4c8] sm:$0xf]
  %v514 = vld [vmem:[%s1 + $0x4cc] sm:$0xf]
  %v515 = vld [vmem:[%s1 + $0x4d0] sm:$0xf]
  %v516 = vld [vmem:[%s1 + $0x4d4] sm:$0xf]
  %v517 = vld [vmem:[%s1 + $0x4d8] sm:$0xf]
  %v518 = vld [vmem:[%s1 + $0x4dc] sm:$0xf]
  %v519 = vld [vmem:[%s1 + $0x4e0] sm:$0xf]
  %v520 = vld [vmem:[%s1 + $0x4e4] sm:$0xf]
  %v521 = vld [vmem:[%s1 + $0x4e8] sm:$0xf]
  %v522 = vld [vmem:[%s1 + $0x4ec] sm:$0xf]
  %v523 = vld [vmem:[%s1 + $0x4f0] sm:$0xf]
  %v524 = vld [vmem:[%s1 + $0x4f4] sm:$0xf]
  %v525 = vld [vmem:[%s1 + $0x4f8] sm:$0xf]
  %v526 = vld [vmem:[%s1 + $0x4fc] sm:$0xf]
  %v527 = vld [vmem:[%s1 + $0x500] sm:$0xf]
  %v528 = vld [vmem:[%s1 + $0x504] sm:$0xf]
  %v529 = vld [vmem:[%s1 + $0x508] sm:$0xf]
  %v530 = vld [vmem:[%s1 + $0x50c] sm:$0xf]
  %v531 = vld [vmem:[%s1 + $0x510] sm:$0xf]
  %v532 = vld [vmem:[%s1 + $0x514] sm:$0xf]
  %v533 = vld [vmem:[%s1 + $0x518] sm:$0xf]
  %v534 = vld [vmem:[%s1 + $0x51c] sm:$0xf]
  %v535 = vld [vmem:[%s1 + $0x520] sm:$0xf]
  %v536 = vld [vmem:[%s1 + $0x524] sm:$0xf]
  %v537 = vld [vmem:[%s1 + $0x528] sm:$0xf]
  %v538 = vld [vmem:[%s1 + $0x52c] sm:$0xf]
  %v539 = vld [vmem:[%s1 + $0x530] sm:$0xf]
  %v540 = vld [vmem:[%s1 + $0x534] sm:$0xf]
  %v541 = vld [vmem:[%s1 + $0x538] sm:$0xf]
  %v542 = vld [vmem:[%s1 + $0x53c] sm:$0xf]
  %v543 = vld [vmem:[%s1 + $0x540] sm:$0xf]
  %v544 = vld [vmem:[%s1 + $0x544] sm:$0xf]
  %v545 = vld [vmem:[%s1 + $0x548] sm:$0xf]
  %v546 = vld [vmem:[%s1 + $0x54c] sm:$0xf]
  %v547 = vld [vmem:[%s1 + $0x550] sm:$0xf]
  %v548 = vld [vmem:[%s1 + $0x554] sm:$0xf]
  %v549 = vld [vmem:[%s1 + $0x558] sm:$0xf]
  %v550 = vld [vmem:[%s1 + $0x55c] sm:$0xf]
  %v551 = vld [vmem:[%s1 + $0x560] sm:$0xf]
  %v552 = vld [vmem:[%s1 + $0x564] sm:$0xf]
  %v553 = vld [vmem:[%s1 + $0x568] sm:$0xf]
  %v554 = vld [vmem:[%s1 + $0x56c] sm:$0xf]
  %v555 = vld [vmem:[%s1 + $0x570] sm:$0xf]
  %v556 = vld [vmem:[%s1 + $0x574] sm:$0xf]
  %v557 = vld [vmem:[%s1 + $0x578] sm:$0xf]
  %v558 = vld [vmem:[%s1 + $0x57c] sm:$0xf]
  %v559 = vld [vmem:[%s1 + $0x580] sm:$0xf]
  %v560 = vld [vmem:[%s1 + $0x584] sm:$0xf]
  %v561 = vld [vmem:[%s1 + $0x588] sm:$0xf]
  %v562 = vld [vmem:[%s1 + $0x58c] sm:$0xf]
  %v563 = vld [vmem:[%s1 + $0x590] sm:$0xf]
  %v564 = vld [vmem:[%s1 + $0x594] sm:$0xf]
  %v565 = vld [vmem:[%s1 + $0x598] sm:$0xf]
  %v566 = vld [vmem:[%s1 + $0x59c] sm:$0xf]
  %v567 = vld [vmem:[%s1 + $0x5a0] sm:$0xf]
  %v568 = vld [vmem:[%s1 + $0x5a4] sm:$0xf]
  %v569 = vld [vmem:[%s1 + $0x5a8] sm:$0xf]
  %v570 = vld [vmem:[%s1 + $0x5ac] sm:$0xf]
  %v571 = vld [vmem:[%s1 + $0x5b0] sm:$0xf]
  %v572 = vld [vmem:[%s1 + $0x5b4] sm:$0xf]
  %v573 = vld [vmem:[%s1 + $0x5b8] sm:$0xf]
  %v574 = vld [vmem:[%s1 + $0x5bc] sm:$0xf]
  %v575 = vld [vmem:[%s1 + $0x5c0] sm:$0xf]
  %v576 = vld [vmem:[%s1 + $0x5c4] sm:$0xf]
  %v577 = vld [vmem:[%s1 + $0x5c8] sm:$0xf]
  %v578 = vld [vmem:[%s1 + $0x5cc] sm:$0xf]
  %v579 = vld [vmem:[%s1 + $0x5d0] sm:$0xf]
  %v580 = vld [vmem:[%s1 + $0x5d4] sm:$0xf]
  %v581 = vld [vmem:[%s1 + $0x5d8] sm:$0xf]
  %v582 = vld [vmem:[%s1 + $0x5dc] sm:$0xf]
  %v583 = vld [vmem:[%s1 + $0x5e0] sm:$0xf]
  %v584 = vld [vmem:[%s1 + $0x5e4] sm:$0xf]
  %v585 = vld [vmem:[%s1 + $0x5e8] sm:$0xf]
  %v586 = vld [vmem:[%s1 + $0x5ec] sm:$0xf]
  %v587 = vld [vmem:[%s1 + $0x5f0] sm:$0xf]
  %v588 = vld [vmem:[%s1 + $0x5f4] sm:$0xf]
  %v589 = vld [vmem:[%s1 + $0x5f8] sm:$0xf]
  %v590 = vld [vmem:[%s1 + $0x5fc] sm:$0xf]
  %v591 = vld [vmem:[%s1 + $0x600] sm:$0xf]
  %v592 = vld [vmem:[%s1 + $0x604] sm:$0xf]
  %v593 = vld [vmem:[%s1 + $0x608] sm:$0xf]
  %v594 = vld [vmem:[%s1 + $0x60c] sm:$0xf]
  %v595 = vld [vmem:[%s1 + $0x610] sm:$0xf]
  %v596 = vld [vmem:[%s1 + $0x614] sm:$0xf]
  %v597 = vld [vmem:[%s1 + $0x618] sm:$0xf]
  %v598 = vld [vmem:[%s1 + $0x61c] sm:$0xf]
  %v599 = vld [vmem:[%s1 + $0x620] sm:$0xf]
  %v600 = vld [vmem:[%s1 + $0x624] sm:$0xf]
  %v601 = vld [vmem:[%s1 + $0x628] sm:$0xf]
  %v602 = vld [vmem:[%s1 + $0x62c] sm:$0xf]
  %v603 = vld [vmem:[%s1 + $0x630] sm:$0xf]
  %v604 = vld [vmem:[%s1 + $0x634] sm:$0xf]
  %v605 = vld [vmem:[%s1 + $0x638] sm:$0xf]
  %v606 = vld [vmem:[%s1 + $0x63c] sm:$0xf]
  %v607 = vld [vmem:[%s1 + $0x640] sm:$0xf]
  %v608 = vld [vmem:[%s1 + $0x644] sm:$0xf]
  %v609 = vld [vmem:[%s1 + $0x648] sm:$0xf]
  %v610 = vld [vmem:[%s1 + $0x64c] sm:$0xf]
  %v611 = vld [vmem:[%s1 + $0x650] sm:$0xf]
  %v612 = vld [vmem:[%s1 + $0x654] sm:$0xf]
  %v613 = vld [vmem:[%s1 + $0x658] sm:$0xf]
  %v614 = vld [vmem:[%s1 + $0x65c] sm:$0xf]
  %v615 = vld [vmem:[%s1 + $0x660] sm:$0xf]
  %v616 = vld [vmem:[%s1 + $0x664] sm:$0xf]
  %v617 = vld [vmem:[%s1 + $0x668] sm:$0xf]
  %v618 = vld [vmem:[%s1 + $0x66c] sm:$0xf]
  %v619 = vld [vmem:[%s1 + $0x670] sm:$0xf]
  %v620 = vld [vmem:[%s1 + $0x674] sm:$0xf]
  %v621 = vld [vmem:[%s1 + $0x678] sm:$0xf]
  %v622 = vld [vmem:[%s1 + $0x67c] sm:$0xf]
  %v623 = vld [vmem:[%s1 + $0x680] sm:$0xf]
  %v624 = vld [vmem:[%s1 + $0x684] sm:$0xf]
  %v625 = vld [vmem:[%s1 + $0x688] sm:$0xf]
  %v626 = vld [vmem:[%s1 + $0x68c] sm:$0xf]
  %v627 = vld [vmem:[%s1 + $0x690] sm:$0xf]
  %v628 = vld [vmem:[%s1 + $0x694] sm:$0xf]
  %v629 = vld [vmem:[%s1 + $0x698] sm:$0xf]
  %v630 = vld [vmem:[%s1 + $0x69c] sm:$0xf]
  %v631 = vld [vmem:[%s1 + $0x6a0] sm:$0xf]
  %v632 = vld [vmem:[%s1 + $0x6a4] sm:$0xf]
  %v633 = vld [vmem:[%s1 + $0x6a8] sm:$0xf]
  %v634 = vld [vmem:[%s1 + $0x6ac] sm:$0xf]
  %v635 = vld [vmem:[%s1 + $0x6b0] sm:$0xf]
  %v636 = vld [vmem:[%s1 + $0x6b4] sm:$0xf]
  %v637 = vld [vmem:[%s1 + $0x6b8] sm:$0xf]
  %v638 = vld [vmem:[%s1 + $0x6bc] sm:$0xf]
  %v639 = vld [vmem:[%s1 + $0x6c0] sm:$0xf]
  %v640 = vld [vmem:[%s1 + $0x6c4] sm:$0xf]
  %v641 = vld [vmem:[%s1 + $0x6c8] sm:$0xf]
  %v642 = vld [vmem:[%s1 + $0x6cc] sm:$0xf]
  %v643 = vld [vmem:[%s1 + $0x6d0] sm:$0xf]
  %v644 = vld [vmem:[%s1 + $0x6d4] sm:$0xf]
  %v645 = vld [vmem:[%s1 + $0x6d8] sm:$0xf]
  %v646 = vld [vmem:[%s1 + $0x6dc] sm:$0xf]
  %v647 = vld [vmem:[%s1 + $0x6e0] sm:$0xf]
  %v648 = vld [vmem:[%s1 + $0x6e4] sm:$0xf]
  %v649 = vld [vmem:[%s1 + $0x6e8] sm:$0xf]
  %v650 = vld [vmem:[%s1 + $0x6ec] sm:$0xf]
  %v651 = vld [vmem:[%s1 + $0x6f0] sm:$0xf]
  %v652 = vld [vmem:[%s1 + $0x6f4] sm:$0xf]
  %v653 = vld [vmem:[%s1 + $0x6f8] sm:$0xf]
  %v654 = vld [vmem:[%s1 + $0x6fc] sm:$0xf]
  %v655 = vld [vmem:[%s1 + $0x700] sm:$0xf]
  %v656 = vld [vmem:[%s1 + $0x704] sm:$0xf]
  %v657 = vld [vmem:[%s1 + $0x708] sm:$0xf]
  %v658 = vld [vmem:[%s1 + $0x70c] sm:$0xf]
  %v659 = vld [vmem:[%s1 + $0x710] sm:$0xf]
  %v660 = vld [vmem:[%s1 + $0x714] sm:$0xf]
  %v661 = vld [vmem:[%s1 + $0x718] sm:$0xf]
  %v662 = vld [vmem:[%s1 + $0x71c] sm:$0xf]
  %v663 = vld [vmem:[%s1 + $0x720] sm:$0xf]
  %v664 = vld [vmem:[%s1 + $0x724] sm:$0xf]
  %v665 = vld [vmem:[%s1 + $0x728] sm:$0xf]
  %v666 = vld [vmem:[%s1 + $0x72c] sm:$0xf]
  %v667 = vld [vmem:[%s1 + $0x730] sm:$0xf]
  %v668 = vld [vmem:[%s1 + $0x734] sm:$0xf]
  %v669 = vld [vmem:[%s1 + $0x738] sm:$0xf]
  %v670 = vld [vmem:[%s1 + $0x73c] sm:$0xf]
  %v671 = vld [vmem:[%s1 + $0x740] sm:$0xf]
  %v672 = vld [vmem:[%s1 + $0x744] sm:$0xf]
  %v673 = vld [vmem:[%s1 + $0x748] sm:$0xf]
  %v674 = vld [vmem:[%s1 + $0x74c] sm:$0xf]
  %v675 = vld [vmem:[%s1 + $0x750] sm:$0xf]
  %v676 = vld [vmem:[%s1 + $0x754] sm:$0xf]
  %v677 = vld [vmem:[%s1 + $0x758] sm:$0xf]
  %v678 = vld [vmem:[%s1 + $0x75c] sm:$0xf]
  %v679 = vld [vmem:[%s1 + $0x760] sm:$0xf]
  %v680 = vld [vmem:[%s1 + $0x764] sm:$0xf]
  %v681 = vld [vmem:[%s1 + $0x768] sm:$0xf]
  %v682 = vld [vmem:[%s1 + $0x76c] sm:$0xf]
  %v683 = vld [vmem:[%s1 + $0x770] sm:$0xf]
  %v684 = vld [vmem:[%s1 + $0x774] sm:$0xf]
  %v685 = vld [vmem:[%s1 + $0x778] sm:$0xf]
  %v686 = vld [vmem:[%s1 + $0x77c] sm:$0xf]
  %v687 = vld [vmem:[%s1 + $0x780] sm:$0xf]
  %v688 = vld [vmem:[%s1 + $0x784] sm:$0xf]
  %v689 = vld [vmem:[%s1 + $0x788] sm:$0xf]
  %v690 = vld [vmem:[%s1 + $0x78c] sm:$0xf]
  %v691 = vld [vmem:[%s1 + $0x790] sm:$0xf]
  %v692 = vld [vmem:[%s1 + $0x794] sm:$0xf]
  %v693 = vld [vmem:[%s1 + $0x798] sm:$0xf]
  %v694 = vld [vmem:[%s1 + $0x79c] sm:$0xf]
  %v695 = vld [vmem:[%s1 + $0x7a0] sm:$0xf]
  %v696 = vld [vmem:[%s1 + $0x7a4] sm:$0xf]
  %v697 = vld [vmem:[%s1 + $0x7a8] sm:$0xf]
  %v698 = vld [vmem:[%s1 + $0x7ac] sm:$0xf]
  %v699 = vld [vmem:[%s1 + $0x7b0] sm:$0xf]
  %v700 = vld [vmem:[%s1 + $0x7b4] sm:$0xf]
  %v701 = vld [vmem:[%s1 + $0x7b8] sm:$0xf]
  %v702 = vld [vmem:[%s1 + $0x7bc] sm:$0xf]
  %v703 = vld [vmem:[%s1 + $0x7c0] sm:$0xf]
  %v704 = vld [vmem:[%s1 + $0x7c4] sm:$0xf]
  %v705 = vld [vmem:[%s1 + $0x7c8] sm:$0xf]
  %v706 = vld [vmem:[%s1 + $0x7cc] sm:$0xf]
  %v707 = vld [vmem:[%s1 + $0x7d0] sm:$0xf]
  %v708 = vld [vmem:[%s1 + $0x7d4] sm:$0xf]
  %v709 = vld [vmem:[%s1 + $0x7d8] sm:$0xf]
  %v710 = vld [vmem:[%s1 + $0x7dc] sm:$0xf]
  %v711 = vld [vmem:[%s1 + $0x7e0] sm:$0xf]
  %v712 = vld [vmem:[%s1 + $0x7e4] sm:$0xf]
  %v713 = vld [vmem:[%s1 + $0x7e8] sm:$0xf]
  %v714 = vld [vmem:[%s1 + $0x7ec] sm:$0xf]
  %v715 = vld [vmem:[%s1 + $0x7f0] sm:$0xf]
  %v716 = vld [vmem:[%s1 + $0x7f4] sm:$0xf]
  %v717 = vld [vmem:[%s1 + $0x7f8] sm:$0xf]
  %v718 = vld [vmem:[%s1 + $0x7fc] sm:$0xf]
  %v719 = vld [vmem:[%s1 + $0x800] sm:$0xf]
  %v720 = vld [vmem:[%s1 + $0x804] sm:$0xf]
  %v721 = vld [vmem:[%s1 + $0x808] sm:$0xf]
  %v722 = vld [vmem:[%s1 + $0x80c] sm:$0xf]
  %v723 = vld [vmem:[%s1 + $0x810] sm:$0xf]
  %v724 = vld [vmem:[%s1 + $0x814] sm:$0xf]
  %v725 = vld [vmem:[%s1 + $0x818] sm:$0xf]
  %v726 = vld [vmem:[%s1 + $0x81c] sm:$0xf]
  %v727 = vld [vmem:[%s1 + $0x820] sm:$0xf]
  %v728 = vld [vmem:[%s1 + $0x824] sm:$0xf]
  %v729 = vld [vmem:[%s1 + $0x828] sm:$0xf]
  %v730 = vld [vmem:[%s1 + $0x82c] sm:$0xf]
  %v731 = vld [vmem:[%s1 + $0x830] sm:$0xf]
  %v732 = vld [vmem:[%s1 + $0x834] sm:$0xf]
  %v733 = vld [vmem:[%s1 + $0x838] sm:$0xf]
  %v734 = vld [vmem:[%s1 + $0x83c] sm:$0xf]
  %v735 = vld [vmem:[%s1 + $0x840] sm:$0xf]
  %v736 = vld [vmem:[%s1 + $0x844] sm:$0xf]
  %v737 = vld [vmem:[%s1 + $0x848] sm:$0xf]
  %v738 = vld [vmem:[%s1 + $0x84c] sm:$0xf]
  %v739 = vld [vmem:[%s1 + $0x850] sm:$0xf]
  %v740 = vld [vmem:[%s1 + $0x854] sm:$0xf]
  %v741 = vld [vmem:[%s1 + $0x858] sm:$0xf]
  %v742 = vld [vmem:[%s1 + $0x85c] sm:$0xf]
  %v743 = vld [vmem:[%s1 + $0x860] sm:$0xf]
  %v744 = vld [vmem:[%s1 + $0x864] sm:$0xf]
  %v745 = vld [vmem:[%s1 + $0x868] sm:$0xf]
  %v746 = vld [vmem:[%s1 + $0x86c] sm:$0xf]
  %v747 = vld [vmem:[%s1 + $0x870] sm:$0xf]
  %v748 = vld [vmem:[%s1 + $0x874] sm:$0xf]
  %v749 = vld [vmem:[%s1 + $0x878] sm:$0xf]
  %v750 = vld [vmem:[%s1 + $0x87c] sm:$0xf]
  %v751 = vld [vmem:[%s1 + $0x880] sm:$0xf]
  %v752 = vld [vmem:[%s1 + $0x884] sm:$0xf]
  %v753 = vld [vmem:[%s1 + $0x888] sm:$0xf]
  %v754 = vld [vmem:[%s1 + $0x88c] sm:$0xf]
  %v755 = vld [vmem:[%s1 + $0x890] sm:$0xf]
  %v756 = vld [vmem:[%s1 + $0x894] sm:$0xf]
  %v757 = vld [vmem:[%s1 + $0x898] sm:$0xf]
  %v758 = vld [vmem:[%s1 + $0x89c] sm:$0xf]
  %v759 = vld [vmem:[%s1 + $0x8a0] sm:$0xf]
  %v760 = vld [vmem:[%s1 + $0x8a4] sm:$0xf]
  %v761 = vld [vmem:[%s1 + $0x8a8] sm:$0xf]
  %v762 = vld [vmem:[%s1 + $0x8ac] sm:$0xf]
  %v763 = vld [vmem:[%s1 + $0x8b0] sm:$0xf]
  %v764 = vld [vmem:[%s1 + $0x8b4] sm:$0xf]
  %v765 = vld [vmem:[%s1 + $0x8b8] sm:$0xf]
  %v766 = vld [vmem:[%s1 + $0x8bc] sm:$0xf]
  %v767 = vld [vmem:[%s1 + $0x8c0] sm:$0xf]
  %v768 = vld [vmem:[%s1 + $0x8c4] sm:$0xf]
  %v769 = vld [vmem:[%s1 + $0x8c8] sm:$0xf]
  %v770 = vld [vmem:[%s1 + $0x8cc] sm:$0xf]
  %v771 = vld [vmem:[%s1 + $0x8d0] sm:$0xf]
  %v772 = vld [vmem:[%s1 + $0x8d4] sm:$0xf]
  %v773 = vld [vmem:[%s1 + $0x8d8] sm:$0xf]
  %v774 = vld [vmem:[%s1 + $0x8dc] sm:$0xf]
  %v775 = vld [vmem:[%s1 + $0x8e0] sm:$0xf]
  %v776 = vld [vmem:[%s1 + $0x8e4] sm:$0xf]
  %v777 = vld [vmem:[%s1 + $0x8e8] sm:$0xf]
  %v778 = vld [vmem:[%s1 + $0x8ec] sm:$0xf]
  %v779 = vld [vmem:[%s1 + $0x8f0] sm:$0xf]
  %v780 = vld [vmem:[%s1 + $0x8f4] sm:$0xf]
  %v781 = vld [vmem:[%s1 + $0x8f8] sm:$0xf]
  %v782 = vld [vmem:[%s1 + $0x8fc] sm:$0xf]
  %v783 = vld [vmem:[%s1 + $0x900] sm:$0xf]
  %v784 = vld [vmem:[%s1 + $0x904] sm:$0xf]
  %v785 = vld [vmem:[%s1 + $0x908] sm:$0xf]
  %v786 = vld [vmem:[%s1 + $0x90c] sm:$0xf]
  %v787 = vld [vmem:[%s1 + $0x910] sm:$0xf]
  %v788 = vld [vmem:[%s1 + $0x914] sm:$0xf]
  %v789 = vld [vmem:[%s1 + $0x918] sm:$0xf]
  %v790 = vld [vmem:[%s1 + $0x91c] sm:$0xf]
  %v791 = vld [vmem:[%s1 + $0x920] sm:$0xf]
  %v792 = vld [vmem:[%s1 + $0x924] sm:$0xf]
  %v793 = vld [vmem:[%s1 + $0x928] sm:$0xf]
  %v794 = vld [vmem:[%s1 + $0x92c] sm:$0xf]
  %v795 = vld [vmem:[%s1 + $0x930] sm:$0xf]
  %v796 = vld [vmem:[%s1 + $0x934] sm:$0xf]
  %v797 = vld [vmem:[%s1 + $0x938] sm:$0xf]
  %v798 = vld [vmem:[%s1 + $0x93c] sm:$0xf]
  %v799 = vld [vmem:[%s1 + $0x940] sm:$0xf]
  %v800 = vld [vmem:[%s1 + $0x944] sm:$0xf]
  %v801 = vld [vmem:[%s1 + $0x948] sm:$0xf]
  %v802 = vld [vmem:[%s1 + $0x94c] sm:$0xf]
  %v803 = vld [vmem:[%s1 + $0x950] sm:$0xf]
  %v804 = vld [vmem:[%s1 + $0x954] sm:$0xf]
  %v805 = vld [vmem:[%s1 + $0x958] sm:$0xf]
  %v806 = vld [vmem:[%s1 + $0x95c] sm:$0xf]
  %v807 = vld [vmem:[%s1 + $0x960] sm:$0xf]
  %v808 = vld [vmem:[%s1 + $0x964] sm:$0xf]
  %v809 = vld [vmem:[%s1 + $0x968] sm:$0xf]
  %v810 = vld [vmem:[%s1 + $0x96c] sm:$0xf]
  %v811 = vld [vmem:[%s1 + $0x970] sm:$0xf]
  %v812 = vld [vmem:[%s1 + $0x974] sm:$0xf]
  %v813 = vld [vmem:[%s1 + $0x978] sm:$0xf]
  %v814 = vld [vmem:[%s1 + $0x97c] sm:$0xf]
  %v815 = vld [vmem:[%s1 + $0x980] sm:$0xf]
  %v816 = vld [vmem:[%s1 + $0x984] sm:$0xf]
  %v817 = vld [vmem:[%s1 + $0x988] sm:$0xf]
  %v818 = vld [vmem:[%s1 + $0x98c] sm:$0xf]
  %v819 = vld [vmem:[%s1 + $0x990] sm:$0xf]
  %v820 = vld [vmem:[%s1 + $0x994] sm:$0xf]
  %v821 = vld [vmem:[%s1 + $0x998] sm:$0xf]
  %v822 = vld [vmem:[%s1 + $0x99c] sm:$0xf]
  %v823 = vld [vmem:[%s1 + $0x9a0] sm:$0xf]
  %v824 = vld [vmem:[%s1 + $0x9a4] sm:$0xf]
  %v825 = vld [vmem:[%s1 + $0x9a8] sm:$0xf]
  %v826 = vld [vmem:[%s1 + $0x9ac] sm:$0xf]
  %v827 = vld [vmem:[%s1 + $0x9b0] sm:$0xf]
  %v828 = vld [vmem:[%s1 + $0x9b4] sm:$0xf]
  %v829 = vld [vmem:[%s1 + $0x9b8] sm:$0xf]
  %v830 = vld [vmem:[%s1 + $0x9bc] sm:$0xf]
  %v831 = vld [vmem:[%s1 + $0x9c0] sm:$0xf]
  %v832 = vld [vmem:[%s1 + $0x9c4] sm:$0xf]
  %v833 = vld [vmem:[%s1 + $0x9c8] sm:$0xf]
  %v834 = vld [vmem:[%s1 + $0x9cc] sm:$0xf]
  %v835 = vld [vmem:[%s1 + $0x9d0] sm:$0xf]
  %v836 = vld [vmem:[%s1 + $0x9d4] sm:$0xf]
  %v837 = vld [vmem:[%s1 + $0x9d8] sm:$0xf]
  %v838 = vld [vmem:[%s1 + $0x9dc] sm:$0xf]
  %v839 = vld [vmem:[%s1 + $0x9e0] sm:$0xf]
  %v840 = vld [vmem:[%s1 + $0x9e4] sm:$0xf]
  %v841 = vld [vmem:[%s1 + $0x9e8] sm:$0xf]
  %v842 = vld [vmem:[%s1 + $0x9ec] sm:$0xf]
  %v843 = vld [vmem:[%s1 + $0x9f0] sm:$0xf]
  %v844 = vld [vmem:[%s1 + $0x9f4] sm:$0xf]
  %v845 = vld [vmem:[%s1 + $0x9f8] sm:$0xf]
  %v846 = vld [vmem:[%s1 + $0x9fc] sm:$0xf]
  %v847 = vld [vmem:[%s1 + $0xa00] sm:$0xf]
  %v848 = vld [vmem:[%s1 + $0xa04] sm:$0xf]
  %v849 = vld [vmem:[%s1 + $0xa08] sm:$0xf]
  %v850 = vld [vmem:[%s1 + $0xa0c] sm:$0xf]
  %v851 = vld [vmem:[%s1 + $0xa10] sm:$0xf]
  %v852 = vld [vmem:[%s1 + $0xa14] sm:$0xf]
  %v853 = vld [vmem:[%s1 + $0xa18] sm:$0xf]
  %v854 = vld [vmem:[%s1 + $0xa1c] sm:$0xf]
  %v855 = vld [vmem:[%s1 + $0xa20] sm:$0xf]
  %v856 = vld [vmem:[%s1 + $0xa24] sm:$0xf]
  %v857 = vld [vmem:[%s1 + $0xa28] sm:$0xf]
  %v858 = vld [vmem:[%s1 + $0xa2c] sm:$0xf]
  %v859 = vld [vmem:[%s1 + $0xa30] sm:$0xf]
  %v860 = vld [vmem:[%s1 + $0xa34] sm:$0xf]
  %v861 = vld [vmem:[%s1 + $0xa38] sm:$0xf]
  %v862 = vld [vmem:[%s1 + $0xa3c] sm:$0xf]
  %v863 = vld [vmem:[%s1 + $0xa40] sm:$0xf]
  %v864 = vld [vmem:[%s1 + $0xa44] sm:$0xf]
  %v865 = vld [vmem:[%s1 + $0xa48] sm:$0xf]
  %v866 = vld [vmem:[%s1 + $0xa4c] sm:$0xf]
  %v867 = vld [vmem:[%s1 + $0xa50] sm:$0xf]
  %v868 = vld [vmem:[%s1 + $0xa54] sm:$0xf]
  %v869 = vld [vmem:[%s1 + $0xa58] sm:$0xf]
  %v870 = vld [vmem:[%s1 + $0xa5c] sm:$0xf]
  %v871 = vld [vmem:[%s1 + $0xa60] sm:$0xf]
  %v872 = vld [vmem:[%s1 + $0xa64] sm:$0xf]
  %v873 = vld [vmem:[%s1 + $0xa68] sm:$0xf]
  %v874 = vld [vmem:[%s1 + $0xa6c] sm:$0xf]
  %v875 = vld [vmem:[%s1 + $0xa70] sm:$0xf]
  %v876 = vld [vmem:[%s1 + $0xa74] sm:$0xf]
  %v877 = vld [vmem:[%s1 + $0xa78] sm:$0xf]
  %v878 = vld [vmem:[%s1 + $0xa7c] sm:$0xf]
  %v879 = vld [vmem:[%s1 + $0xa80] sm:$0xf]
  %v880 = vld [vmem:[%s1 + $0xa84] sm:$0xf]
  %v881 = vld [vmem:[%s1 + $0xa88] sm:$0xf]
  %v882 = vld [vmem:[%s1 + $0xa8c] sm:$0xf]
  %v883 = vld [vmem:[%s1 + $0xa90] sm:$0xf]
  %v884 = vld [vmem:[%s1 + $0xa94] sm:$0xf]
  %v885 = vld [vmem:[%s1 + $0xa98] sm:$0xf]
  %v886 = vld [vmem:[%s1 + $0xa9c] sm:$0xf]
  %v887 = vld [vmem:[%s1 + $0xaa0] sm:$0xf]
  %v888 = vld [vmem:[%s1 + $0xaa4] sm:$0xf]
  %v889 = vld [vmem:[%s1 + $0xaa8] sm:$0xf]
  %v890 = vld [vmem:[%s1 + $0xaac] sm:$0xf]
  %v891 = vld [vmem:[%s1 + $0xab0] sm:$0xf]
  %v892 = vld [vmem:[%s1 + $0xab4] sm:$0xf]
  %v893 = vld [vmem:[%s1 + $0xab8] sm:$0xf]
  %v894 = vld [vmem:[%s1 + $0xabc] sm:$0xf]
  %v895 = vld [vmem:[%s1 + $0xac0] sm:$0xf]
  %v896 = vld [vmem:[%s1 + $0xac4] sm:$0xf]
  %v897 = vld [vmem:[%s1 + $0xac8] sm:$0xf]
  %v898 = vld [vmem:[%s1 + $0xacc] sm:$0xf]
  %v899 = vld [vmem:[%s1 + $0xad0] sm:$0xf]
  %v900 = vld [vmem:[%s1 + $0xad4] sm:$0xf]
  %v901 = vld [vmem:[%s1 + $0xad8] sm:$0xf]
  %v902 = vld [vmem:[%s1 + $0xadc] sm:$0xf]
  %v903 = vld [vmem:[%s1 + $0xae0] sm:$0xf]
  %v904 = vld [vmem:[%s1 + $0xae4] sm:$0xf]
  %v905 = vld [vmem:[%s1 + $0xae8] sm:$0xf]
  %v906 = vld [vmem:[%s1 + $0xaec] sm:$0xf]
  %v907 = vld [vmem:[%s1 + $0xaf0] sm:$0xf]
  %v908 = vld [vmem:[%s1 + $0xaf4] sm:$0xf]
  %v909 = vld [vmem:[%s1 + $0xaf8] sm:$0xf]
  %v910 = vld [vmem:[%s1 + $0xafc] sm:$0xf]
  %v911 = vld [vmem:[%s1 + $0xb00] sm:$0xf]
  %v912 = vld [vmem:[%s1 + $0xb04] sm:$0xf]
  %v913 = vld [vmem:[%s1 + $0xb08] sm:$0xf]
  %v914 = vld [vmem:[%s1 + $0xb0c] sm:$0xf]
  %v915 = vld [vmem:[%s1 + $0xb10] sm:$0xf]
  %v916 = vld [vmem:[%s1 + $0xb14] sm:$0xf]
  %v917 = vld [vmem:[%s1 + $0xb18] sm:$0xf]
  %v918 = vld [vmem:[%s1 + $0xb1c] sm:$0xf]
  %v919 = vld [vmem:[%s1 + $0xb20] sm:$0xf]
  %v920 = vld [vmem:[%s1 + $0xb24] sm:$0xf]
  %v921 = vld [vmem:[%s1 + $0xb28] sm:$0xf]
  %v922 = vld [vmem:[%s1 + $0xb2c] sm:$0xf]
  %v923 = vld [vmem:[%s1 + $0xb30] sm:$0xf]
  %v924 = vld [vmem:[%s1 + $0xb34] sm:$0xf]
  %v925 = vld [vmem:[%s1 + $0xb38] sm:$0xf]
  %v926 = vld [vmem:[%s1 + $0xb3c] sm:$0xf]
  %v927 = vld [vmem:[%s1 + $0xb40] sm:$0xf]
  %v928 = vld [vmem:[%s1 + $0xb44] sm:$0xf]
  %v929 = vld [vmem:[%s1 + $0xb48] sm:$0xf]
  %v930 = vld [vmem:[%s1 + $0xb4c] sm:$0xf]
  %v931 = vld [vmem:[%s1 + $0xb50] sm:$0xf]
  %v932 = vld [vmem:[%s1 + $0xb54] sm:$0xf]
  %v933 = vld [vmem:[%s1 + $0xb58] sm:$0xf]
  %v934 = vld [vmem:[%s1 + $0xb5c] sm:$0xf]
  %v935 = vld [vmem:[%s1 + $0xb60] sm:$0xf]
  %v936 = vld [vmem:[%s1 + $0xb64] sm:$0xf]
  %v937 = vld [vmem:[%s1 + $0xb68] sm:$0xf]
  %v938 = vld [vmem:[%s1 + $0xb6c] sm:$0xf]
  %v939 = vld [vmem:[%s1 + $0xb70] sm:$0xf]
  %v940 = vld [vmem:[%s1 + $0xb74] sm:$0xf]
  %v941 = vld [vmem:[%s1 + $0xb78] sm:$0xf]
  %v942 = vld [vmem:[%s1 + $0xb7c] sm:$0xf]
  %v943 = vld [vmem:[%s1 + $0xb80] sm:$0xf]
  %v944 = vld [vmem:[%s1 + $0xb84] sm:$0xf]
  %v945 = vld [vmem:[%s1 + $0xb88] sm:$0xf]
  %v946 = vld [vmem:[%s1 + $0xb8c] sm:$0xf]
  %v947 = vld [vmem:[%s1 + $0xb90] sm:$0xf]
  %v948 = vld [vmem:[%s1 + $0xb94] sm:$0xf]
  %v949 = vld [vmem:[%s1 + $0xb98] sm:$0x7]
  %v950 = vld [vmem:[%s2] sm:$0x1]
  %v952 = vlaneseq
  %v953 = vshrl.u32 %v952, 7
  %v954 = vsub.s32 0, %v953
  %v955 = vrot.slane %v950, %v954
  %v1149 = vunpack.c.l.b16 %v15
  %v1150 = vunpack.c.h.b16 %v15
  %v1151 = vunpack.c.l.b16 %v16
  %v1152 = vunpack.c.h.b16 %v16
  %v1153 = vunpack.c.l.b16 %v17
  %v1154 = vunpack.c.h.b16 %v17
  %v1155 = vunpack.c.l.b16 %v18
  %v1156 = vunpack.c.h.b16 %v18
  %v1157 = vunpack.c.l.b16 %v19
  %v1158 = vunpack.c.h.b16 %v19
  %v1159 = vunpack.c.l.b16 %v20
  %v1160 = vunpack.c.h.b16 %v20
  %v1161 = vunpack.c.l.b16 %v21
  %v1162 = vunpack.c.h.b16 %v21
  %v1163 = vunpack.c.l.b16 %v22
  %v1164 = vunpack.c.h.b16 %v22
  %v1165 = vunpack.c.l.b16 %v23
  %v1166 = vunpack.c.h.b16 %v23
  %v1167 = vunpack.c.l.b16 %v24
  %v1168 = vunpack.c.h.b16 %v24
  %v1169 = vunpack.c.l.b16 %v25
  %v1170 = vunpack.c.h.b16 %v25
  %v1171 = vunpack.c.l.b16 %v26
  %v1172 = vunpack.c.h.b16 %v26
  %v1173 = vunpack.c.l.b16 %v27
  %v1174 = vunpack.c.h.b16 %v27
  %v1175 = vunpack.c.l.b16 %v28
  %v1176 = vunpack.c.h.b16 %v28
  %v1177 = vunpack.c.l.b16 %v29
  %v1178 = vunpack.c.h.b16 %v29
  %v1179 = vunpack.c.l.b16 %v30
  %v1180 = vunpack.c.h.b16 %v30
  %v1181 = vunpack.c.l.b16 %v31
  %v1182 = vunpack.c.h.b16 %v31
  %v1183 = vunpack.c.l.b16 %v32
  %v1184 = vunpack.c.h.b16 %v32
  %v1185 = vunpack.c.l.b16 %v33
  %v1186 = vunpack.c.h.b16 %v33
  %v1187 = vunpack.c.l.b16 %v34
  %v1188 = vunpack.c.h.b16 %v34
  %v1189 = vunpack.c.l.b16 %v35
  %v1190 = vunpack.c.h.b16 %v35
  %v1191 = vunpack.c.l.b16 %v36
  %v1192 = vunpack.c.h.b16 %v36
  %v1193 = vunpack.c.l.b16 %v37
  %v1194 = vunpack.c.h.b16 %v37
  %v1195 = vunpack.c.l.b16 %v38
  %v1196 = vunpack.c.l.b16 %v39
  %v1197 = vunpack.c.h.b16 %v39
  %v1198 = vunpack.c.l.b16 %v40
  %v1199 = vunpack.c.h.b16 %v40
  %v1200 = vunpack.c.l.b16 %v41
  %v1201 = vunpack.c.h.b16 %v41
  %v1202 = vunpack.c.l.b16 %v42
  %v1203 = vunpack.c.h.b16 %v42
  %v1204 = vunpack.c.l.b16 %v43
  %v1205 = vunpack.c.h.b16 %v43
  %v1206 = vunpack.c.l.b16 %v44
  %v1207 = vunpack.c.h.b16 %v44
  %v1208 = vunpack.c.l.b16 %v45
  %v1209 = vunpack.c.h.b16 %v45
  %v1210 = vunpack.c.l.b16 %v46
  %v1211 = vunpack.c.h.b16 %v46
  %v1212 = vunpack.c.l.b16 %v47
  %v1213 = vunpack.c.h.b16 %v47
  %v1214 = vunpack.c.l.b16 %v48
  %v1215 = vunpack.c.h.b16 %v48
  %v1216 = vunpack.c.l.b16 %v49
  %v1217 = vunpack.c.h.b16 %v49
  %v1218 = vunpack.c.l.b16 %v50
  %v1219 = vunpack.c.h.b16 %v50
  %v1220 = vunpack.c.l.b16 %v51
  %v1221 = vunpack.c.h.b16 %v51
  %v1222 = vunpack.c.l.b16 %v52
  %v1223 = vunpack.c.h.b16 %v52
  %v1224 = vunpack.c.l.b16 %v53
  %v1225 = vunpack.c.h.b16 %v53
  %v1226 = vunpack.c.l.b16 %v54
  %v1227 = vunpack.c.h.b16 %v54
  %v1228 = vunpack.c.l.b16 %v55
  %v1229 = vunpack.c.h.b16 %v55
  %v1230 = vunpack.c.l.b16 %v56
  %v1231 = vunpack.c.h.b16 %v56
  %v1232 = vunpack.c.l.b16 %v57
  %v1233 = vunpack.c.h.b16 %v57
  %v1234 = vunpack.c.l.b16 %v58
  %v1235 = vunpack.c.h.b16 %v58
  %v1236 = vunpack.c.l.b16 %v59
  %v1237 = vunpack.c.h.b16 %v59
  %v1238 = vunpack.c.l.b16 %v60
  %v1239 = vunpack.c.h.b16 %v60
  %v1240 = vunpack.c.l.b16 %v61
  %v1241 = vunpack.c.h.b16 %v61
  %v1242 = vunpack.c.l.b16 %v62
  %v1243 = vunpack.c.l.b16 %v63
  %v1244 = vunpack.c.h.b16 %v63
  %v1245 = vunpack.c.l.b16 %v64
  %v1246 = vunpack.c.h.b16 %v64
  %v1247 = vunpack.c.l.b16 %v65
  %v1248 = vunpack.c.h.b16 %v65
  %v1249 = vunpack.c.l.b16 %v66
  %v1250 = vunpack.c.h.b16 %v66
  %v1251 = vunpack.c.l.b16 %v67
  %v1252 = vunpack.c.h.b16 %v67
  %v1253 = vunpack.c.l.b16 %v68
  %v1254 = vunpack.c.h.b16 %v68
  %v1255 = vunpack.c.l.b16 %v69
  %v1256 = vunpack.c.h.b16 %v69
  %v1257 = vunpack.c.l.b16 %v70
  %v1258 = vunpack.c.h.b16 %v70
  %v1259 = vunpack.c.l.b16 %v71
  %v1260 = vunpack.c.h.b16 %v71
  %v1261 = vunpack.c.l.b16 %v72
  %v1262 = vunpack.c.h.b16 %v72
  %v1263 = vunpack.c.l.b16 %v73
  %v1264 = vunpack.c.h.b16 %v73
  %v1265 = vunpack.c.l.b16 %v74
  %v1266 = vunpack.c.h.b16 %v74
  %v1267 = vunpack.c.l.b16 %v75
  %v1268 = vunpack.c.h.b16 %v75
  %v1269 = vunpack.c.l.b16 %v76
  %v1270 = vunpack.c.h.b16 %v76
  %v1271 = vunpack.c.l.b16 %v77
  %v1272 = vunpack.c.h.b16 %v77
  %v1273 = vunpack.c.l.b16 %v78
  %v1274 = vunpack.c.h.b16 %v78
  %v1275 = vunpack.c.l.b16 %v79
  %v1276 = vunpack.c.h.b16 %v79
  %v1277 = vunpack.c.l.b16 %v80
  %v1278 = vunpack.c.h.b16 %v80
  %v1279 = vunpack.c.l.b16 %v81
  %v1280 = vunpack.c.h.b16 %v81
  %v1281 = vunpack.c.l.b16 %v82
  %v1282 = vunpack.c.h.b16 %v82
  %v1283 = vunpack.c.l.b16 %v83
  %v1284 = vunpack.c.h.b16 %v83
  %v1285 = vunpack.c.l.b16 %v84
  %v1286 = vunpack.c.h.b16 %v84
  %v1287 = vunpack.c.l.b16 %v85
  %v1288 = vunpack.c.h.b16 %v85
  %v1289 = vunpack.c.l.b16 %v86
  %v1290 = vunpack.c.l.b16 %v87
  %v1291 = vunpack.c.h.b16 %v87
  %v1292 = vunpack.c.l.b16 %v88
  %v1293 = vunpack.c.h.b16 %v88
  %v1294 = vunpack.c.l.b16 %v89
  %v1295 = vunpack.c.h.b16 %v89
  %v1296 = vunpack.c.l.b16 %v90
  %v1297 = vunpack.c.h.b16 %v90
  %v1298 = vunpack.c.l.b16 %v91
  %v1299 = vunpack.c.h.b16 %v91
  %v1300 = vunpack.c.l.b16 %v92
  %v1301 = vunpack.c.h.b16 %v92
  %v1302 = vunpack.c.l.b16 %v93
  %v1303 = vunpack.c.h.b16 %v93
  %v1304 = vunpack.c.l.b16 %v94
  %v1305 = vunpack.c.h.b16 %v94
  %v1306 = vunpack.c.l.b16 %v95
  %v1307 = vunpack.c.h.b16 %v95
  %v1308 = vunpack.c.l.b16 %v96
  %v1309 = vunpack.c.h.b16 %v96
  %v1310 = vunpack.c.l.b16 %v97
  %v1311 = vunpack.c.h.b16 %v97
  %v1312 = vunpack.c.l.b16 %v98
  %v1313 = vunpack.c.h.b16 %v98
  %v1314 = vunpack.c.l.b16 %v99
  %v1315 = vunpack.c.h.b16 %v99
  %v1316 = vunpack.c.l.b16 %v100
  %v1317 = vunpack.c.h.b16 %v100
  %v1318 = vunpack.c.l.b16 %v101
  %v1319 = vunpack.c.h.b16 %v101
  %v1320 = vunpack.c.l.b16 %v102
  %v1321 = vunpack.c.h.b16 %v102
  %v1322 = vunpack.c.l.b16 %v103
  %v1323 = vunpack.c.h.b16 %v103
  %v1324 = vunpack.c.l.b16 %v104
  %v1325 = vunpack.c.h.b16 %v104
  %v1326 = vunpack.c.l.b16 %v105
  %v1327 = vunpack.c.h.b16 %v105
  %v1328 = vunpack.c.l.b16 %v106
  %v1329 = vunpack.c.h.b16 %v106
  %v1330 = vunpack.c.l.b16 %v107
  %v1331 = vunpack.c.h.b16 %v107
  %v1332 = vunpack.c.l.b16 %v108
  %v1333 = vunpack.c.h.b16 %v108
  %v1334 = vunpack.c.l.b16 %v109
  %v1335 = vunpack.c.h.b16 %v109
  %v1336 = vunpack.c.l.b16 %v110
  %v1337 = vunpack.c.l.b16 %v111
  %v1338 = vunpack.c.h.b16 %v111
  %v1339 = vunpack.c.l.b16 %v112
  %v1340 = vunpack.c.h.b16 %v112
  %v1341 = vunpack.c.l.b16 %v113
  %v1342 = vunpack.c.h.b16 %v113
  %v1343 = vunpack.c.l.b16 %v114
  %v1344 = vunpack.c.h.b16 %v114
  %v1345 = vunpack.c.l.b16 %v115
  %v1346 = vunpack.c.h.b16 %v115
  %v1347 = vunpack.c.l.b16 %v116
  %v1348 = vunpack.c.h.b16 %v116
  %v1349 = vunpack.c.l.b16 %v117
  %v1350 = vunpack.c.h.b16 %v117
  %v1351 = vunpack.c.l.b16 %v118
  %v1352 = vunpack.c.h.b16 %v118
  %v1353 = vunpack.c.l.b16 %v119
  %v1354 = vunpack.c.h.b16 %v119
  %v1355 = vunpack.c.l.b16 %v120
  %v1356 = vunpack.c.h.b16 %v120
  %v1357 = vunpack.c.l.b16 %v121
  %v1358 = vunpack.c.h.b16 %v121
  %v1359 = vunpack.c.l.b16 %v122
  %v1360 = vunpack.c.h.b16 %v122
  %v1361 = vunpack.c.l.b16 %v123
  %v1362 = vunpack.c.h.b16 %v123
  %v1363 = vunpack.c.l.b16 %v124
  %v1364 = vunpack.c.h.b16 %v124
  %v1365 = vunpack.c.l.b16 %v125
  %v1366 = vunpack.c.h.b16 %v125
  %v1367 = vunpack.c.l.b16 %v126
  %v1368 = vunpack.c.h.b16 %v126
  %v1369 = vunpack.c.l.b16 %v127
  %v1370 = vunpack.c.h.b16 %v127
  %v1371 = vunpack.c.l.b16 %v128
  %v1372 = vunpack.c.h.b16 %v128
  %v1373 = vunpack.c.l.b16 %v129
  %v1374 = vunpack.c.h.b16 %v129
  %v1375 = vunpack.c.l.b16 %v130
  %v1376 = vunpack.c.h.b16 %v130
  %v1377 = vunpack.c.l.b16 %v131
  %v1378 = vunpack.c.h.b16 %v131
  %v1379 = vunpack.c.l.b16 %v132
  %v1380 = vunpack.c.h.b16 %v132
  %v1381 = vunpack.c.l.b16 %v133
  %v1382 = vunpack.c.h.b16 %v133
  %v1383 = vunpack.c.l.b16 %v134
  %v1384 = vunpack.c.l.b16 %v135
  %v1385 = vunpack.c.h.b16 %v135
  %v1386 = vunpack.c.l.b16 %v136
  %v1387 = vunpack.c.h.b16 %v136
  %v1388 = vunpack.c.l.b16 %v137
  %v1389 = vunpack.c.h.b16 %v137
  %v1390 = vunpack.c.l.b16 %v138
  %v1391 = vunpack.c.h.b16 %v138
  %v1392 = vunpack.c.l.b16 %v139
  %v1393 = vunpack.c.h.b16 %v139
  %v1394 = vunpack.c.l.b16 %v140
  %v1395 = vunpack.c.h.b16 %v140
  %v1396 = vunpack.c.l.b16 %v141
  %v1397 = vunpack.c.h.b16 %v141
  %v1398 = vunpack.c.l.b16 %v142
  %v1399 = vunpack.c.h.b16 %v142
  %v1400 = vunpack.c.l.b16 %v143
  %v1401 = vunpack.c.h.b16 %v143
  %v1402 = vunpack.c.l.b16 %v144
  %v1403 = vunpack.c.h.b16 %v144
  %v1404 = vunpack.c.l.b16 %v145
  %v1405 = vunpack.c.h.b16 %v145
  %v1406 = vunpack.c.l.b16 %v146
  %v1407 = vunpack.c.h.b16 %v146
  %v1408 = vunpack.c.l.b16 %v147
  %v1409 = vunpack.c.h.b16 %v147
  %v1410 = vunpack.c.l.b16 %v148
  %v1411 = vunpack.c.h.b16 %v148
  %v1412 = vunpack.c.l.b16 %v149
  %v1413 = vunpack.c.h.b16 %v149
  %v1414 = vunpack.c.l.b16 %v150
  %v1415 = vunpack.c.h.b16 %v150
  %v1416 = vunpack.c.l.b16 %v151
  %v1417 = vunpack.c.h.b16 %v151
  %v1418 = vunpack.c.l.b16 %v152
  %v1419 = vunpack.c.h.b16 %v152
  %v1420 = vunpack.c.l.b16 %v153
  %v1421 = vunpack.c.h.b16 %v153
  %v1422 = vunpack.c.l.b16 %v154
  %v1423 = vunpack.c.h.b16 %v154
  %v1424 = vunpack.c.l.b16 %v155
  %v1425 = vunpack.c.h.b16 %v155
  %v1426 = vunpack.c.l.b16 %v156
  %v1427 = vunpack.c.h.b16 %v156
  %v1428 = vunpack.c.l.b16 %v157
  %v1429 = vunpack.c.h.b16 %v157
  %v1430 = vunpack.c.l.b16 %v158
  %v1431 = vunpack.c.l.b16 %v159
  %v1432 = vunpack.c.h.b16 %v159
  %v1433 = vunpack.c.l.b16 %v160
  %v1434 = vunpack.c.h.b16 %v160
  %v1435 = vunpack.c.l.b16 %v161
  %v1436 = vunpack.c.h.b16 %v161
  %v1437 = vunpack.c.l.b16 %v162
  %v1438 = vunpack.c.h.b16 %v162
  %v1439 = vunpack.c.l.b16 %v163
  %v1440 = vunpack.c.h.b16 %v163
  %v1441 = vunpack.c.l.b16 %v164
  %v1442 = vunpack.c.h.b16 %v164
  %v1443 = vunpack.c.l.b16 %v165
  %v1444 = vunpack.c.h.b16 %v165
  %v1445 = vunpack.c.l.b16 %v166
  %v1446 = vunpack.c.h.b16 %v166
  %v1447 = vunpack.c.l.b16 %v167
  %v1448 = vunpack.c.h.b16 %v167
  %v1449 = vunpack.c.l.b16 %v168
  %v1450 = vunpack.c.h.b16 %v168
  %v1451 = vunpack.c.l.b16 %v169
  %v1452 = vunpack.c.h.b16 %v169
  %v1453 = vunpack.c.l.b16 %v170
  %v1454 = vunpack.c.h.b16 %v170
  %v1455 = vunpack.c.l.b16 %v171
  %v1456 = vunpack.c.h.b16 %v171
  %v1457 = vunpack.c.l.b16 %v172
  %v1458 = vunpack.c.h.b16 %v172
  %v1459 = vunpack.c.l.b16 %v173
  %v1460 = vunpack.c.h.b16 %v173
  %v1461 = vunpack.c.l.b16 %v174
  %v1462 = vunpack.c.h.b16 %v174
  %v1463 = vunpack.c.l.b16 %v175
  %v1464 = vunpack.c.h.b16 %v175
  %v1465 = vunpack.c.l.b16 %v176
  %v1466 = vunpack.c.h.b16 %v176
  %v1467 = vunpack.c.l.b16 %v177
  %v1468 = vunpack.c.h.b16 %v177
  %v1469 = vunpack.c.l.b16 %v178
  %v1470 = vunpack.c.h.b16 %v178
  %v1471 = vunpack.c.l.b16 %v179
  %v1472 = vunpack.c.h.b16 %v179
  %v1473 = vunpack.c.l.b16 %v180
  %v1474 = vunpack.c.h.b16 %v180
  %v1475 = vunpack.c.l.b16 %v181
  %v1476 = vunpack.c.h.b16 %v181
  %v1477 = vunpack.c.l.b16 %v182
  %v1478 = vunpack.c.l.b16 %v183
  %v1479 = vunpack.c.h.b16 %v183
  %v1480 = vunpack.c.l.b16 %v184
  %v1481 = vunpack.c.h.b16 %v184
  %v1482 = vunpack.c.l.b16 %v185
  %v1483 = vunpack.c.h.b16 %v185
  %v1484 = vunpack.c.l.b16 %v186
  %v1485 = vunpack.c.h.b16 %v186
  %v1486 = vunpack.c.l.b16 %v187
  %v1487 = vunpack.c.h.b16 %v187
  %v1488 = vunpack.c.l.b16 %v188
  %v1489 = vunpack.c.h.b16 %v188
  %v1490 = vunpack.c.l.b16 %v189
  %v1491 = vunpack.c.h.b16 %v189
  %v1492 = vunpack.c.l.b16 %v190
  %v1493 = vunpack.c.h.b16 %v190
  %v1494 = vunpack.c.l.b16 %v191
  %v1495 = vunpack.c.h.b16 %v191
  %v1496 = vunpack.c.l.b16 %v192
  %v1497 = vunpack.c.h.b16 %v192
  %v1498 = vunpack.c.l.b16 %v193
  %v1499 = vunpack.c.h.b16 %v193
  %v1500 = vunpack.c.l.b16 %v194
  %v1501 = vunpack.c.h.b16 %v194
  %v1502 = vunpack.c.l.b16 %v195
  %v1503 = vunpack.c.h.b16 %v195
  %v1504 = vunpack.c.l.b16 %v196
  %v1505 = vunpack.c.h.b16 %v196
  %v1506 = vunpack.c.l.b16 %v197
  %v1507 = vunpack.c.h.b16 %v197
  %v1508 = vunpack.c.l.b16 %v198
  %v1509 = vunpack.c.h.b16 %v198
  %v1510 = vunpack.c.l.b16 %v199
  %v1511 = vunpack.c.h.b16 %v199
  %v1512 = vunpack.c.l.b16 %v200
  %v1513 = vunpack.c.h.b16 %v200
  %v1514 = vunpack.c.l.b16 %v201
  %v1515 = vunpack.c.h.b16 %v201
  %v1516 = vunpack.c.l.b16 %v202
  %v1517 = vunpack.c.h.b16 %v202
  %v1518 = vunpack.c.l.b16 %v203
  %v1519 = vunpack.c.h.b16 %v203
  %v1520 = vunpack.c.l.b16 %v204
  %v1521 = vunpack.c.h.b16 %v204
  %v1522 = vunpack.c.l.b16 %v205
  %v1523 = vunpack.c.h.b16 %v205
  %v1524 = vunpack.c.l.b16 %v206
  %v1525 = vpack.c.b16 %v1196, %v1149
  %v1526 = vpack.c.b16 %v1197, %v1150
  %v1527 = vpack.c.b16 %v1198, %v1151
  %v1528 = vpack.c.b16 %v1199, %v1152
  %v1529 = vpack.c.b16 %v1200, %v1153
  %v1530 = vpack.c.b16 %v1201, %v1154
  %v1531 = vpack.c.b16 %v1202, %v1155
  %v1532 = vpack.c.b16 %v1203, %v1156
  %v1533 = vpack.c.b16 %v1204, %v1157
  %v1534 = vpack.c.b16 %v1205, %v1158
  %v1535 = vpack.c.b16 %v1206, %v1159
  %v1536 = vpack.c.b16 %v1207, %v1160
  %v1537 = vpack.c.b16 %v1208, %v1161
  %v1538 = vpack.c.b16 %v1209, %v1162
  %v1539 = vpack.c.b16 %v1210, %v1163
  %v1540 = vpack.c.b16 %v1211, %v1164
  %v1541 = vpack.c.b16 %v1212, %v1165
  %v1542 = vpack.c.b16 %v1213, %v1166
  %v1543 = vpack.c.b16 %v1214, %v1167
  %v1544 = vpack.c.b16 %v1215, %v1168
  %v1545 = vpack.c.b16 %v1216, %v1169
  %v1546 = vpack.c.b16 %v1217, %v1170
  %v1547 = vpack.c.b16 %v1218, %v1171
  %v1548 = vpack.c.b16 %v1219, %v1172
  %v1549 = vpack.c.b16 %v1220, %v1173
  %v1550 = vpack.c.b16 %v1221, %v1174
  %v1551 = vpack.c.b16 %v1222, %v1175
  %v1552 = vpack.c.b16 %v1223, %v1176
  %v1553 = vpack.c.b16 %v1224, %v1177
  %v1554 = vpack.c.b16 %v1225, %v1178
  %v1555 = vpack.c.b16 %v1226, %v1179
  %v1556 = vpack.c.b16 %v1227, %v1180
  %v1557 = vpack.c.b16 %v1228, %v1181
  %v1558 = vpack.c.b16 %v1229, %v1182
  %v1559 = vpack.c.b16 %v1230, %v1183
  %v1560 = vpack.c.b16 %v1231, %v1184
  %v1561 = vpack.c.b16 %v1232, %v1185
  %v1562 = vpack.c.b16 %v1233, %v1186
  %v1563 = vpack.c.b16 %v1234, %v1187
  %v1564 = vpack.c.b16 %v1235, %v1188
  %v1565 = vpack.c.b16 %v1236, %v1189
  %v1566 = vpack.c.b16 %v1237, %v1190
  %v1567 = vpack.c.b16 %v1238, %v1191
  %v1568 = vpack.c.b16 %v1239, %v1192
  %v1569 = vpack.c.b16 %v1240, %v1193
  %v1570 = vpack.c.b16 %v1241, %v1194
  %v1571 = vpack.c.b16 %v1242, %v1195
  %v1572 = vpack.c.b16 %v1290, %v1243
  %v1573 = vpack.c.b16 %v1291, %v1244
  %v1574 = vpack.c.b16 %v1292, %v1245
  %v1575 = vpack.c.b16 %v1293, %v1246
  %v1576 = vpack.c.b16 %v1294, %v1247
  %v1577 = vpack.c.b16 %v1295, %v1248
  %v1578 = vpack.c.b16 %v1296, %v1249
  %v1579 = vpack.c.b16 %v1297, %v1250
  %v1580 = vpack.c.b16 %v1298, %v1251
  %v1581 = vpack.c.b16 %v1299, %v1252
  %v1582 = vpack.c.b16 %v1300, %v1253
  %v1583 = vpack.c.b16 %v1301, %v1254
  %v1584 = vpack.c.b16 %v1302, %v1255
  %v1585 = vpack.c.b16 %v1303, %v1256
  %v1586 = vpack.c.b16 %v1304, %v1257
  %v1587 = vpack.c.b16 %v1305, %v1258
  %v1588 = vpack.c.b16 %v1306, %v1259
  %v1589 = vpack.c.b16 %v1307, %v1260
  %v1590 = vpack.c.b16 %v1308, %v1261
  %v1591 = vpack.c.b16 %v1309, %v1262
  %v1592 = vpack.c.b16 %v1310, %v1263
  %v1593 = vpack.c.b16 %v1311, %v1264
  %v1594 = vpack.c.b16 %v1312, %v1265
  %v1595 = vpack.c.b16 %v1313, %v1266
  %v1596 = vpack.c.b16 %v1314, %v1267
  %v1597 = vpack.c.b16 %v1315, %v1268
  %v1598 = vpack.c.b16 %v1316, %v1269
  %v1599 = vpack.c.b16 %v1317, %v1270
  %v1600 = vpack.c.b16 %v1318, %v1271
  %v1601 = vpack.c.b16 %v1319, %v1272
  %v1602 = vpack.c.b16 %v1320, %v1273
  %v1603 = vpack.c.b16 %v1321, %v1274
  %v1604 = vpack.c.b16 %v1322, %v1275
  %v1605 = vpack.c.b16 %v1323, %v1276
  %v1606 = vpack.c.b16 %v1324, %v1277
  %v1607 = vpack.c.b16 %v1325, %v1278
  %v1608 = vpack.c.b16 %v1326, %v1279
  %v1609 = vpack.c.b16 %v1327, %v1280
  %v1610 = vpack.c.b16 %v1328, %v1281
  %v1611 = vpack.c.b16 %v1329, %v1282
  %v1612 = vpack.c.b16 %v1330, %v1283
  %v1613 = vpack.c.b16 %v1331, %v1284
  %v1614 = vpack.c.b16 %v1332, %v1285
  %v1615 = vpack.c.b16 %v1333, %v1286
  %v1616 = vpack.c.b16 %v1334, %v1287
  %v1617 = vpack.c.b16 %v1335, %v1288
  %v1618 = vpack.c.b16 %v1336, %v1289
  %v1619 = vpack.c.b16 %v1384, %v1337
  %v1620 = vpack.c.b16 %v1385, %v1338
  %v1621 = vpack.c.b16 %v1386, %v1339
  %v1622 = vpack.c.b16 %v1387, %v1340
  %v1623 = vpack.c.b16 %v1388, %v1341
  %v1624 = vpack.c.b16 %v1389, %v1342
  %v1625 = vpack.c.b16 %v1390, %v1343
  %v1626 = vpack.c.b16 %v1391, %v1344
  %v1627 = vpack.c.b16 %v1392, %v1345
  %v1628 = vpack.c.b16 %v1393, %v1346
  %v1629 = vpack.c.b16 %v1394, %v1347
  %v1630 = vpack.c.b16 %v1395, %v1348
  %v1631 = vpack.c.b16 %v1396, %v1349
  %v1632 = vpack.c.b16 %v1397, %v1350
  %v1633 = vpack.c.b16 %v1398, %v1351
  %v1634 = vpack.c.b16 %v1399, %v1352
  %v1635 = vpack.c.b16 %v1400, %v1353
  %v1636 = vpack.c.b16 %v1401, %v1354
  %v1637 = vpack.c.b16 %v1402, %v1355
  %v1638 = vpack.c.b16 %v1403, %v1356
  %v1639 = vpack.c.b16 %v1404, %v1357
  %v1640 = vpack.c.b16 %v1405, %v1358
  %v1641 = vpack.c.b16 %v1406, %v1359
  %v1642 = vpack.c.b16 %v1407, %v1360
  %v1643 = vpack.c.b16 %v1408, %v1361
  %v1644 = vpack.c.b16 %v1409, %v1362
  %v1645 = vpack.c.b16 %v1410, %v1363
  %v1646 = vpack.c.b16 %v1411, %v1364
  %v1647 = vpack.c.b16 %v1412, %v1365
  %v1648 = vpack.c.b16 %v1413, %v1366
  %v1649 = vpack.c.b16 %v1414, %v1367
  %v1650 = vpack.c.b16 %v1415, %v1368
  %v1651 = vpack.c.b16 %v1416, %v1369
  %v1652 = vpack.c.b16 %v1417, %v1370
  %v1653 = vpack.c.b16 %v1418, %v1371
  %v1654 = vpack.c.b16 %v1419, %v1372
  %v1655 = vpack.c.b16 %v1420, %v1373
  %v1656 = vpack.c.b16 %v1421, %v1374
  %v1657 = vpack.c.b16 %v1422, %v1375
  %v1658 = vpack.c.b16 %v1423, %v1376
  %v1659 = vpack.c.b16 %v1424, %v1377
  %v1660 = vpack.c.b16 %v1425, %v1378
  %v1661 = vpack.c.b16 %v1426, %v1379
  %v1662 = vpack.c.b16 %v1427, %v1380
  %v1663 = vpack.c.b16 %v1428, %v1381
  %v1664 = vpack.c.b16 %v1429, %v1382
  %v1665 = vpack.c.b16 %v1430, %v1383
  %v1666 = vpack.c.b16 %v1478, %v1431
  %v1667 = vpack.c.b16 %v1479, %v1432
  %v1668 = vpack.c.b16 %v1480, %v1433
  %v1669 = vpack.c.b16 %v1481, %v1434
  %v1670 = vpack.c.b16 %v1482, %v1435
  %v1671 = vpack.c.b16 %v1483, %v1436
  %v1672 = vpack.c.b16 %v1484, %v1437
  %v1673 = vpack.c.b16 %v1485, %v1438
  %v1674 = vpack.c.b16 %v1486, %v1439
  %v1675 = vpack.c.b16 %v1487, %v1440
  %v1676 = vpack.c.b16 %v1488, %v1441
  %v1677 = vpack.c.b16 %v1489, %v1442
  %v1678 = vpack.c.b16 %v1490, %v1443
  %v1679 = vpack.c.b16 %v1491, %v1444
  %v1680 = vpack.c.b16 %v1492, %v1445
  %v1681 = vpack.c.b16 %v1493, %v1446
  %v1682 = vpack.c.b16 %v1494, %v1447
  %v1683 = vpack.c.b16 %v1495, %v1448
  %v1684 = vpack.c.b16 %v1496, %v1449
  %v1685 = vpack.c.b16 %v1497, %v1450
  %v1686 = vpack.c.b16 %v1498, %v1451
  %v1687 = vpack.c.b16 %v1499, %v1452
  %v1688 = vpack.c.b16 %v1500, %v1453
  %v1689 = vpack.c.b16 %v1501, %v1454
  %v1690 = vpack.c.b16 %v1502, %v1455
  %v1691 = vpack.c.b16 %v1503, %v1456
  %v1692 = vpack.c.b16 %v1504, %v1457
  %v1693 = vpack.c.b16 %v1505, %v1458
  %v1694 = vpack.c.b16 %v1506, %v1459
  %v1695 = vpack.c.b16 %v1507, %v1460
  %v1696 = vpack.c.b16 %v1508, %v1461
  %v1697 = vpack.c.b16 %v1509, %v1462
  %v1698 = vpack.c.b16 %v1510, %v1463
  %v1699 = vpack.c.b16 %v1511, %v1464
  %v1700 = vpack.c.b16 %v1512, %v1465
  %v1701 = vpack.c.b16 %v1513, %v1466
  %v1702 = vpack.c.b16 %v1514, %v1467
  %v1703 = vpack.c.b16 %v1515, %v1468
  %v1704 = vpack.c.b16 %v1516, %v1469
  %v1705 = vpack.c.b16 %v1517, %v1470
  %v1706 = vpack.c.b16 %v1518, %v1471
  %v1707 = vpack.c.b16 %v1519, %v1472
  %v1708 = vpack.c.b16 %v1520, %v1473
  %v1709 = vpack.c.b16 %v1521, %v1474
  %v1710 = vpack.c.b16 %v1522, %v1475
  %v1711 = vpack.c.b16 %v1523, %v1476
  %v1712 = vpack.c.b16 %v1524, %v1477
  %v2640 = vunpack.c.l.b16 %v207
  %v2641 = vunpack.c.l.b16 %v208
  %v2642 = vunpack.c.l.b16 %v209
  %v2643 = vunpack.c.l.b16 %v210
  %v2644 = vunpack.c.l.b16 %v211
  %v2645 = vunpack.c.l.b16 %v212
  %v2646 = vunpack.c.l.b16 %v213
  %v2647 = vunpack.c.l.b16 %v214
  %v2648 = vunpack.c.l.b16 %v215
  %v2649 = vunpack.c.l.b16 %v216
  %v2650 = vunpack.c.l.b16 %v217
  %v2651 = vunpack.c.l.b16 %v218
  %v2652 = vunpack.c.l.b16 %v219
  %v2653 = vunpack.c.l.b16 %v220
  %v2654 = vunpack.c.l.b16 %v221
  %v2655 = vunpack.c.l.b16 %v222
  %v2656 = vunpack.c.l.b16 %v223
  %v2657 = vunpack.c.l.b16 %v224
  %v2658 = vunpack.c.l.b16 %v225
  %v2659 = vunpack.c.l.b16 %v226
  %v2660 = vunpack.c.l.b16 %v227
  %v2661 = vunpack.c.l.b16 %v228
  %v2662 = vunpack.c.l.b16 %v229
  %v2663 = vunpack.c.l.b16 %v230
  %v2664 = vunpack.c.l.b16 %v231
  %v2665 = vunpack.c.l.b16 %v232
  %v2666 = vunpack.c.l.b16 %v233
  %v2667 = vunpack.c.l.b16 %v234
  %v2668 = vunpack.c.l.b16 %v235
  %v2669 = vunpack.c.l.b16 %v236
  %v2670 = vunpack.c.l.b16 %v237
  %v2671 = vunpack.c.l.b16 %v238
  %v2672 = vunpack.c.l.b16 %v239
  %v2673 = vunpack.c.l.b16 %v240
  %v2674 = vunpack.c.l.b16 %v241
  %v2675 = vunpack.c.l.b16 %v242
  %v2676 = vunpack.c.l.b16 %v243
  %v2677 = vunpack.c.l.b16 %v244
  %v2678 = vunpack.c.l.b16 %v245
  %v2679 = vunpack.c.l.b16 %v246
  %v2680 = vunpack.c.l.b16 %v247
  %v2681 = vunpack.c.l.b16 %v248
  %v2682 = vunpack.c.l.b16 %v249
  %v2683 = vunpack.c.l.b16 %v250
  %v2684 = vunpack.c.l.b16 %v251
  %v2685 = vunpack.c.l.b16 %v252
  %v2686 = vunpack.c.l.b16 %v253
  %v2687 = vunpack.c.l.b16 %v254
  %v2688 = vunpack.c.l.b16 %v255
  %v2689 = vunpack.c.l.b16 %v256
  %v2690 = vunpack.c.l.b16 %v257
  %v2691 = vunpack.c.l.b16 %v258
  %v2692 = vunpack.c.l.b16 %v259
  %v2693 = vunpack.c.l.b16 %v260
  %v2694 = vunpack.c.l.b16 %v261
  %v2695 = vunpack.c.l.b16 %v262
  %v2696 = vunpack.c.l.b16 %v263
  %v2697 = vunpack.c.l.b16 %v264
  %v2698 = vunpack.c.l.b16 %v265
  %v2699 = vunpack.c.l.b16 %v266
  %v2700 = vunpack.c.l.b16 %v267
  %v2701 = vunpack.c.l.b16 %v268
  %v2702 = vunpack.c.l.b16 %v269
  %v2703 = vunpack.c.l.b16 %v270
  %v2704 = vunpack.c.l.b16 %v271
  %v2705 = vunpack.c.l.b16 %v272
  %v2706 = vunpack.c.l.b16 %v273
  %v2707 = vunpack.c.l.b16 %v274
  %v2708 = vunpack.c.l.b16 %v275
  %v2709 = vunpack.c.l.b16 %v276
  %v2710 = vunpack.c.l.b16 %v277
  %v2711 = vunpack.c.l.b16 %v278
  %v2712 = vunpack.c.l.b16 %v279
  %v2713 = vunpack.c.l.b16 %v280
  %v2714 = vunpack.c.l.b16 %v281
  %v2715 = vunpack.c.l.b16 %v282
  %v2716 = vunpack.c.l.b16 %v283
  %v2717 = vunpack.c.l.b16 %v284
  %v2718 = vunpack.c.l.b16 %v285
  %v2719 = vunpack.c.l.b16 %v286
  %v2720 = vunpack.c.l.b16 %v287
  %v2721 = vunpack.c.l.b16 %v288
  %v2722 = vunpack.c.l.b16 %v289
  %v2723 = vunpack.c.l.b16 %v290
  %v2724 = vunpack.c.l.b16 %v291
  %v2725 = vunpack.c.l.b16 %v292
  %v2726 = vunpack.c.l.b16 %v293
  %v2727 = vunpack.c.l.b16 %v294
  %v2728 = vunpack.c.l.b16 %v295
  %v2729 = vunpack.c.l.b16 %v296
  %v2730 = vunpack.c.l.b16 %v297
  %v2731 = vunpack.c.l.b16 %v298
  %v2732 = vunpack.c.l.b16 %v299
  %v2733 = vunpack.c.l.b16 %v300
  %v2734 = vunpack.c.l.b16 %v301
  %v2735 = vunpack.c.l.b16 %v302
  %v2736 = vunpack.c.l.b16 %v303
  %v2737 = vunpack.c.l.b16 %v304
  %v2738 = vunpack.c.l.b16 %v305
  %v2739 = vunpack.c.l.b16 %v306
  %v2740 = vunpack.c.l.b16 %v307
  %v2741 = vunpack.c.l.b16 %v308
  %v2742 = vunpack.c.l.b16 %v309
  %v2743 = vunpack.c.l.b16 %v310
  %v2744 = vunpack.c.l.b16 %v311
  %v2745 = vunpack.c.l.b16 %v312
  %v2746 = vunpack.c.l.b16 %v313
  %v2747 = vunpack.c.l.b16 %v314
  %v2748 = vunpack.c.l.b16 %v315
  %v2749 = vunpack.c.l.b16 %v316
  %v2750 = vunpack.c.l.b16 %v317
  %v2751 = vunpack.c.l.b16 %v318
  %v2752 = vunpack.c.l.b16 %v319
  %v2753 = vunpack.c.l.b16 %v320
  %v2754 = vunpack.c.l.b16 %v321
  %v2755 = vunpack.c.l.b16 %v322
  %v2756 = vunpack.c.l.b16 %v323
  %v2757 = vunpack.c.l.b16 %v324
  %v2758 = vunpack.c.l.b16 %v325
  %v2759 = vunpack.c.l.b16 %v326
  %v2760 = vunpack.c.l.b16 %v327
  %v2761 = vunpack.c.l.b16 %v328
  %v2762 = vunpack.c.l.b16 %v329
  %v2763 = vunpack.c.l.b16 %v330
  %v2764 = vunpack.c.l.b16 %v331
  %v2765 = vunpack.c.l.b16 %v332
  %v2766 = vunpack.c.l.b16 %v333
  %v2767 = vunpack.c.l.b16 %v334
  %v2768 = vunpack.c.l.b16 %v335
  %v2769 = vunpack.c.l.b16 %v336
  %v2770 = vunpack.c.l.b16 %v337
  %v2771 = vunpack.c.l.b16 %v338
  %v2772 = vunpack.c.l.b16 %v339
  %v2773 = vunpack.c.l.b16 %v340
  %v2774 = vunpack.c.l.b16 %v341
  %v2775 = vunpack.c.l.b16 %v342
  %v2776 = vunpack.c.l.b16 %v343
  %v2777 = vunpack.c.l.b16 %v344
  %v2778 = vunpack.c.l.b16 %v345
  %v2779 = vunpack.c.l.b16 %v346
  %v2780 = vunpack.c.l.b16 %v347
  %v2781 = vunpack.c.l.b16 %v348
  %v2782 = vunpack.c.l.b16 %v349
  %v2783 = vunpack.c.l.b16 %v350
  %v2784 = vunpack.c.l.b16 %v351
  %v2785 = vunpack.c.l.b16 %v352
  %v2786 = vunpack.c.l.b16 %v353
  %v2787 = vunpack.c.l.b16 %v354
  %v2788 = vunpack.c.l.b16 %v355
  %v2789 = vunpack.c.l.b16 %v356
  %v2790 = vunpack.c.l.b16 %v357
  %v2791 = vunpack.c.l.b16 %v358
  %v2792 = vunpack.c.l.b16 %v359
  %v2793 = vunpack.c.l.b16 %v360
  %v2794 = vunpack.c.l.b16 %v361
  %v2795 = vunpack.c.l.b16 %v362
  %v2796 = vunpack.c.l.b16 %v363
  %v2797 = vunpack.c.l.b16 %v364
  %v2798 = vunpack.c.l.b16 %v365
  %v2799 = vunpack.c.l.b16 %v366
  %v2800 = vunpack.c.l.b16 %v367
  %v2801 = vunpack.c.l.b16 %v368
  %v2802 = vunpack.c.l.b16 %v369
  %v2803 = vunpack.c.l.b16 %v370
  %v2804 = vunpack.c.l.b16 %v371
  %v2805 = vunpack.c.l.b16 %v372
  %v2806 = vunpack.c.l.b16 %v373
  %v2807 = vunpack.c.l.b16 %v374
  %v2808 = vunpack.c.l.b16 %v375
  %v2809 = vunpack.c.l.b16 %v376
  %v2810 = vunpack.c.l.b16 %v377
  %v2811 = vunpack.c.l.b16 %v378
  %v2812 = vunpack.c.l.b16 %v379
  %v2813 = vunpack.c.l.b16 %v380
  %v2814 = vunpack.c.l.b16 %v381
  %v2815 = vunpack.c.l.b16 %v382
  %v2816 = vunpack.c.l.b16 %v383
  %v2817 = vunpack.c.l.b16 %v384
  %v2818 = vunpack.c.l.b16 %v385
  %v2819 = vunpack.c.l.b16 %v386
  %v2820 = vunpack.c.l.b16 %v387
  %v2821 = vunpack.c.l.b16 %v388
  %v2822 = vunpack.c.l.b16 %v389
  %v2823 = vunpack.c.l.b16 %v390
  %v2824 = vunpack.c.l.b16 %v391
  %v2825 = vunpack.c.l.b16 %v392
  %v2826 = vunpack.c.l.b16 %v393
  %v2827 = vunpack.c.l.b16 %v394
  %v2828 = vunpack.c.l.b16 %v395
  %v2829 = vunpack.c.l.b16 %v396
  %v2830 = vunpack.c.l.b16 %v397
  %v2831 = vunpack.c.l.b16 %v398
  %v2832 = vunpack.c.l.b16 %v399
  %v2833 = vunpack.c.l.b16 %v400
  %v2834 = vunpack.c.l.b16 %v401
  %v2835 = vunpack.c.l.b16 %v402
  %v2836 = vunpack.c.l.b16 %v403
  %v2837 = vunpack.c.l.b16 %v404
  %v2838 = vunpack.c.l.b16 %v405
  %v2839 = vunpack.c.l.b16 %v406
  %v2840 = vunpack.c.l.b16 %v407
  %v2841 = vunpack.c.l.b16 %v408
  %v2842 = vunpack.c.l.b16 %v409
  %v2843 = vunpack.c.l.b16 %v410
  %v2844 = vunpack.c.l.b16 %v411
  %v2845 = vunpack.c.l.b16 %v412
  %v2846 = vunpack.c.l.b16 %v413
  %v2847 = vunpack.c.l.b16 %v414
  %v2848 = vunpack.c.l.b16 %v415
  %v2849 = vunpack.c.l.b16 %v416
  %v2850 = vunpack.c.l.b16 %v417
  %v2851 = vunpack.c.l.b16 %v418
  %v2852 = vunpack.c.l.b16 %v419
  %v2853 = vunpack.c.l.b16 %v420
  %v2854 = vunpack.c.l.b16 %v421
  %v2855 = vunpack.c.l.b16 %v422
  %v2856 = vunpack.c.l.b16 %v423
  %v2857 = vunpack.c.l.b16 %v424
  %v2858 = vunpack.c.l.b16 %v425
  %v2859 = vunpack.c.l.b16 %v426
  %v2860 = vunpack.c.l.b16 %v427
  %v2861 = vunpack.c.l.b16 %v428
  %v2862 = vunpack.c.l.b16 %v429
  %v2863 = vunpack.c.l.b16 %v430
  %v2864 = vunpack.c.l.b16 %v431
  %v2865 = vunpack.c.l.b16 %v432
  %v2866 = vunpack.c.l.b16 %v433
  %v2867 = vunpack.c.l.b16 %v434
  %v2868 = vunpack.c.l.b16 %v435
  %v2869 = vunpack.c.l.b16 %v436
  %v2870 = vunpack.c.l.b16 %v437
  %v2871 = vunpack.c.l.b16 %v438
  %v2872 = vunpack.c.l.b16 %v439
  %v2873 = vunpack.c.l.b16 %v440
  %v2874 = vunpack.c.l.b16 %v441
  %v2875 = vunpack.c.l.b16 %v442
  %v2876 = vunpack.c.l.b16 %v443
  %v2877 = vunpack.c.l.b16 %v444
  %v2878 = vunpack.c.l.b16 %v445
  %v2879 = vunpack.c.l.b16 %v446
  %v2880 = vunpack.c.l.b16 %v447
  %v2881 = vunpack.c.l.b16 %v448
  %v2882 = vunpack.c.l.b16 %v449
  %v2883 = vunpack.c.l.b16 %v450
  %v2884 = vunpack.c.l.b16 %v451
  %v2885 = vunpack.c.l.b16 %v452
  %v2886 = vunpack.c.l.b16 %v453
  %v2887 = vunpack.c.l.b16 %v454
  %v2888 = vunpack.c.l.b16 %v455
  %v2889 = vunpack.c.l.b16 %v456
  %v2890 = vunpack.c.l.b16 %v457
  %v2891 = vunpack.c.l.b16 %v458
  %v2892 = vunpack.c.l.b16 %v459
  %v2893 = vunpack.c.l.b16 %v460
  %v2894 = vunpack.c.l.b16 %v461
  %v2895 = vunpack.c.l.b16 %v462
  %v2896 = vunpack.c.l.b16 %v463
  %v2897 = vunpack.c.l.b16 %v464
  %v2898 = vunpack.c.l.b16 %v465
  %v2899 = vunpack.c.l.b16 %v466
  %v2900 = vunpack.c.l.b16 %v467
  %v2901 = vunpack.c.l.b16 %v468
  %v2902 = vunpack.c.l.b16 %v469
  %v2903 = vunpack.c.l.b16 %v470
  %v2904 = vunpack.c.l.b16 %v471
  %v2905 = vunpack.c.l.b16 %v472
  %v2906 = vunpack.c.l.b16 %v473
  %v2907 = vunpack.c.l.b16 %v474
  %v2908 = vunpack.c.l.b16 %v475
  %v2909 = vunpack.c.l.b16 %v476
  %v2910 = vunpack.c.l.b16 %v477
  %v2911 = vunpack.c.l.b16 %v478
  %v2912 = vunpack.c.l.b16 %v479
  %v2913 = vunpack.c.l.b16 %v480
  %v2914 = vunpack.c.l.b16 %v481
  %v2915 = vunpack.c.l.b16 %v482
  %v2916 = vunpack.c.l.b16 %v483
  %v2917 = vunpack.c.l.b16 %v484
  %v2918 = vunpack.c.l.b16 %v485
  %v2919 = vunpack.c.l.b16 %v486
  %v2920 = vunpack.c.l.b16 %v487
  %v2921 = vunpack.c.l.b16 %v488
  %v2922 = vunpack.c.l.b16 %v489
  %v2923 = vunpack.c.l.b16 %v490
  %v2924 = vunpack.c.l.b16 %v491
  %v2925 = vunpack.c.l.b16 %v492
  %v2926 = vunpack.c.l.b16 %v493
  %v2927 = vunpack.c.l.b16 %v494
  %v2928 = vunpack.c.l.b16 %v495
  %v2929 = vunpack.c.l.b16 %v496
  %v2930 = vunpack.c.l.b16 %v497
  %v2931 = vunpack.c.l.b16 %v498
  %v2932 = vunpack.c.l.b16 %v499
  %v2933 = vunpack.c.l.b16 %v500
  %v2934 = vunpack.c.l.b16 %v501
  %v2935 = vunpack.c.l.b16 %v502
  %v2936 = vunpack.c.l.b16 %v503
  %v2937 = vunpack.c.l.b16 %v504
  %v2938 = vunpack.c.l.b16 %v505
  %v2939 = vunpack.c.l.b16 %v506
  %v2940 = vunpack.c.l.b16 %v507
  %v2941 = vunpack.c.l.b16 %v508
  %v2942 = vunpack.c.l.b16 %v509
  %v2943 = vunpack.c.l.b16 %v510
  %v2944 = vunpack.c.l.b16 %v511
  %v2945 = vunpack.c.l.b16 %v512
  %v2946 = vunpack.c.l.b16 %v513
  %v2947 = vunpack.c.l.b16 %v514
  %v2948 = vunpack.c.l.b16 %v515
  %v2949 = vunpack.c.l.b16 %v516
  %v2950 = vunpack.c.l.b16 %v517
  %v2951 = vunpack.c.l.b16 %v518
  %v2952 = vunpack.c.l.b16 %v519
  %v2953 = vunpack.c.l.b16 %v520
  %v2954 = vunpack.c.l.b16 %v521
  %v2955 = vunpack.c.l.b16 %v522
  %v2956 = vunpack.c.l.b16 %v523
  %v2957 = vunpack.c.l.b16 %v524
  %v2958 = vunpack.c.l.b16 %v525
  %v2959 = vunpack.c.l.b16 %v526
  %v2960 = vunpack.c.l.b16 %v527
  %v2961 = vunpack.c.l.b16 %v528
  %v2962 = vunpack.c.l.b16 %v529
  %v2963 = vunpack.c.l.b16 %v530
  %v2964 = vunpack.c.l.b16 %v531
  %v2965 = vunpack.c.l.b16 %v532
  %v2966 = vunpack.c.l.b16 %v533
  %v2967 = vunpack.c.l.b16 %v534
  %v2968 = vunpack.c.l.b16 %v535
  %v2969 = vunpack.c.l.b16 %v536
  %v2970 = vunpack.c.l.b16 %v537
  %v2971 = vunpack.c.l.b16 %v538
  %v2972 = vunpack.c.l.b16 %v539
  %v2973 = vunpack.c.l.b16 %v540
  %v2974 = vunpack.c.l.b16 %v541
  %v2975 = vunpack.c.l.b16 %v542
  %v2976 = vunpack.c.l.b16 %v543
  %v2977 = vunpack.c.l.b16 %v544
  %v2978 = vunpack.c.l.b16 %v545
  %v2979 = vunpack.c.l.b16 %v546
  %v2980 = vunpack.c.l.b16 %v547
  %v2981 = vunpack.c.l.b16 %v548
  %v2982 = vunpack.c.l.b16 %v549
  %v2983 = vunpack.c.l.b16 %v550
  %v2984 = vunpack.c.l.b16 %v551
  %v2985 = vunpack.c.l.b16 %v552
  %v2986 = vunpack.c.l.b16 %v553
  %v2987 = vunpack.c.l.b16 %v554
  %v2988 = vunpack.c.l.b16 %v555
  %v2989 = vunpack.c.l.b16 %v556
  %v2990 = vunpack.c.l.b16 %v557
  %v2991 = vunpack.c.l.b16 %v558
  %v2992 = vunpack.c.l.b16 %v559
  %v2993 = vunpack.c.l.b16 %v560
  %v2994 = vunpack.c.l.b16 %v561
  %v2995 = vunpack.c.l.b16 %v562
  %v2996 = vunpack.c.l.b16 %v563
  %v2997 = vunpack.c.l.b16 %v564
  %v2998 = vunpack.c.l.b16 %v565
  %v2999 = vunpack.c.l.b16 %v566
  %v3000 = vunpack.c.l.b16 %v567
  %v3001 = vunpack.c.l.b16 %v568
  %v3002 = vunpack.c.l.b16 %v569
  %v3003 = vunpack.c.l.b16 %v570
  %v3004 = vunpack.c.l.b16 %v571
  %v3005 = vunpack.c.l.b16 %v572
  %v3006 = vunpack.c.l.b16 %v573
  %v3007 = vunpack.c.l.b16 %v574
  %v3008 = vunpack.c.l.b16 %v575
  %v3009 = vunpack.c.l.b16 %v576
  %v3010 = vunpack.c.l.b16 %v577
  %v3011 = vunpack.c.l.b16 %v578
  %v3012 = vunpack.c.l.b16 %v579
  %v3013 = vunpack.c.l.b16 %v580
  %v3014 = vunpack.c.l.b16 %v581
  %v3015 = vunpack.c.l.b16 %v582
  %v3016 = vunpack.c.l.b16 %v583
  %v3017 = vunpack.c.l.b16 %v584
  %v3018 = vunpack.c.l.b16 %v585
  %v3019 = vunpack.c.l.b16 %v586
  %v3020 = vunpack.c.l.b16 %v587
  %v3021 = vunpack.c.l.b16 %v588
  %v3022 = vunpack.c.l.b16 %v589
  %v3023 = vunpack.c.l.b16 %v590
  %v3024 = vunpack.c.l.b16 %v591
  %v3025 = vunpack.c.l.b16 %v592
  %v3026 = vunpack.c.l.b16 %v593
  %v3027 = vunpack.c.l.b16 %v594
  %v3028 = vunpack.c.l.b16 %v595
  %v3029 = vunpack.c.l.b16 %v596
  %v3030 = vunpack.c.l.b16 %v597
  %v3031 = vunpack.c.l.b16 %v598
  %v3032 = vunpack.c.l.b16 %v599
  %v3033 = vunpack.c.l.b16 %v600
  %v3034 = vunpack.c.l.b16 %v601
  %v3035 = vunpack.c.l.b16 %v602
  %v3036 = vunpack.c.l.b16 %v603
  %v3037 = vunpack.c.l.b16 %v604
  %v3038 = vunpack.c.l.b16 %v605
  %v3039 = vunpack.c.l.b16 %v606
  %v3040 = vunpack.c.l.b16 %v607
  %v3041 = vunpack.c.l.b16 %v608
  %v3042 = vunpack.c.l.b16 %v609
  %v3043 = vunpack.c.l.b16 %v610
  %v3044 = vunpack.c.l.b16 %v611
  %v3045 = vunpack.c.l.b16 %v612
  %v3046 = vunpack.c.l.b16 %v613
  %v3047 = vunpack.c.l.b16 %v614
  %v3048 = vunpack.c.l.b16 %v615
  %v3049 = vunpack.c.l.b16 %v616
  %v3050 = vunpack.c.l.b16 %v617
  %v3051 = vunpack.c.l.b16 %v618
  %v3052 = vunpack.c.l.b16 %v619
  %v3053 = vunpack.c.l.b16 %v620
  %v3054 = vunpack.c.l.b16 %v621
  %v3055 = vunpack.c.l.b16 %v622
  %v3056 = vunpack.c.l.b16 %v623
  %v3057 = vunpack.c.l.b16 %v624
  %v3058 = vunpack.c.l.b16 %v625
  %v3059 = vunpack.c.l.b16 %v626
  %v3060 = vunpack.c.l.b16 %v627
  %v3061 = vunpack.c.l.b16 %v628
  %v3062 = vunpack.c.l.b16 %v629
  %v3063 = vunpack.c.l.b16 %v630
  %v3064 = vunpack.c.l.b16 %v631
  %v3065 = vunpack.c.l.b16 %v632
  %v3066 = vunpack.c.l.b16 %v633
  %v3067 = vunpack.c.l.b16 %v634
  %v3068 = vunpack.c.l.b16 %v635
  %v3069 = vunpack.c.l.b16 %v636
  %v3070 = vunpack.c.l.b16 %v637
  %v3071 = vunpack.c.l.b16 %v638
  %v3072 = vunpack.c.l.b16 %v639
  %v3073 = vunpack.c.l.b16 %v640
  %v3074 = vunpack.c.l.b16 %v641
  %v3075 = vunpack.c.l.b16 %v642
  %v3076 = vunpack.c.l.b16 %v643
  %v3077 = vunpack.c.l.b16 %v644
  %v3078 = vunpack.c.l.b16 %v645
  %v3079 = vunpack.c.l.b16 %v646
  %v3080 = vunpack.c.l.b16 %v647
  %v3081 = vunpack.c.l.b16 %v648
  %v3082 = vunpack.c.l.b16 %v649
  %v3083 = vunpack.c.l.b16 %v650
  %v3084 = vunpack.c.l.b16 %v651
  %v3085 = vunpack.c.l.b16 %v652
  %v3086 = vunpack.c.l.b16 %v653
  %v3087 = vunpack.c.l.b16 %v654
  %v3088 = vunpack.c.l.b16 %v655
  %v3089 = vunpack.c.l.b16 %v656
  %v3090 = vunpack.c.l.b16 %v657
  %v3091 = vunpack.c.l.b16 %v658
  %v3092 = vunpack.c.l.b16 %v659
  %v3093 = vunpack.c.l.b16 %v660
  %v3094 = vunpack.c.l.b16 %v661
  %v3095 = vunpack.c.l.b16 %v662
  %v3096 = vunpack.c.l.b16 %v663
  %v3097 = vunpack.c.l.b16 %v664
  %v3098 = vunpack.c.l.b16 %v665
  %v3099 = vunpack.c.l.b16 %v666
  %v3100 = vunpack.c.l.b16 %v667
  %v3101 = vunpack.c.l.b16 %v668
  %v3102 = vunpack.c.l.b16 %v669
  %v3103 = vunpack.c.l.b16 %v670
  %v3104 = vunpack.c.l.b16 %v671
  %v3105 = vunpack.c.l.b16 %v672
  %v3106 = vunpack.c.l.b16 %v673
  %v3107 = vunpack.c.l.b16 %v674
  %v3108 = vunpack.c.l.b16 %v675
  %v3109 = vunpack.c.l.b16 %v676
  %v3110 = vunpack.c.l.b16 %v677
  %v3111 = vunpack.c.l.b16 %v678
  %v3112 = vunpack.c.l.b16 %v679
  %v3113 = vunpack.c.l.b16 %v680
  %v3114 = vunpack.c.l.b16 %v681
  %v3115 = vunpack.c.l.b16 %v682
  %v3116 = vunpack.c.l.b16 %v683
  %v3117 = vunpack.c.l.b16 %v684
  %v3118 = vunpack.c.l.b16 %v685
  %v3119 = vunpack.c.l.b16 %v686
  %v3120 = vunpack.c.l.b16 %v687
  %v3121 = vunpack.c.l.b16 %v688
  %v3122 = vunpack.c.l.b16 %v689
  %v3123 = vunpack.c.l.b16 %v690
  %v3124 = vunpack.c.l.b16 %v691
  %v3125 = vunpack.c.l.b16 %v692
  %v3126 = vunpack.c.l.b16 %v693
  %v3127 = vunpack.c.l.b16 %v694
  %v3128 = vunpack.c.l.b16 %v695
  %v3129 = vunpack.c.l.b16 %v696
  %v3130 = vunpack.c.l.b16 %v697
  %v3131 = vunpack.c.l.b16 %v698
  %v3132 = vunpack.c.l.b16 %v699
  %v3133 = vunpack.c.l.b16 %v700
  %v3134 = vunpack.c.l.b16 %v701
  %v3135 = vunpack.c.l.b16 %v702
  %v3136 = vunpack.c.l.b16 %v703
  %v3137 = vunpack.c.l.b16 %v704
  %v3138 = vunpack.c.l.b16 %v705
  %v3139 = vunpack.c.l.b16 %v706
  %v3140 = vunpack.c.l.b16 %v707
  %v3141 = vunpack.c.l.b16 %v708
  %v3142 = vunpack.c.l.b16 %v709
  %v3143 = vunpack.c.l.b16 %v710
  %v3144 = vunpack.c.l.b16 %v711
  %v3145 = vunpack.c.l.b16 %v712
  %v3146 = vunpack.c.l.b16 %v713
  %v3147 = vunpack.c.l.b16 %v714
  %v3148 = vunpack.c.l.b16 %v715
  %v3149 = vunpack.c.l.b16 %v716
  %v3150 = vunpack.c.l.b16 %v717
  %v3151 = vunpack.c.l.b16 %v718
  %v3152 = vunpack.c.l.b16 %v719
  %v3153 = vunpack.c.l.b16 %v720
  %v3154 = vunpack.c.l.b16 %v721
  %v3155 = vunpack.c.l.b16 %v722
  %v3156 = vunpack.c.l.b16 %v723
  %v3157 = vunpack.c.l.b16 %v724
  %v3158 = vunpack.c.l.b16 %v725
  %v3159 = vunpack.c.l.b16 %v726
  %v3160 = vunpack.c.l.b16 %v727
  %v3161 = vunpack.c.l.b16 %v728
  %v3162 = vunpack.c.l.b16 %v729
  %v3163 = vunpack.c.l.b16 %v730
  %v3164 = vunpack.c.l.b16 %v731
  %v3165 = vunpack.c.l.b16 %v732
  %v3166 = vunpack.c.l.b16 %v733
  %v3167 = vunpack.c.l.b16 %v734
  %v3168 = vunpack.c.l.b16 %v735
  %v3169 = vunpack.c.l.b16 %v736
  %v3170 = vunpack.c.l.b16 %v737
  %v3171 = vunpack.c.l.b16 %v738
  %v3172 = vunpack.c.l.b16 %v739
  %v3173 = vunpack.c.l.b16 %v740
  %v3174 = vunpack.c.l.b16 %v741
  %v3175 = vunpack.c.l.b16 %v742
  %v3176 = vunpack.c.l.b16 %v743
  %v3177 = vunpack.c.l.b16 %v744
  %v3178 = vunpack.c.l.b16 %v745
  %v3179 = vunpack.c.l.b16 %v746
  %v3180 = vunpack.c.l.b16 %v747
  %v3181 = vunpack.c.l.b16 %v748
  %v3182 = vunpack.c.l.b16 %v749
  %v3183 = vunpack.c.l.b16 %v750
  %v3184 = vunpack.c.l.b16 %v751
  %v3185 = vunpack.c.l.b16 %v752
  %v3186 = vunpack.c.l.b16 %v753
  %v3187 = vunpack.c.l.b16 %v754
  %v3188 = vunpack.c.l.b16 %v755
  %v3189 = vunpack.c.l.b16 %v756
  %v3190 = vunpack.c.l.b16 %v757
  %v3191 = vunpack.c.l.b16 %v758
  %v3192 = vunpack.c.l.b16 %v759
  %v3193 = vunpack.c.l.b16 %v760
  %v3194 = vunpack.c.l.b16 %v761
  %v3195 = vunpack.c.l.b16 %v762
  %v3196 = vunpack.c.l.b16 %v763
  %v3197 = vunpack.c.l.b16 %v764
  %v3198 = vunpack.c.l.b16 %v765
  %v3199 = vunpack.c.l.b16 %v766
  %v3200 = vunpack.c.l.b16 %v767
  %v3201 = vunpack.c.l.b16 %v768
  %v3202 = vunpack.c.l.b16 %v769
  %v3203 = vunpack.c.l.b16 %v770
  %v3204 = vunpack.c.l.b16 %v771
  %v3205 = vunpack.c.l.b16 %v772
  %v3206 = vunpack.c.l.b16 %v773
  %v3207 = vunpack.c.l.b16 %v774
  %v3208 = vunpack.c.l.b16 %v775
  %v3209 = vunpack.c.l.b16 %v776
  %v3210 = vunpack.c.l.b16 %v777
  %v3211 = vunpack.c.l.b16 %v778
  %v3212 = vunpack.c.l.b16 %v779
  %v3213 = vunpack.c.l.b16 %v780
  %v3214 = vunpack.c.l.b16 %v781
  %v3215 = vunpack.c.l.b16 %v782
  %v3216 = vunpack.c.l.b16 %v783
  %v3217 = vunpack.c.l.b16 %v784
  %v3218 = vunpack.c.l.b16 %v785
  %v3219 = vunpack.c.l.b16 %v786
  %v3220 = vunpack.c.l.b16 %v787
  %v3221 = vunpack.c.l.b16 %v788
  %v3222 = vunpack.c.l.b16 %v789
  %v3223 = vunpack.c.l.b16 %v790
  %v3224 = vunpack.c.l.b16 %v791
  %v3225 = vunpack.c.l.b16 %v792
  %v3226 = vunpack.c.l.b16 %v793
  %v3227 = vunpack.c.l.b16 %v794
  %v3228 = vunpack.c.l.b16 %v795
  %v3229 = vunpack.c.l.b16 %v796
  %v3230 = vunpack.c.l.b16 %v797
  %v3231 = vunpack.c.l.b16 %v798
  %v3232 = vunpack.c.l.b16 %v799
  %v3233 = vunpack.c.l.b16 %v800
  %v3234 = vunpack.c.l.b16 %v801
  %v3235 = vunpack.c.l.b16 %v802
  %v3236 = vunpack.c.l.b16 %v803
  %v3237 = vunpack.c.l.b16 %v804
  %v3238 = vunpack.c.l.b16 %v805
  %v3239 = vunpack.c.l.b16 %v806
  %v3240 = vunpack.c.l.b16 %v807
  %v3241 = vunpack.c.l.b16 %v808
  %v3242 = vunpack.c.l.b16 %v809
  %v3243 = vunpack.c.l.b16 %v810
  %v3244 = vunpack.c.l.b16 %v811
  %v3245 = vunpack.c.l.b16 %v812
  %v3246 = vunpack.c.l.b16 %v813
  %v3247 = vunpack.c.l.b16 %v814
  %v3248 = vunpack.c.l.b16 %v815
  %v3249 = vunpack.c.l.b16 %v816
  %v3250 = vunpack.c.l.b16 %v817
  %v3251 = vunpack.c.l.b16 %v818
  %v3252 = vunpack.c.l.b16 %v819
  %v3253 = vunpack.c.l.b16 %v820
  %v3254 = vunpack.c.l.b16 %v821
  %v3255 = vunpack.c.l.b16 %v822
  %v3256 = vunpack.c.l.b16 %v823
  %v3257 = vunpack.c.l.b16 %v824
  %v3258 = vunpack.c.l.b16 %v825
  %v3259 = vunpack.c.l.b16 %v826
  %v3260 = vunpack.c.l.b16 %v827
  %v3261 = vunpack.c.l.b16 %v828
  %v3262 = vunpack.c.l.b16 %v829
  %v3263 = vunpack.c.l.b16 %v830
  %v3264 = vunpack.c.l.b16 %v831
  %v3265 = vunpack.c.l.b16 %v832
  %v3266 = vunpack.c.l.b16 %v833
  %v3267 = vunpack.c.l.b16 %v834
  %v3268 = vunpack.c.l.b16 %v835
  %v3269 = vunpack.c.l.b16 %v836
  %v3270 = vunpack.c.l.b16 %v837
  %v3271 = vunpack.c.l.b16 %v838
  %v3272 = vunpack.c.l.b16 %v839
  %v3273 = vunpack.c.l.b16 %v840
  %v3274 = vunpack.c.l.b16 %v841
  %v3275 = vunpack.c.l.b16 %v842
  %v3276 = vunpack.c.l.b16 %v843
  %v3277 = vunpack.c.l.b16 %v844
  %v3278 = vunpack.c.l.b16 %v845
  %v3279 = vunpack.c.l.b16 %v846
  %v3280 = vunpack.c.l.b16 %v847
  %v3281 = vunpack.c.l.b16 %v848
  %v3282 = vunpack.c.l.b16 %v849
  %v3283 = vunpack.c.l.b16 %v850
  %v3284 = vunpack.c.l.b16 %v851
  %v3285 = vunpack.c.l.b16 %v852
  %v3286 = vunpack.c.l.b16 %v853
  %v3287 = vunpack.c.l.b16 %v854
  %v3288 = vunpack.c.l.b16 %v855
  %v3289 = vunpack.c.l.b16 %v856
  %v3290 = vunpack.c.l.b16 %v857
  %v3291 = vunpack.c.l.b16 %v858
  %v3292 = vunpack.c.l.b16 %v859
  %v3293 = vunpack.c.l.b16 %v860
  %v3294 = vunpack.c.l.b16 %v861
  %v3295 = vunpack.c.l.b16 %v862
  %v3296 = vunpack.c.l.b16 %v863
  %v3297 = vunpack.c.l.b16 %v864
  %v3298 = vunpack.c.l.b16 %v865
  %v3299 = vunpack.c.l.b16 %v866
  %v3300 = vunpack.c.l.b16 %v867
  %v3301 = vunpack.c.l.b16 %v868
  %v3302 = vunpack.c.l.b16 %v869
  %v3303 = vunpack.c.l.b16 %v870
  %v3304 = vunpack.c.l.b16 %v871
  %v3305 = vunpack.c.l.b16 %v872
  %v3306 = vunpack.c.l.b16 %v873
  %v3307 = vunpack.c.l.b16 %v874
  %v3308 = vunpack.c.l.b16 %v875
  %v3309 = vunpack.c.l.b16 %v876
  %v3310 = vunpack.c.l.b16 %v877
  %v3311 = vunpack.c.l.b16 %v878
  %v3312 = vunpack.c.l.b16 %v879
  %v3313 = vunpack.c.l.b16 %v880
  %v3314 = vunpack.c.l.b16 %v881
  %v3315 = vunpack.c.l.b16 %v882
  %v3316 = vunpack.c.l.b16 %v883
  %v3317 = vunpack.c.l.b16 %v884
  %v3318 = vunpack.c.l.b16 %v885
  %v3319 = vunpack.c.l.b16 %v886
  %v3320 = vunpack.c.l.b16 %v887
  %v3321 = vunpack.c.l.b16 %v888
  %v3322 = vunpack.c.l.b16 %v889
  %v3323 = vunpack.c.l.b16 %v890
  %v3324 = vunpack.c.l.b16 %v891
  %v3325 = vunpack.c.l.b16 %v892
  %v3326 = vunpack.c.l.b16 %v893
  %v3327 = vunpack.c.l.b16 %v894
  %v3328 = vunpack.c.l.b16 %v895
  %v3329 = vunpack.c.l.b16 %v896
  %v3330 = vunpack.c.l.b16 %v897
  %v3331 = vunpack.c.l.b16 %v898
  %v3332 = vunpack.c.l.b16 %v899
  %v3333 = vunpack.c.l.b16 %v900
  %v3334 = vunpack.c.l.b16 %v901
  %v3335 = vunpack.c.l.b16 %v902
  %v3336 = vunpack.c.l.b16 %v903
  %v3337 = vunpack.c.l.b16 %v904
  %v3338 = vunpack.c.l.b16 %v905
  %v3339 = vunpack.c.l.b16 %v906
  %v3340 = vunpack.c.l.b16 %v907
  %v3341 = vunpack.c.l.b16 %v908
  %v3342 = vunpack.c.l.b16 %v909
  %v3343 = vunpack.c.l.b16 %v910
  %v3344 = vunpack.c.l.b16 %v911
  %v3345 = vunpack.c.l.b16 %v912
  %v3346 = vunpack.c.l.b16 %v913
  %v3347 = vunpack.c.l.b16 %v914
  %v3348 = vunpack.c.l.b16 %v915
  %v3349 = vunpack.c.l.b16 %v916
  %v3350 = vunpack.c.l.b16 %v917
  %v3351 = vunpack.c.l.b16 %v918
  %v3352 = vunpack.c.l.b16 %v919
  %v3353 = vunpack.c.l.b16 %v920
  %v3354 = vunpack.c.l.b16 %v921
  %v3355 = vunpack.c.l.b16 %v922
  %v3356 = vunpack.c.l.b16 %v923
  %v3357 = vunpack.c.l.b16 %v924
  %v3358 = vunpack.c.l.b16 %v925
  %v3359 = vunpack.c.l.b16 %v926
  %v3360 = vunpack.c.l.b16 %v927
  %v3361 = vunpack.c.l.b16 %v928
  %v3362 = vunpack.c.l.b16 %v929
  %v3363 = vunpack.c.l.b16 %v930
  %v3364 = vunpack.c.l.b16 %v931
  %v3365 = vunpack.c.l.b16 %v932
  %v3366 = vunpack.c.l.b16 %v933
  %v3367 = vunpack.c.l.b16 %v934
  %v3368 = vunpack.c.l.b16 %v935
  %v3369 = vunpack.c.l.b16 %v936
  %v3370 = vunpack.c.l.b16 %v937
  %v3371 = vunpack.c.l.b16 %v938
  %v3372 = vunpack.c.l.b16 %v939
  %v3373 = vunpack.c.l.b16 %v940
  %v3374 = vunpack.c.l.b16 %v941
  %v3375 = vunpack.c.l.b16 %v942
  %v3376 = vunpack.c.l.b16 %v943
  %v3377 = vunpack.c.l.b16 %v944
  %v3378 = vunpack.c.l.b16 %v945
  %v3379 = vunpack.c.l.b16 %v946
  %v3380 = vunpack.c.l.b16 %v947
  %v3381 = vunpack.c.l.b16 %v948
  %v3382 = vunpack.c.l.b16 %v949
  %v3383 = vpack.c.b16 %v2641, %v2640
  %v3384 = vpack.c.b16 %v2643, %v2642
  %v3385 = vpack.c.b16 %v2645, %v2644
  %v3386 = vpack.c.b16 %v2647, %v2646
  %v3387 = vpack.c.b16 %v2649, %v2648
  %v3388 = vpack.c.b16 %v2651, %v2650
  %v3389 = vpack.c.b16 %v2653, %v2652
  %v3390 = vpack.c.b16 %v2655, %v2654
  %v3391 = vpack.c.b16 %v2657, %v2656
  %v3392 = vpack.c.b16 %v2659, %v2658
  %v3393 = vpack.c.b16 %v2661, %v2660
  %v3394 = vpack.c.b16 %v2663, %v2662
  %v3395 = vpack.c.b16 %v2665, %v2664
  %v3396 = vpack.c.b16 %v2667, %v2666
  %v3397 = vpack.c.b16 %v2669, %v2668
  %v3398 = vpack.c.b16 %v2671, %v2670
  %v3399 = vpack.c.b16 %v2673, %v2672
  %v3400 = vpack.c.b16 %v2675, %v2674
  %v3401 = vpack.c.b16 %v2677, %v2676
  %v3402 = vpack.c.b16 %v2679, %v2678
  %v3403 = vpack.c.b16 %v2681, %v2680
  %v3404 = vpack.c.b16 %v2683, %v2682
  %v3405 = vpack.c.b16 %v2685, %v2684
  %v3406 = vpack.c.b16 %v2687, %v2686
  %v3407 = vpack.c.b16 %v2689, %v2688
  %v3408 = vpack.c.b16 %v2691, %v2690
  %v3409 = vpack.c.b16 %v2693, %v2692
  %v3410 = vpack.c.b16 %v2695, %v2694
  %v3411 = vpack.c.b16 %v2697, %v2696
  %v3412 = vpack.c.b16 %v2699, %v2698
  %v3413 = vpack.c.b16 %v2701, %v2700
  %v3414 = vpack.c.b16 %v2703, %v2702
  %v3415 = vpack.c.b16 %v2705, %v2704
  %v3416 = vpack.c.b16 %v2707, %v2706
  %v3417 = vpack.c.b16 %v2709, %v2708
  %v3418 = vpack.c.b16 %v2711, %v2710
  %v3419 = vpack.c.b16 %v2713, %v2712
  %v3420 = vpack.c.b16 %v2715, %v2714
  %v3421 = vpack.c.b16 %v2717, %v2716
  %v3422 = vpack.c.b16 %v2719, %v2718
  %v3423 = vpack.c.b16 %v2721, %v2720
  %v3424 = vpack.c.b16 %v2723, %v2722
  %v3425 = vpack.c.b16 %v2725, %v2724
  %v3426 = vpack.c.b16 %v2727, %v2726
  %v3427 = vpack.c.b16 %v2729, %v2728
  %v3428 = vpack.c.b16 %v2731, %v2730
  %v3429 = vpack.c.b16 %v2733, %v2732
  %v3430 = vpack.c.b16 %v2735, %v2734
  %v3431 = vpack.c.b16 %v2737, %v2736
  %v3432 = vpack.c.b16 %v2739, %v2738
  %v3433 = vpack.c.b16 %v2741, %v2740
  %v3434 = vpack.c.b16 %v2743, %v2742
  %v3435 = vpack.c.b16 %v2745, %v2744
  %v3436 = vpack.c.b16 %v2747, %v2746
  %v3437 = vpack.c.b16 %v2749, %v2748
  %v3438 = vpack.c.b16 %v2751, %v2750
  %v3439 = vpack.c.b16 %v2753, %v2752
  %v3440 = vpack.c.b16 %v2755, %v2754
  %v3441 = vpack.c.b16 %v2757, %v2756
  %v3442 = vpack.c.b16 %v2759, %v2758
  %v3443 = vpack.c.b16 %v2761, %v2760
  %v3444 = vpack.c.b16 %v2763, %v2762
  %v3445 = vpack.c.b16 %v2765, %v2764
  %v3446 = vpack.c.b16 %v2767, %v2766
  %v3447 = vpack.c.b16 %v2769, %v2768
  %v3448 = vpack.c.b16 %v2771, %v2770
  %v3449 = vpack.c.b16 %v2773, %v2772
  %v3450 = vpack.c.b16 %v2775, %v2774
  %v3451 = vpack.c.b16 %v2777, %v2776
  %v3452 = vpack.c.b16 %v2779, %v2778
  %v3453 = vpack.c.b16 %v2781, %v2780
  %v3454 = vpack.c.b16 %v2783, %v2782
  %v3455 = vpack.c.b16 %v2785, %v2784
  %v3456 = vpack.c.b16 %v2787, %v2786
  %v3457 = vpack.c.b16 %v2789, %v2788
  %v3458 = vpack.c.b16 %v2791, %v2790
  %v3459 = vpack.c.b16 %v2793, %v2792
  %v3460 = vpack.c.b16 %v2795, %v2794
  %v3461 = vpack.c.b16 %v2797, %v2796
  %v3462 = vpack.c.b16 %v2799, %v2798
  %v3463 = vpack.c.b16 %v2801, %v2800
  %v3464 = vpack.c.b16 %v2803, %v2802
  %v3465 = vpack.c.b16 %v2805, %v2804
  %v3466 = vpack.c.b16 %v2807, %v2806
  %v3467 = vpack.c.b16 %v2809, %v2808
  %v3468 = vpack.c.b16 %v2811, %v2810
  %v3469 = vpack.c.b16 %v2813, %v2812
  %v3470 = vpack.c.b16 %v2815, %v2814
  %v3471 = vpack.c.b16 %v2817, %v2816
  %v3472 = vpack.c.b16 %v2819, %v2818
  %v3473 = vpack.c.b16 %v2821, %v2820
  %v3474 = vpack.c.b16 %v2823, %v2822
  %v3475 = vpack.c.b16 %v2825, %v2824
  %v3476 = vpack.c.b16 %v2827, %v2826
  %v3477 = vpack.c.b16 %v2829, %v2828
  %v3478 = vpack.c.b16 %v2831, %v2830
  %v3479 = vpack.c.b16 %v2833, %v2832
  %v3480 = vpack.c.b16 %v2835, %v2834
  %v3481 = vpack.c.b16 %v2837, %v2836
  %v3482 = vpack.c.b16 %v2839, %v2838
  %v3483 = vpack.c.b16 %v2841, %v2840
  %v3484 = vpack.c.b16 %v2843, %v2842
  %v3485 = vpack.c.b16 %v2845, %v2844
  %v3486 = vpack.c.b16 %v2847, %v2846
  %v3487 = vpack.c.b16 %v2849, %v2848
  %v3488 = vpack.c.b16 %v2851, %v2850
  %v3489 = vpack.c.b16 %v2853, %v2852
  %v3490 = vpack.c.b16 %v2855, %v2854
  %v3491 = vpack.c.b16 %v2857, %v2856
  %v3492 = vpack.c.b16 %v2859, %v2858
  %v3493 = vpack.c.b16 %v2861, %v2860
  %v3494 = vpack.c.b16 %v2863, %v2862
  %v3495 = vpack.c.b16 %v2865, %v2864
  %v3496 = vpack.c.b16 %v2867, %v2866
  %v3497 = vpack.c.b16 %v2869, %v2868
  %v3498 = vpack.c.b16 %v2871, %v2870
  %v3499 = vpack.c.b16 %v2873, %v2872
  %v3500 = vpack.c.b16 %v2875, %v2874
  %v3501 = vpack.c.b16 %v2877, %v2876
  %v3502 = vpack.c.b16 %v2879, %v2878
  %v3503 = vpack.c.b16 %v2881, %v2880
  %v3504 = vpack.c.b16 %v2883, %v2882
  %v3505 = vpack.c.b16 %v2885, %v2884
  %v3506 = vpack.c.b16 %v2887, %v2886
  %v3507 = vpack.c.b16 %v2889, %v2888
  %v3508 = vpack.c.b16 %v2891, %v2890
  %v3509 = vpack.c.b16 %v2893, %v2892
  %v3510 = vpack.c.b16 %v2895, %v2894
  %v3511 = vpack.c.b16 %v2897, %v2896
  %v3512 = vpack.c.b16 %v2899, %v2898
  %v3513 = vpack.c.b16 %v2901, %v2900
  %v3514 = vpack.c.b16 %v2903, %v2902
  %v3515 = vpack.c.b16 %v2905, %v2904
  %v3516 = vpack.c.b16 %v2907, %v2906
  %v3517 = vpack.c.b16 %v2909, %v2908
  %v3518 = vpack.c.b16 %v2911, %v2910
  %v3519 = vpack.c.b16 %v2913, %v2912
  %v3520 = vpack.c.b16 %v2915, %v2914
  %v3521 = vpack.c.b16 %v2917, %v2916
  %v3522 = vpack.c.b16 %v2919, %v2918
  %v3523 = vpack.c.b16 %v2921, %v2920
  %v3524 = vpack.c.b16 %v2923, %v2922
  %v3525 = vpack.c.b16 %v2925, %v2924
  %v3526 = vpack.c.b16 %v2927, %v2926
  %v3527 = vpack.c.b16 %v2929, %v2928
  %v3528 = vpack.c.b16 %v2931, %v2930
  %v3529 = vpack.c.b16 %v2933, %v2932
  %v3530 = vpack.c.b16 %v2935, %v2934
  %v3531 = vpack.c.b16 %v2937, %v2936
  %v3532 = vpack.c.b16 %v2939, %v2938
  %v3533 = vpack.c.b16 %v2941, %v2940
  %v3534 = vpack.c.b16 %v2943, %v2942
  %v3535 = vpack.c.b16 %v2945, %v2944
  %v3536 = vpack.c.b16 %v2947, %v2946
  %v3537 = vpack.c.b16 %v2949, %v2948
  %v3538 = vpack.c.b16 %v2951, %v2950
  %v3539 = vpack.c.b16 %v2953, %v2952
  %v3540 = vpack.c.b16 %v2955, %v2954
  %v3541 = vpack.c.b16 %v2957, %v2956
  %v3542 = vpack.c.b16 %v2959, %v2958
  %v3543 = vpack.c.b16 %v2961, %v2960
  %v3544 = vpack.c.b16 %v2963, %v2962
  %v3545 = vpack.c.b16 %v2965, %v2964
  %v3546 = vpack.c.b16 %v2967, %v2966
  %v3547 = vpack.c.b16 %v2969, %v2968
  %v3548 = vpack.c.b16 %v2971, %v2970
  %v3549 = vpack.c.b16 %v2973, %v2972
  %v3550 = vpack.c.b16 %v2975, %v2974
  %v3551 = vpack.c.b16 %v2977, %v2976
  %v3552 = vpack.c.b16 %v2979, %v2978
  %v3553 = vpack.c.b16 %v2981, %v2980
  %v3554 = vpack.c.b16 %v2983, %v2982
  %v3555 = vpack.c.b16 %v2985, %v2984
  %v3556 = vpack.c.b16 %v2987, %v2986
  %v3557 = vpack.c.b16 %v2989, %v2988
  %v3558 = vpack.c.b16 %v2991, %v2990
  %v3559 = vpack.c.b16 %v2993, %v2992
  %v3560 = vpack.c.b16 %v2995, %v2994
  %v3561 = vpack.c.b16 %v2997, %v2996
  %v3562 = vpack.c.b16 %v2999, %v2998
  %v3563 = vpack.c.b16 %v3001, %v3000
  %v3564 = vpack.c.b16 %v3003, %v3002
  %v3565 = vpack.c.b16 %v3005, %v3004
  %v3566 = vpack.c.b16 %v3007, %v3006
  %v3567 = vpack.c.b16 %v3009, %v3008
  %v3568 = vpack.c.b16 %v3011, %v3010
  %v3569 = vpack.c.b16 %v3013, %v3012
  %v3570 = vpack.c.b16 %v3015, %v3014
  %v3571 = vpack.c.b16 %v3017, %v3016
  %v3572 = vpack.c.b16 %v3019, %v3018
  %v3573 = vpack.c.b16 %v3021, %v3020
  %v3574 = vpack.c.b16 %v3023, %v3022
  %v3575 = vpack.c.b16 %v3025, %v3024
  %v3576 = vpack.c.b16 %v3027, %v3026
  %v3577 = vpack.c.b16 %v3029, %v3028
  %v3578 = vpack.c.b16 %v3031, %v3030
  %v3579 = vpack.c.b16 %v3033, %v3032
  %v3580 = vpack.c.b16 %v3035, %v3034
  %v3581 = vpack.c.b16 %v3037, %v3036
  %v3582 = vpack.c.b16 %v3039, %v3038
  %v3583 = vpack.c.b16 %v3041, %v3040
  %v3584 = vpack.c.b16 %v3043, %v3042
  %v3585 = vpack.c.b16 %v3045, %v3044
  %v3586 = vpack.c.b16 %v3047, %v3046
  %v3587 = vpack.c.b16 %v3049, %v3048
  %v3588 = vpack.c.b16 %v3051, %v3050
  %v3589 = vpack.c.b16 %v3053, %v3052
  %v3590 = vpack.c.b16 %v3055, %v3054
  %v3591 = vpack.c.b16 %v3057, %v3056
  %v3592 = vpack.c.b16 %v3059, %v3058
  %v3593 = vpack.c.b16 %v3061, %v3060
  %v3594 = vpack.c.b16 %v3063, %v3062
  %v3595 = vpack.c.b16 %v3065, %v3064
  %v3596 = vpack.c.b16 %v3067, %v3066
  %v3597 = vpack.c.b16 %v3069, %v3068
  %v3598 = vpack.c.b16 %v3071, %v3070
  %v3599 = vpack.c.b16 %v3073, %v3072
  %v3600 = vpack.c.b16 %v3075, %v3074
  %v3601 = vpack.c.b16 %v3077, %v3076
  %v3602 = vpack.c.b16 %v3079, %v3078
  %v3603 = vpack.c.b16 %v3081, %v3080
  %v3604 = vpack.c.b16 %v3083, %v3082
  %v3605 = vpack.c.b16 %v3085, %v3084
  %v3606 = vpack.c.b16 %v3087, %v3086
  %v3607 = vpack.c.b16 %v3089, %v3088
  %v3608 = vpack.c.b16 %v3091, %v3090
  %v3609 = vpack.c.b16 %v3093, %v3092
  %v3610 = vpack.c.b16 %v3095, %v3094
  %v3611 = vpack.c.b16 %v3097, %v3096
  %v3612 = vpack.c.b16 %v3099, %v3098
  %v3613 = vpack.c.b16 %v3101, %v3100
  %v3614 = vpack.c.b16 %v3103, %v3102
  %v3615 = vpack.c.b16 %v3105, %v3104
  %v3616 = vpack.c.b16 %v3107, %v3106
  %v3617 = vpack.c.b16 %v3109, %v3108
  %v3618 = vpack.c.b16 %v3111, %v3110
  %v3619 = vpack.c.b16 %v3113, %v3112
  %v3620 = vpack.c.b16 %v3115, %v3114
  %v3621 = vpack.c.b16 %v3117, %v3116
  %v3622 = vpack.c.b16 %v3119, %v3118
  %v3623 = vpack.c.b16 %v3121, %v3120
  %v3624 = vpack.c.b16 %v3123, %v3122
  %v3625 = vpack.c.b16 %v3125, %v3124
  %v3626 = vpack.c.b16 %v3127, %v3126
  %v3627 = vpack.c.b16 %v3129, %v3128
  %v3628 = vpack.c.b16 %v3131, %v3130
  %v3629 = vpack.c.b16 %v3133, %v3132
  %v3630 = vpack.c.b16 %v3135, %v3134
  %v3631 = vpack.c.b16 %v3137, %v3136
  %v3632 = vpack.c.b16 %v3139, %v3138
  %v3633 = vpack.c.b16 %v3141, %v3140
  %v3634 = vpack.c.b16 %v3143, %v3142
  %v3635 = vpack.c.b16 %v3145, %v3144
  %v3636 = vpack.c.b16 %v3147, %v3146
  %v3637 = vpack.c.b16 %v3149, %v3148
  %v3638 = vpack.c.b16 %v3151, %v3150
  %v3639 = vpack.c.b16 %v3153, %v3152
  %v3640 = vpack.c.b16 %v3155, %v3154
  %v3641 = vpack.c.b16 %v3157, %v3156
  %v3642 = vpack.c.b16 %v3159, %v3158
  %v3643 = vpack.c.b16 %v3161, %v3160
  %v3644 = vpack.c.b16 %v3163, %v3162
  %v3645 = vpack.c.b16 %v3165, %v3164
  %v3646 = vpack.c.b16 %v3167, %v3166
  %v3647 = vpack.c.b16 %v3169, %v3168
  %v3648 = vpack.c.b16 %v3171, %v3170
  %v3649 = vpack.c.b16 %v3173, %v3172
  %v3650 = vpack.c.b16 %v3175, %v3174
  %v3651 = vpack.c.b16 %v3177, %v3176
  %v3652 = vpack.c.b16 %v3179, %v3178
  %v3653 = vpack.c.b16 %v3181, %v3180
  %v3654 = vpack.c.b16 %v3183, %v3182
  %v3655 = vpack.c.b16 %v3185, %v3184
  %v3656 = vpack.c.b16 %v3187, %v3186
  %v3657 = vpack.c.b16 %v3189, %v3188
  %v3658 = vpack.c.b16 %v3191, %v3190
  %v3659 = vpack.c.b16 %v3193, %v3192
  %v3660 = vpack.c.b16 %v3195, %v3194
  %v3661 = vpack.c.b16 %v3197, %v3196
  %v3662 = vpack.c.b16 %v3199, %v3198
  %v3663 = vpack.c.b16 %v3201, %v3200
  %v3664 = vpack.c.b16 %v3203, %v3202
  %v3665 = vpack.c.b16 %v3205, %v3204
  %v3666 = vpack.c.b16 %v3207, %v3206
  %v3667 = vpack.c.b16 %v3209, %v3208
  %v3668 = vpack.c.b16 %v3211, %v3210
  %v3669 = vpack.c.b16 %v3213, %v3212
  %v3670 = vpack.c.b16 %v3215, %v3214
  %v3671 = vpack.c.b16 %v3217, %v3216
  %v3672 = vpack.c.b16 %v3219, %v3218
  %v3673 = vpack.c.b16 %v3221, %v3220
  %v3674 = vpack.c.b16 %v3223, %v3222
  %v3675 = vpack.c.b16 %v3225, %v3224
  %v3676 = vpack.c.b16 %v3227, %v3226
  %v3677 = vpack.c.b16 %v3229, %v3228
  %v3678 = vpack.c.b16 %v3231, %v3230
  %v3679 = vpack.c.b16 %v3233, %v3232
  %v3680 = vpack.c.b16 %v3235, %v3234
  %v3681 = vpack.c.b16 %v3237, %v3236
  %v3682 = vpack.c.b16 %v3239, %v3238
  %v3683 = vpack.c.b16 %v3241, %v3240
  %v3684 = vpack.c.b16 %v3243, %v3242
  %v3685 = vpack.c.b16 %v3245, %v3244
  %v3686 = vpack.c.b16 %v3247, %v3246
  %v3687 = vpack.c.b16 %v3249, %v3248
  %v3688 = vpack.c.b16 %v3251, %v3250
  %v3689 = vpack.c.b16 %v3253, %v3252
  %v3690 = vpack.c.b16 %v3255, %v3254
  %v3691 = vpack.c.b16 %v3257, %v3256
  %v3692 = vpack.c.b16 %v3259, %v3258
  %v3693 = vpack.c.b16 %v3261, %v3260
  %v3694 = vpack.c.b16 %v3263, %v3262
  %v3695 = vpack.c.b16 %v3265, %v3264
  %v3696 = vpack.c.b16 %v3267, %v3266
  %v3697 = vpack.c.b16 %v3269, %v3268
  %v3698 = vpack.c.b16 %v3271, %v3270
  %v3699 = vpack.c.b16 %v3273, %v3272
  %v3700 = vpack.c.b16 %v3275, %v3274
  %v3701 = vpack.c.b16 %v3277, %v3276
  %v3702 = vpack.c.b16 %v3279, %v3278
  %v3703 = vpack.c.b16 %v3281, %v3280
  %v3704 = vpack.c.b16 %v3283, %v3282
  %v3705 = vpack.c.b16 %v3285, %v3284
  %v3706 = vpack.c.b16 %v3287, %v3286
  %v3707 = vpack.c.b16 %v3289, %v3288
  %v3708 = vpack.c.b16 %v3291, %v3290
  %v3709 = vpack.c.b16 %v3293, %v3292
  %v3710 = vpack.c.b16 %v3295, %v3294
  %v3711 = vpack.c.b16 %v3297, %v3296
  %v3712 = vpack.c.b16 %v3299, %v3298
  %v3713 = vpack.c.b16 %v3301, %v3300
  %v3714 = vpack.c.b16 %v3303, %v3302
  %v3715 = vpack.c.b16 %v3305, %v3304
  %v3716 = vpack.c.b16 %v3307, %v3306
  %v3717 = vpack.c.b16 %v3309, %v3308
  %v3718 = vpack.c.b16 %v3311, %v3310
  %v3719 = vpack.c.b16 %v3313, %v3312
  %v3720 = vpack.c.b16 %v3315, %v3314
  %v3721 = vpack.c.b16 %v3317, %v3316
  %v3722 = vpack.c.b16 %v3319, %v3318
  %v3723 = vpack.c.b16 %v3321, %v3320
  %v3724 = vpack.c.b16 %v3323, %v3322
  %v3725 = vpack.c.b16 %v3325, %v3324
  %v3726 = vpack.c.b16 %v3327, %v3326
  %v3727 = vpack.c.b16 %v3329, %v3328
  %v3728 = vpack.c.b16 %v3331, %v3330
  %v3729 = vpack.c.b16 %v3333, %v3332
  %v3730 = vpack.c.b16 %v3335, %v3334
  %v3731 = vpack.c.b16 %v3337, %v3336
  %v3732 = vpack.c.b16 %v3339, %v3338
  %v3733 = vpack.c.b16 %v3341, %v3340
  %v3734 = vpack.c.b16 %v3343, %v3342
  %v3735 = vpack.c.b16 %v3345, %v3344
  %v3736 = vpack.c.b16 %v3347, %v3346
  %v3737 = vpack.c.b16 %v3349, %v3348
  %v3738 = vpack.c.b16 %v3351, %v3350
  %v3739 = vpack.c.b16 %v3353, %v3352
  %v3740 = vpack.c.b16 %v3355, %v3354
  %v3741 = vpack.c.b16 %v3357, %v3356
  %v3742 = vpack.c.b16 %v3359, %v3358
  %v3743 = vpack.c.b16 %v3361, %v3360
  %v3744 = vpack.c.b16 %v3363, %v3362
  %v3745 = vpack.c.b16 %v3365, %v3364
  %v3746 = vpack.c.b16 %v3367, %v3366
  %v3747 = vpack.c.b16 %v3369, %v3368
  %v3748 = vpack.c.b16 %v3371, %v3370
  %v3749 = vpack.c.b16 %v3373, %v3372
  %v3750 = vpack.c.b16 %v3375, %v3374
  %v3751 = vpack.c.b16 %v3377, %v3376
  %v3752 = vpack.c.b16 %v3379, %v3378
  %v3753 = vpack.c.b16 %v3381, %v3380
  %v3754 = vpack.c.b16 %v3382, %v3382
  %vm4126 = vcmask 433152
  %v4128 = vsel %vm4126, %v1571, 0
  %v4131 = vsel %vm4126, %v1618, 0
  %v4134 = vsel %vm4126, %v1665, 0
  %v4137 = vsel %vm4126, %v1712, 0
  %vm4139 = vcmask 1041408
  %vm4140 = vcmask 1042432
  %v4141 = vsel %vm4139, 4294967295, 65535
  %v4142 = vsel %vm4140, %v4141, 0
  %v4144 = vand.u32 %v3754, %v4142
  %4146 = vmatprep.subr.bf16.mxu0 0
  %4147 = vmatpush1.bf16.msra.mxu0 %v3383
  %4148 = vmatprep.subr.bf16.mxu0 0
  %4149 = vmatpush1.bf16.msra.mxu0 %v3384
  %4150 = vmatprep.subr.bf16.mxu0 0
  %4151 = vmatpush1.bf16.msra.mxu0 %v3385
  %4152 = vmatprep.subr.bf16.mxu0 0
  %4153 = vmatpush1.bf16.msra.mxu0 %v3386
  %4154 = vmatprep.subr.bf16.mxu0 0
  %4155 = vmatpush1.bf16.msra.mxu0 %v3387
  %4156 = vmatprep.subr.bf16.mxu0 0
  %4157 = vmatpush1.bf16.msra.mxu0 %v3388
  %4158 = vmatprep.subr.bf16.mxu0 0
  %4159 = vmatpush1.bf16.msra.mxu0 %v3389
  %4160 = vmatprep.subr.bf16.mxu0 0
  %4161 = vmatpush1.bf16.msra.mxu0 %v3390
  %4162 = vmatprep.subr.bf16.mxu0 0
  %4163 = vmatpush1.bf16.msra.mxu0 %v3391
  %4164 = vmatprep.subr.bf16.mxu0 0
  %4165 = vmatpush1.bf16.msra.mxu0 %v3392
  %4166 = vmatprep.subr.bf16.mxu0 0
  %4167 = vmatpush1.bf16.msra.mxu0 %v3393
  %4168 = vmatprep.subr.bf16.mxu0 0
  %4169 = vmatpush1.bf16.msra.mxu0 %v3394
  %4170 = vmatprep.subr.bf16.mxu0 0
  %4171 = vmatpush1.bf16.msra.mxu0 %v3395
  %4172 = vmatprep.subr.bf16.mxu0 0
  %4173 = vmatpush1.bf16.msra.mxu0 %v3396
  %4174 = vmatprep.subr.bf16.mxu0 0
  %4175 = vmatpush1.bf16.msra.mxu0 %v3397
  %4176 = vmatprep.subr.bf16.mxu0 0
  %4177 = vmatpush1.bf16.msra.mxu0 %v3398
  %4178 = vmatprep.mubr.bf16.mxu0 %v1526
  %4179 = vmatmul.mubr.bf16.gmra.mrb[0].mxu0 %v1525
  %v4180 = vpop.f32.mrb[0].mxu0
  %v4181 = vadd.f32 %v955, %v4180
  %v4182 = vpop.f32.mrb[0].mxu0
  %v4183 = vpop.f32.mrb[0].mxu0
  %v4184 = vadd.f32 %v955, %v4183
  %v4185 = vpop.f32.mrb[0].mxu0
  %4186 = vmatprep.mubr.bf16.mxu0 %v1573
  %4187 = vmatmul.mubr.bf16.gmra.mrb[0].mxu0 %v1572
  %v4188 = vpop.f32.mrb[0].mxu0
  %v4189 = vadd.f32 %v955, %v4188
  %v4190 = vpop.f32.mrb[0].mxu0
  %v4191 = vpop.f32.mrb[0].mxu0
  %v4192 = vadd.f32 %v955, %v4191
  %v4193 = vpop.f32.mrb[0].mxu0
  %4194 = vmatprep.mubr.bf16.mxu0 %v1620
  %4195 = vmatmul.mubr.bf16.gmra.mrb[0].mxu0 %v1619
  %v4196 = vpop.f32.mrb[0].mxu0
  %v4197 = vadd.f32 %v955, %v4196
  %v4198 = vpop.f32.mrb[0].mxu0
  %v4199 = vpop.f32.mrb[0].mxu0
  %v4200 = vadd.f32 %v955, %v4199
  %v4201 = vpop.f32.mrb[0].mxu0
  %4202 = vmatprep.mubr.bf16.mxu0 %v1667
  %4203 = vmatmul.mubr.bf16.gmra.mrb[0].mxu0 %v1666
  %v4204 = vpop.f32.mrb[0].mxu0
  %v4205 = vadd.f32 %v955, %v4204
  %v4206 = vpop.f32.mrb[0].mxu0
  %v4207 = vpop.f32.mrb[0].mxu0
  %v4208 = vadd.f32 %v955, %v4207
  %v4209 = vpop.f32.mrb[0].mxu0
  %4210 = vdwg.mxu0
  %4211 = vmatprep.subr.bf16.mxu0 0
  %4212 = vmatpush1.bf16.msra.mxu0 %v3399
  %4213 = vmatprep.subr.bf16.mxu0 0
  %4214 = vmatpush1.bf16.msra.mxu0 %v3400
  %4215 = vmatprep.subr.bf16.mxu0 0
  %4216 = vmatpush1.bf16.msra.mxu0 %v3401
  %4217 = vmatprep.subr.bf16.mxu0 0
  %4218 = vmatpush1.bf16.msra.mxu0 %v3402
  %4219 = vmatprep.subr.bf16.mxu0 0
  %4220 = vmatpush1.bf16.msra.mxu0 %v3403
  %4221 = vmatprep.subr.bf16.mxu0 0
  %4222 = vmatpush1.bf16.msra.mxu0 %v3404
  %4223 = vmatprep.subr.bf16.mxu0 0
  %4224 = vmatpush1.bf16.msra.mxu0 %v3405
  %4225 = vmatprep.subr.bf16.mxu0 0
  %4226 = vmatpush1.bf16.msra.mxu0 %v3406
  %4227 = vmatprep.subr.bf16.mxu0 0
  %4228 = vmatpush1.bf16.msra.mxu0 %v3407
  %4229 = vmatprep.subr.bf16.mxu0 0
  %4230 = vmatpush1.bf16.msra.mxu0 %v3408
  %4231 = vmatprep.subr.bf16.mxu0 0
  %4232 = vmatpush1.bf16.msra.mxu0 %v3409
  %4233 = vmatprep.subr.bf16.mxu0 0
  %4234 = vmatpush1.bf16.msra.mxu0 %v3410
  %4235 = vmatprep.subr.bf16.mxu0 0
  %4236 = vmatpush1.bf16.msra.mxu0 %v3411
  %4237 = vmatprep.subr.bf16.mxu0 0
  %4238 = vmatpush1.bf16.msra.mxu0 %v3412
  %4239 = vmatprep.subr.bf16.mxu0 0
  %4240 = vmatpush1.bf16.msra.mxu0 %v3413
  %4241 = vmatprep.subr.bf16.mxu0 0
  %4242 = vmatpush1.bf16.msra.mxu0 %v3414
  %4243 = vmatprep.mubr.bf16.mxu0 %v1528
  %4244 = vmatmul.mubr.bf16.gmra.mrb[0].mxu0 %v1527
  %v4245 = vpop.f32.mrb[0].mxu0
  %v4246 = vadd.f32 %v4181, %v4245
  %v4247 = vpop.f32.mrb[0].mxu0
  %v4248 = vpop.f32.mrb[0].mxu0
  %v4249 = vadd.f32 %v4184, %v4248
  %v4250 = vpop.f32.mrb[0].mxu0
  %4251 = vmatprep.mubr.bf16.mxu0 %v1575
  %4252 = vmatmul.mubr.bf16.gmra.mrb[0].mxu0 %v1574
  %v4253 = vpop.f32.mrb[0].mxu0
  %v4254 = vadd.f32 %v4189, %v4253
  %v4255 = vpop.f32.mrb[0].mxu0
  %v4256 = vpop.f32.mrb[0].mxu0
  %v4257 = vadd.f32 %v4192, %v4256
  %v4258 = vpop.f32.mrb[0].mxu0
  %4259 = vmatprep.mubr.bf16.mxu0 %v1622
  %4260 = vmatmul.mubr.bf16.gmra.mrb[0].mxu0 %v1621
  %v4261 = vpop.f32.mrb[0].mxu0
  %v4262 = vadd.f32 %v4197, %v4261
  %v4263 = vpop.f32.mrb[0].mxu0
  %v4264 = vpop.f32.mrb[0].mxu0
  %v4265 = vadd.f32 %v4200, %v4264
  %v4266 = vpop.f32.mrb[0].mxu0
  %4267 = vmatprep.mubr.bf16.mxu0 %v1669
  %4268 = vmatmul.mubr.bf16.gmra.mrb[0].mxu0 %v1668
  %v4269 = vpop.f32.mrb[0].mxu0
  %v4270 = vadd.f32 %v4205, %v4269
  %v4271 = vpop.f32.mrb[0].mxu0
  %v4272 = vpop.f32.mrb[0].mxu0
  %v4273 = vadd.f32 %v4208, %v4272
  %v4274 = vpop.f32.mrb[0].mxu0
  %4275 = vdwg.mxu0
  %4276 = vmatprep.subr.bf16.mxu0 0
  %4277 = vmatpush1.bf16.msra.mxu0 %v3415
  %4278 = vmatprep.subr.bf16.mxu0 0
  %4279 = vmatpush1.bf16.msra.mxu0 %v3416
  %4280 = vmatprep.subr.bf16.mxu0 0
  %4281 = vmatpush1.bf16.msra.mxu0 %v3417
  %4282 = vmatprep.subr.bf16.mxu0 0
  %4283 = vmatpush1.bf16.msra.mxu0 %v3418
  %4284 = vmatprep.subr.bf16.mxu0 0
  %4285 = vmatpush1.bf16.msra.mxu0 %v3419
  %4286 = vmatprep.subr.bf16.mxu0 0
  %4287 = vmatpush1.bf16.msra.mxu0 %v3420
  %4288 = vmatprep.subr.bf16.mxu0 0
  %4289 = vmatpush1.bf16.msra.mxu0 %v3421
  %4290 = vmatprep.subr.bf16.mxu0 0
  %4291 = vmatpush1.bf16.msra.mxu0 %v3422
  %4292 = vmatprep.subr.bf16.mxu0 0
  %4293 = vmatpush1.bf16.msra.mxu0 %v3423
  %4294 = vmatprep.subr.bf16.mxu0 0
  %4295 = vmatpush1.bf16.msra.mxu0 %v3424
  %4296 = vmatprep.subr.bf16.mxu0 0
  %4297 = vmatpush1.bf16.msra.mxu0 %v3425
  %4298 = vmatprep.subr.bf16.mxu0 0
  %4299 = vmatpush1.bf16.msra.mxu0 %v3426
  %4300 = vmatprep.subr.bf16.mxu0 0
  %4301 = vmatpush1.bf16.msra.mxu0 %v3427
  %4302 = vmatprep.subr.bf16.mxu0 0
  %4303 = vmatpush1.bf16.msra.mxu0 %v3428
  %4304 = vmatprep.subr.bf16.mxu0 0
  %4305 = vmatpush1.bf16.msra.mxu0 %v3429
  %4306 = vmatprep.subr.bf16.mxu0 0
  %4307 = vmatpush1.bf16.msra.mxu0 %v3430
  %4308 = vmatprep.mubr.bf16.mxu0 %v1530
  %4309 = vmatmul.mubr.bf16.gmra.mrb[0].mxu0 %v1529
  %v4310 = vpop.f32.mrb[0].mxu0
  %v4311 = vadd.f32 %v4246, %v4310
  %v4312 = vpop.f32.mrb[0].mxu0
  %v4313 = vpop.f32.mrb[0].mxu0
  %v4314 = vadd.f32 %v4249, %v4313
  %v4315 = vpop.f32.mrb[0].mxu0
  %4316 = vmatprep.mubr.bf16.mxu0 %v1577
  %4317 = vmatmul.mubr.bf16.gmra.mrb[0].mxu0 %v1576
  %v4318 = vpop.f32.mrb[0].mxu0
  %v4319 = vadd.f32 %v4254, %v4318
  %v4320 = vpop.f32.mrb[0].mxu0
  %v4321 = vpop.f32.mrb[0].mxu0
  %v4322 = vadd.f32 %v4257, %v4321
  %v4323 = vpop.f32.mrb[0].mxu0
  %4324 = vmatprep.mubr.bf16.mxu0 %v1624
  %4325 = vmatmul.mubr.bf16.gmra.mrb[0].mxu0 %v1623
  %v4326 = vpop.f32.mrb[0].mxu0
  %v4327 = vadd.f32 %v4262, %v4326
  %v4328 = vpop.f32.mrb[0].mxu0
  %v4329 = vpop.f32.mrb[0].mxu0
  %v4330 = vadd.f32 %v4265, %v4329
  %v4331 = vpop.f32.mrb[0].mxu0
  %4332 = vmatprep.mubr.bf16.mxu0 %v1671
  %4333 = vmatmul.mubr.bf16.gmra.mrb[0].mxu0 %v1670
  %v4334 = vpop.f32.mrb[0].mxu0
  %v4335 = vadd.f32 %v4270, %v4334
  %v4336 = vpop.f32.mrb[0].mxu0
  %v4337 = vpop.f32.mrb[0].mxu0
  %v4338 = vadd.f32 %v4273, %v4337
  %v4339 = vpop.f32.mrb[0].mxu0
  %4340 = vdwg.mxu0
  %4341 = vmatprep.subr.bf16.mxu0 0
  %4342 = vmatpush1.bf16.msra.mxu0 %v3431
  %4343 = vmatprep.subr.bf16.mxu0 0
  %4344 = vmatpush1.bf16.msra.mxu0 %v3432
  %4345 = vmatprep.subr.bf16.mxu0 0
  %4346 = vmatpush1.bf16.msra.mxu0 %v3433
  %4347 = vmatprep.subr.bf16.mxu0 0
  %4348 = vmatpush1.bf16.msra.mxu0 %v3434
  %4349 = vmatprep.subr.bf16.mxu0 0
  %4350 = vmatpush1.bf16.msra.mxu0 %v3435
  %4351 = vmatprep.subr.bf16.mxu0 0
  %4352 = vmatpush1.bf16.msra.mxu0 %v3436
  %4353 = vmatprep.subr.bf16.mxu0 0
  %4354 = vmatpush1.bf16.msra.mxu0 %v3437
  %4355 = vmatprep.subr.bf16.mxu0 0
  %4356 = vmatpush1.bf16.msra.mxu0 %v3438
  %4357 = vmatprep.subr.bf16.mxu0 0
  %4358 = vmatpush1.bf16.msra.mxu0 %v3439
  %4359 = vmatprep.subr.bf16.mxu0 0
  %4360 = vmatpush1.bf16.msra.mxu0 %v3440
  %4361 = vmatprep.subr.bf16.mxu0 0
  %4362 = vmatpush1.bf16.msra.mxu0 %v3441
  %4363 = vmatprep.subr.bf16.mxu0 0
  %4364 = vmatpush1.bf16.msra.mxu0 %v3442
  %4365 = vmatprep.subr.bf16.mxu0 0
  %4366 = vmatpush1.bf16.msra.mxu0 %v3443
  %4367 = vmatprep.subr.bf16.mxu0 0
  %4368 = vmatpush1.bf16.msra.mxu0 %v3444
  %4369 = vmatprep.subr.bf16.mxu0 0
  %4370 = vmatpush1.bf16.msra.mxu0 %v3445
  %4371 = vmatprep.subr.bf16.mxu0 0
  %4372 = vmatpush1.bf16.msra.mxu0 %v3446
  %4373 = vmatprep.mubr.bf16.mxu0 %v1532
  %4374 = vmatmul.mubr.bf16.gmra.mrb[0].mxu0 %v1531
  %v4375 = vpop.f32.mrb[0].mxu0
  %v4376 = vadd.f32 %v4311, %v4375
  %v4377 = vpop.f32.mrb[0].mxu0
  %v4378 = vpop.f32.mrb[0].mxu0
  %v4379 = vadd.f32 %v4314, %v4378
  %v4380 = vpop.f32.mrb[0].mxu0
  %4381 = vmatprep.mubr.bf16.mxu0 %v1579
  %4382 = vmatmul.mubr.bf16.gmra.mrb[0].mxu0 %v1578
  %v4383 = vpop.f32.mrb[0].mxu0
  %v4384 = vadd.f32 %v4319, %v4383
  %v4385 = vpop.f32.mrb[0].mxu0
  %v4386 = vpop.f32.mrb[0].mxu0
  %v4387 = vadd.f32 %v4322, %v4386
  %v4388 = vpop.f32.mrb[0].mxu0
  %4389 = vmatprep.mubr.bf16.mxu0 %v1626
  %4390 = vmatmul.mubr.bf16.gmra.mrb[0].mxu0 %v1625
  %v4391 = vpop.f32.mrb[0].mxu0
  %v4392 = vadd.f32 %v4327, %v4391
  %v4393 = vpop.f32.mrb[0].mxu0
  %v4394 = vpop.f32.mrb[0].mxu0
  %v4395 = vadd.f32 %v4330, %v4394
  %v4396 = vpop.f32.mrb[0].mxu0
  %4397 = vmatprep.mubr.bf16.mxu0 %v1673
  %4398 = vmatmul.mubr.bf16.gmra.mrb[0].mxu0 %v1672
  %v4399 = vpop.f32.mrb[0].mxu0
  %v4400 = vadd.f32 %v4335, %v4399
  %v4401 = vpop.f32.mrb[0].mxu0
  %v4402 = vpop.f32.mrb[0].mxu0
  %v4403 = vadd.f32 %v4338, %v4402
  %v4404 = vpop.f32.mrb[0].mxu0
  %4405 = vdwg.mxu0
  %4406 = vmatprep.subr.bf16.mxu0 0
  %4407 = vmatpush1.bf16.msra.mxu0 %v3447
  %4408 = vmatprep.subr.bf16.mxu0 0
  %4409 = vmatpush1.bf16.msra.mxu0 %v3448
  %4410 = vmatprep.subr.bf16.mxu0 0
  %4411 = vmatpush1.bf16.msra.mxu0 %v3449
  %4412 = vmatprep.subr.bf16.mxu0 0
  %4413 = vmatpush1.bf16.msra.mxu0 %v3450
  %4414 = vmatprep.subr.bf16.mxu0 0
  %4415 = vmatpush1.bf16.msra.mxu0 %v3451
  %4416 = vmatprep.subr.bf16.mxu0 0
  %4417 = vmatpush1.bf16.msra.mxu0 %v3452
  %4418 = vmatprep.subr.bf16.mxu0 0
  %4419 = vmatpush1.bf16.msra.mxu0 %v3453
  %4420 = vmatprep.subr.bf16.mxu0 0
  %4421 = vmatpush1.bf16.msra.mxu0 %v3454
  %4422 = vmatprep.subr.bf16.mxu0 0
  %4423 = vmatpush1.bf16.msra.mxu0 %v3455
  %4424 = vmatprep.subr.bf16.mxu0 0
  %4425 = vmatpush1.bf16.msra.mxu0 %v3456
  %4426 = vmatprep.subr.bf16.mxu0 0
  %4427 = vmatpush1.bf16.msra.mxu0 %v3457
  %4428 = vmatprep.subr.bf16.mxu0 0
  %4429 = vmatpush1.bf16.msra.mxu0 %v3458
  %4430 = vmatprep.subr.bf16.mxu0 0
  %4431 = vmatpush1.bf16.msra.mxu0 %v3459
  %4432 = vmatprep.subr.bf16.mxu0 0
  %4433 = vmatpush1.bf16.msra.mxu0 %v3460
  %4434 = vmatprep.subr.bf16.mxu0 0
  %4435 = vmatpush1.bf16.msra.mxu0 %v3461
  %4436 = vmatprep.subr.bf16.mxu0 0
  %4437 = vmatpush1.bf16.msra.mxu0 %v3462
  %4438 = vmatprep.mubr.bf16.mxu0 %v1534
  %4439 = vmatmul.mubr.bf16.gmra.mrb[0].mxu0 %v1533
  %v4440 = vpop.f32.mrb[0].mxu0
  %v4441 = vadd.f32 %v4376, %v4440
  %v4442 = vpop.f32.mrb[0].mxu0
  %v4443 = vpop.f32.mrb[0].mxu0
  %v4444 = vadd.f32 %v4379, %v4443
  %v4445 = vpop.f32.mrb[0].mxu0
  %4446 = vmatprep.mubr.bf16.mxu0 %v1581
  %4447 = vmatmul.mubr.bf16.gmra.mrb[0].mxu0 %v1580
  %v4448 = vpop.f32.mrb[0].mxu0
  %v4449 = vadd.f32 %v4384, %v4448
  %v4450 = vpop.f32.mrb[0].mxu0
  %v4451 = vpop.f32.mrb[0].mxu0
  %v4452 = vadd.f32 %v4387, %v4451
  %v4453 = vpop.f32.mrb[0].mxu0
  %4454 = vmatprep.mubr.bf16.mxu0 %v1628
  %4455 = vmatmul.mubr.bf16.gmra.mrb[0].mxu0 %v1627
  %v4456 = vpop.f32.mrb[0].mxu0
  %v4457 = vadd.f32 %v4392, %v4456
  %v4458 = vpop.f32.mrb[0].mxu0
  %v4459 = vpop.f32.mrb[0].mxu0
  %v4460 = vadd.f32 %v4395, %v4459
  %v4461 = vpop.f32.mrb[0].mxu0
  %4462 = vmatprep.mubr.bf16.mxu0 %v1675
  %4463 = vmatmul.mubr.bf16.gmra.mrb[0].mxu0 %v1674
  %v4464 = vpop.f32.mrb[0].mxu0
  %v4465 = vadd.f32 %v4400, %v4464
  %v4466 = vpop.f32.mrb[0].mxu0
  %v4467 = vpop.f32.mrb[0].mxu0
  %v4468 = vadd.f32 %v4403, %v4467
  %v4469 = vpop.f32.mrb[0].mxu0
  %4470 = vdwg.mxu0
  %4471 = vmatprep.subr.bf16.mxu0 0
  %4472 = vmatpush1.bf16.msra.mxu0 %v3463
  %4473 = vmatprep.subr.bf16.mxu0 0
  %4474 = vmatpush1.bf16.msra.mxu0 %v3464
  %4475 = vmatprep.subr.bf16.mxu0 0
  %4476 = vmatpush1.bf16.msra.mxu0 %v3465
  %4477 = vmatprep.subr.bf16.mxu0 0
  %4478 = vmatpush1.bf16.msra.mxu0 %v3466
  %4479 = vmatprep.subr.bf16.mxu0 0
  %4480 = vmatpush1.bf16.msra.mxu0 %v3467
  %4481 = vmatprep.subr.bf16.mxu0 0
  %4482 = vmatpush1.bf16.msra.mxu0 %v3468
  %4483 = vmatprep.subr.bf16.mxu0 0
  %4484 = vmatpush1.bf16.msra.mxu0 %v3469
  %4485 = vmatprep.subr.bf16.mxu0 0
  %4486 = vmatpush1.bf16.msra.mxu0 %v3470
  %4487 = vmatprep.subr.bf16.mxu0 0
  %4488 = vmatpush1.bf16.msra.mxu0 %v3471
  %4489 = vmatprep.subr.bf16.mxu0 0
  %4490 = vmatpush1.bf16.msra.mxu0 %v3472
  %4491 = vmatprep.subr.bf16.mxu0 0
  %4492 = vmatpush1.bf16.msra.mxu0 %v3473
  %4493 = vmatprep.subr.bf16.mxu0 0
  %4494 = vmatpush1.bf16.msra.mxu0 %v3474
  %4495 = vmatprep.subr.bf16.mxu0 0
  %4496 = vmatpush1.bf16.msra.mxu0 %v3475
  %4497 = vmatprep.subr.bf16.mxu0 0
  %4498 = vmatpush1.bf16.msra.mxu0 %v3476
  %4499 = vmatprep.subr.bf16.mxu0 0
  %4500 = vmatpush1.bf16.msra.mxu0 %v3477
  %4501 = vmatprep.subr.bf16.mxu0 0
  %4502 = vmatpush1.bf16.msra.mxu0 %v3478
  %4503 = vmatprep.mubr.bf16.mxu0 %v1536
  %4504 = vmatmul.mubr.bf16.gmra.mrb[0].mxu0 %v1535
  %v4505 = vpop.f32.mrb[0].mxu0
  %v4506 = vadd.f32 %v4441, %v4505
  %v4507 = vpop.f32.mrb[0].mxu0
  %v4508 = vpop.f32.mrb[0].mxu0
  %v4509 = vadd.f32 %v4444, %v4508
  %v4510 = vpop.f32.mrb[0].mxu0
  %4511 = vmatprep.mubr.bf16.mxu0 %v1583
  %4512 = vmatmul.mubr.bf16.gmra.mrb[0].mxu0 %v1582
  %v4513 = vpop.f32.mrb[0].mxu0
  %v4514 = vadd.f32 %v4449, %v4513
  %v4515 = vpop.f32.mrb[0].mxu0
  %v4516 = vpop.f32.mrb[0].mxu0
  %v4517 = vadd.f32 %v4452, %v4516
  %v4518 = vpop.f32.mrb[0].mxu0
  %4519 = vmatprep.mubr.bf16.mxu0 %v1630
  %4520 = vmatmul.mubr.bf16.gmra.mrb[0].mxu0 %v1629
  %v4521 = vpop.f32.mrb[0].mxu0
  %v4522 = vadd.f32 %v4457, %v4521
  %v4523 = vpop.f32.mrb[0].mxu0
  %v4524 = vpop.f32.mrb[0].mxu0
  %v4525 = vadd.f32 %v4460, %v4524
  %v4526 = vpop.f32.mrb[0].mxu0
  %4527 = vmatprep.mubr.bf16.mxu0 %v1677
  %4528 = vmatmul.mubr.bf16.gmra.mrb[0].mxu0 %v1676
  %v4529 = vpop.f32.mrb[0].mxu0
  %v4530 = vadd.f32 %v4465, %v4529
  %v4531 = vpop.f32.mrb[0].mxu0
  %v4532 = vpop.f32.mrb[0].mxu0
  %v4533 = vadd.f32 %v4468, %v4532
  %v4534 = vpop.f32.mrb[0].mxu0
  %4535 = vdwg.mxu0
  %4536 = vmatprep.subr.bf16.mxu0 0
  %4537 = vmatpush1.bf16.msra.mxu0 %v3479
  %4538 = vmatprep.subr.bf16.mxu0 0
  %4539 = vmatpush1.bf16.msra.mxu0 %v3480
  %4540 = vmatprep.subr.bf16.mxu0 0
  %4541 = vmatpush1.bf16.msra.mxu0 %v3481
  %4542 = vmatprep.subr.bf16.mxu0 0
  %4543 = vmatpush1.bf16.msra.mxu0 %v3482
  %4544 = vmatprep.subr.bf16.mxu0 0
  %4545 = vmatpush1.bf16.msra.mxu0 %v3483
  %4546 = vmatprep.subr.bf16.mxu0 0
  %4547 = vmatpush1.bf16.msra.mxu0 %v3484
  %4548 = vmatprep.subr.bf16.mxu0 0
  %4549 = vmatpush1.bf16.msra.mxu0 %v3485
  %4550 = vmatprep.subr.bf16.mxu0 0
  %4551 = vmatpush1.bf16.msra.mxu0 %v3486
  %4552 = vmatprep.subr.bf16.mxu0 0
  %4553 = vmatpush1.bf16.msra.mxu0 %v3487
  %4554 = vmatprep.subr.bf16.mxu0 0
  %4555 = vmatpush1.bf16.msra.mxu0 %v3488
  %4556 = vmatprep.subr.bf16.mxu0 0
  %4557 = vmatpush1.bf16.msra.mxu0 %v3489
  %4558 = vmatprep.subr.bf16.mxu0 0
  %4559 = vmatpush1.bf16.msra.mxu0 %v3490
  %4560 = vmatprep.subr.bf16.mxu0 0
  %4561 = vmatpush1.bf16.msra.mxu0 %v3491
  %4562 = vmatprep.subr.bf16.mxu0 0
  %4563 = vmatpush1.bf16.msra.mxu0 %v3492
  %4564 = vmatprep.subr.bf16.mxu0 0
  %4565 = vmatpush1.bf16.msra.mxu0 %v3493
  %4566 = vmatprep.subr.bf16.mxu0 0
  %4567 = vmatpush1.bf16.msra.mxu0 %v3494
  %4568 = vmatprep.mubr.bf16.mxu0 %v1538
  %4569 = vmatmul.mubr.bf16.gmra.mrb[0].mxu0 %v1537
  %v4570 = vpop.f32.mrb[0].mxu0
  %v4571 = vadd.f32 %v4506, %v4570
  %v4572 = vpop.f32.mrb[0].mxu0
  %v4573 = vpop.f32.mrb[0].mxu0
  %v4574 = vadd.f32 %v4509, %v4573
  %v4575 = vpop.f32.mrb[0].mxu0
  %4576 = vmatprep.mubr.bf16.mxu0 %v1585
  %4577 = vmatmul.mubr.bf16.gmra.mrb[0].mxu0 %v1584
  %v4578 = vpop.f32.mrb[0].mxu0
  %v4579 = vadd.f32 %v4514, %v4578
  %v4580 = vpop.f32.mrb[0].mxu0
  %v4581 = vpop.f32.mrb[0].mxu0
  %v4582 = vadd.f32 %v4517, %v4581
  %v4583 = vpop.f32.mrb[0].mxu0
  %4584 = vmatprep.mubr.bf16.mxu0 %v1632
  %4585 = vmatmul.mubr.bf16.gmra.mrb[0].mxu0 %v1631
  %v4586 = vpop.f32.mrb[0].mxu0
  %v4587 = vadd.f32 %v4522, %v4586
  %v4588 = vpop.f32.mrb[0].mxu0
  %v4589 = vpop.f32.mrb[0].mxu0
  %v4590 = vadd.f32 %v4525, %v4589
  %v4591 = vpop.f32.mrb[0].mxu0
  %4592 = vmatprep.mubr.bf16.mxu0 %v1679
  %4593 = vmatmul.mubr.bf16.gmra.mrb[0].mxu0 %v1678
  %v4594 = vpop.f32.mrb[0].mxu0
  %v4595 = vadd.f32 %v4530, %v4594
  %v4596 = vpop.f32.mrb[0].mxu0
  %v4597 = vpop.f32.mrb[0].mxu0
  %v4598 = vadd.f32 %v4533, %v4597
  %v4599 = vpop.f32.mrb[0].mxu0
  %4600 = vdwg.mxu0
  %4601 = vmatprep.subr.bf16.mxu0 0
  %4602 = vmatpush1.bf16.msra.mxu0 %v3495
  %4603 = vmatprep.subr.bf16.mxu0 0
  %4604 = vmatpush1.bf16.msra.mxu0 %v3496
  %4605 = vmatprep.subr.bf16.mxu0 0
  %4606 = vmatpush1.bf16.msra.mxu0 %v3497
  %4607 = vmatprep.subr.bf16.mxu0 0
  %4608 = vmatpush1.bf16.msra.mxu0 %v3498
  %4609 = vmatprep.subr.bf16.mxu0 0
  %4610 = vmatpush1.bf16.msra.mxu0 %v3499
  %4611 = vmatprep.subr.bf16.mxu0 0
  %4612 = vmatpush1.bf16.msra.mxu0 %v3500
  %4613 = vmatprep.subr.bf16.mxu0 0
  %4614 = vmatpush1.bf16.msra.mxu0 %v3501
  %4615 = vmatprep.subr.bf16.mxu0 0
  %4616 = vmatpush1.bf16.msra.mxu0 %v3502
  %4617 = vmatprep.subr.bf16.mxu0 0
  %4618 = vmatpush1.bf16.msra.mxu0 %v3503
  %4619 = vmatprep.subr.bf16.mxu0 0
  %4620 = vmatpush1.bf16.msra.mxu0 %v3504
  %4621 = vmatprep.subr.bf16.mxu0 0
  %4622 = vmatpush1.bf16.msra.mxu0 %v3505
  %4623 = vmatprep.subr.bf16.mxu0 0
  %4624 = vmatpush1.bf16.msra.mxu0 %v3506
  %4625 = vmatprep.subr.bf16.mxu0 0
  %4626 = vmatpush1.bf16.msra.mxu0 %v3507
  %4627 = vmatprep.subr.bf16.mxu0 0
  %4628 = vmatpush1.bf16.msra.mxu0 %v3508
  %4629 = vmatprep.subr.bf16.mxu0 0
  %4630 = vmatpush1.bf16.msra.mxu0 %v3509
  %4631 = vmatprep.subr.bf16.mxu0 0
  %4632 = vmatpush1.bf16.msra.mxu0 %v3510
  %4633 = vmatprep.mubr.bf16.mxu0 %v1540
  %4634 = vmatmul.mubr.bf16.gmra.mrb[0].mxu0 %v1539
  %v4635 = vpop.f32.mrb[0].mxu0
  %v4636 = vadd.f32 %v4571, %v4635
  %v4637 = vpop.f32.mrb[0].mxu0
  %v4638 = vpop.f32.mrb[0].mxu0
  %v4639 = vadd.f32 %v4574, %v4638
  %v4640 = vpop.f32.mrb[0].mxu0
  %4641 = vmatprep.mubr.bf16.mxu0 %v1587
  %4642 = vmatmul.mubr.bf16.gmra.mrb[0].mxu0 %v1586
  %v4643 = vpop.f32.mrb[0].mxu0
  %v4644 = vadd.f32 %v4579, %v4643
  %v4645 = vpop.f32.mrb[0].mxu0
  %v4646 = vpop.f32.mrb[0].mxu0
  %v4647 = vadd.f32 %v4582, %v4646
  %v4648 = vpop.f32.mrb[0].mxu0
  %4649 = vmatprep.mubr.bf16.mxu0 %v1634
  %4650 = vmatmul.mubr.bf16.gmra.mrb[0].mxu0 %v1633
  %v4651 = vpop.f32.mrb[0].mxu0
  %v4652 = vadd.f32 %v4587, %v4651
  %v4653 = vpop.f32.mrb[0].mxu0
  %v4654 = vpop.f32.mrb[0].mxu0
  %v4655 = vadd.f32 %v4590, %v4654
  %v4656 = vpop.f32.mrb[0].mxu0
  %4657 = vmatprep.mubr.bf16.mxu0 %v1681
  %4658 = vmatmul.mubr.bf16.gmra.mrb[0].mxu0 %v1680
  %v4659 = vpop.f32.mrb[0].mxu0
  %v4660 = vadd.f32 %v4595, %v4659
  %v4661 = vpop.f32.mrb[0].mxu0
  %v4662 = vpop.f32.mrb[0].mxu0
  %v4663 = vadd.f32 %v4598, %v4662
  %v4664 = vpop.f32.mrb[0].mxu0
  %4665 = vdwg.mxu0
  %4666 = vmatprep.subr.bf16.mxu0 0
  %4667 = vmatpush1.bf16.msra.mxu0 %v3511
  %4668 = vmatprep.subr.bf16.mxu0 0
  %4669 = vmatpush1.bf16.msra.mxu0 %v3512
  %4670 = vmatprep.subr.bf16.mxu0 0
  %4671 = vmatpush1.bf16.msra.mxu0 %v3513
  %4672 = vmatprep.subr.bf16.mxu0 0
  %4673 = vmatpush1.bf16.msra.mxu0 %v3514
  %4674 = vmatprep.subr.bf16.mxu0 0
  %4675 = vmatpush1.bf16.msra.mxu0 %v3515
  %4676 = vmatprep.subr.bf16.mxu0 0
  %4677 = vmatpush1.bf16.msra.mxu0 %v3516
  %4678 = vmatprep.subr.bf16.mxu0 0
  %4679 = vmatpush1.bf16.msra.mxu0 %v3517
  %4680 = vmatprep.subr.bf16.mxu0 0
  %4681 = vmatpush1.bf16.msra.mxu0 %v3518
  %4682 = vmatprep.subr.bf16.mxu0 0
  %4683 = vmatpush1.bf16.msra.mxu0 %v3519
  %4684 = vmatprep.subr.bf16.mxu0 0
  %4685 = vmatpush1.bf16.msra.mxu0 %v3520
  %4686 = vmatprep.subr.bf16.mxu0 0
  %4687 = vmatpush1.bf16.msra.mxu0 %v3521
  %4688 = vmatprep.subr.bf16.mxu0 0
  %4689 = vmatpush1.bf16.msra.mxu0 %v3522
  %4690 = vmatprep.subr.bf16.mxu0 0
  %4691 = vmatpush1.bf16.msra.mxu0 %v3523
  %4692 = vmatprep.subr.bf16.mxu0 0
  %4693 = vmatpush1.bf16.msra.mxu0 %v3524
  %4694 = vmatprep.subr.bf16.mxu0 0
  %4695 = vmatpush1.bf16.msra.mxu0 %v3525
  %4696 = vmatprep.subr.bf16.mxu0 0
  %4697 = vmatpush1.bf16.msra.mxu0 %v3526
  %4698 = vmatprep.mubr.bf16.mxu0 %v1542
  %4699 = vmatmul.mubr.bf16.gmra.mrb[0].mxu0 %v1541
  %v4700 = vpop.f32.mrb[0].mxu0
  %v4701 = vadd.f32 %v4636, %v4700
  %v4702 = vpop.f32.mrb[0].mxu0
  %v4703 = vpop.f32.mrb[0].mxu0
  %v4704 = vadd.f32 %v4639, %v4703
  %v4705 = vpop.f32.mrb[0].mxu0
  %4706 = vmatprep.mubr.bf16.mxu0 %v1589
  %4707 = vmatmul.mubr.bf16.gmra.mrb[0].mxu0 %v1588
  %v4708 = vpop.f32.mrb[0].mxu0
  %v4709 = vadd.f32 %v4644, %v4708
  %v4710 = vpop.f32.mrb[0].mxu0
  %v4711 = vpop.f32.mrb[0].mxu0
  %v4712 = vadd.f32 %v4647, %v4711
  %v4713 = vpop.f32.mrb[0].mxu0
  %4714 = vmatprep.mubr.bf16.mxu0 %v1636
  %4715 = vmatmul.mubr.bf16.gmra.mrb[0].mxu0 %v1635
  %v4716 = vpop.f32.mrb[0].mxu0
  %v4717 = vadd.f32 %v4652, %v4716
  %v4718 = vpop.f32.mrb[0].mxu0
  %v4719 = vpop.f32.mrb[0].mxu0
  %v4720 = vadd.f32 %v4655, %v4719
  %v4721 = vpop.f32.mrb[0].mxu0
  %4722 = vmatprep.mubr.bf16.mxu0 %v1683
  %4723 = vmatmul.mubr.bf16.gmra.mrb[0].mxu0 %v1682
  %v4724 = vpop.f32.mrb[0].mxu0
  %v4725 = vadd.f32 %v4660, %v4724
  %v4726 = vpop.f32.mrb[0].mxu0
  %v4727 = vpop.f32.mrb[0].mxu0
  %v4728 = vadd.f32 %v4663, %v4727
  %v4729 = vpop.f32.mrb[0].mxu0
  %4730 = vdwg.mxu0
  %4731 = vmatprep.subr.bf16.mxu0 0
  %4732 = vmatpush1.bf16.msra.mxu0 %v3527
  %4733 = vmatprep.subr.bf16.mxu0 0
  %4734 = vmatpush1.bf16.msra.mxu0 %v3528
  %4735 = vmatprep.subr.bf16.mxu0 0
  %4736 = vmatpush1.bf16.msra.mxu0 %v3529
  %4737 = vmatprep.subr.bf16.mxu0 0
  %4738 = vmatpush1.bf16.msra.mxu0 %v3530
  %4739 = vmatprep.subr.bf16.mxu0 0
  %4740 = vmatpush1.bf16.msra.mxu0 %v3531
  %4741 = vmatprep.subr.bf16.mxu0 0
  %4742 = vmatpush1.bf16.msra.mxu0 %v3532
  %4743 = vmatprep.subr.bf16.mxu0 0
  %4744 = vmatpush1.bf16.msra.mxu0 %v3533
  %4745 = vmatprep.subr.bf16.mxu0 0
  %4746 = vmatpush1.bf16.msra.mxu0 %v3534
  %4747 = vmatprep.subr.bf16.mxu0 0
  %4748 = vmatpush1.bf16.msra.mxu0 %v3535
  %4749 = vmatprep.subr.bf16.mxu0 0
  %4750 = vmatpush1.bf16.msra.mxu0 %v3536
  %4751 = vmatprep.subr.bf16.mxu0 0
  %4752 = vmatpush1.bf16.msra.mxu0 %v3537
  %4753 = vmatprep.subr.bf16.mxu0 0
  %4754 = vmatpush1.bf16.msra.mxu0 %v3538
  %4755 = vmatprep.subr.bf16.mxu0 0
  %4756 = vmatpush1.bf16.msra.mxu0 %v3539
  %4757 = vmatprep.subr.bf16.mxu0 0
  %4758 = vmatpush1.bf16.msra.mxu0 %v3540
  %4759 = vmatprep.subr.bf16.mxu0 0
  %4760 = vmatpush1.bf16.msra.mxu0 %v3541
  %4761 = vmatprep.subr.bf16.mxu0 0
  %4762 = vmatpush1.bf16.msra.mxu0 %v3542
  %4763 = vmatprep.mubr.bf16.mxu0 %v1544
  %4764 = vmatmul.mubr.bf16.gmra.mrb[0].mxu0 %v1543
  %v4765 = vpop.f32.mrb[0].mxu0
  %v4766 = vadd.f32 %v4701, %v4765
  %v4767 = vpop.f32.mrb[0].mxu0
  %v4768 = vpop.f32.mrb[0].mxu0
  %v4769 = vadd.f32 %v4704, %v4768
  %v4770 = vpop.f32.mrb[0].mxu0
  %4771 = vmatprep.mubr.bf16.mxu0 %v1591
  %4772 = vmatmul.mubr.bf16.gmra.mrb[0].mxu0 %v1590
  %v4773 = vpop.f32.mrb[0].mxu0
  %v4774 = vadd.f32 %v4709, %v4773
  %v4775 = vpop.f32.mrb[0].mxu0
  %v4776 = vpop.f32.mrb[0].mxu0
  %v4777 = vadd.f32 %v4712, %v4776
  %v4778 = vpop.f32.mrb[0].mxu0
  %4779 = vmatprep.mubr.bf16.mxu0 %v1638
  %4780 = vmatmul.mubr.bf16.gmra.mrb[0].mxu0 %v1637
  %v4781 = vpop.f32.mrb[0].mxu0
  %v4782 = vadd.f32 %v4717, %v4781
  %v4783 = vpop.f32.mrb[0].mxu0
  %v4784 = vpop.f32.mrb[0].mxu0
  %v4785 = vadd.f32 %v4720, %v4784
  %v4786 = vpop.f32.mrb[0].mxu0
  %4787 = vmatprep.mubr.bf16.mxu0 %v1685
  %4788 = vmatmul.mubr.bf16.gmra.mrb[0].mxu0 %v1684
  %v4789 = vpop.f32.mrb[0].mxu0
  %v4790 = vadd.f32 %v4725, %v4789
  %v4791 = vpop.f32.mrb[0].mxu0
  %v4792 = vpop.f32.mrb[0].mxu0
  %v4793 = vadd.f32 %v4728, %v4792
  %v4794 = vpop.f32.mrb[0].mxu0
  %4795 = vdwg.mxu0
  %4796 = vmatprep.subr.bf16.mxu0 0
  %4797 = vmatpush1.bf16.msra.mxu0 %v3543
  %4798 = vmatprep.subr.bf16.mxu0 0
  %4799 = vmatpush1.bf16.msra.mxu0 %v3544
  %4800 = vmatprep.subr.bf16.mxu0 0
  %4801 = vmatpush1.bf16.msra.mxu0 %v3545
  %4802 = vmatprep.subr.bf16.mxu0 0
  %4803 = vmatpush1.bf16.msra.mxu0 %v3546
  %4804 = vmatprep.subr.bf16.mxu0 0
  %4805 = vmatpush1.bf16.msra.mxu0 %v3547
  %4806 = vmatprep.subr.bf16.mxu0 0
  %4807 = vmatpush1.bf16.msra.mxu0 %v3548
  %4808 = vmatprep.subr.bf16.mxu0 0
  %4809 = vmatpush1.bf16.msra.mxu0 %v3549
  %4810 = vmatprep.subr.bf16.mxu0 0
  %4811 = vmatpush1.bf16.msra.mxu0 %v3550
  %4812 = vmatprep.subr.bf16.mxu0 0
  %4813 = vmatpush1.bf16.msra.mxu0 %v3551
  %4814 = vmatprep.subr.bf16.mxu0 0
  %4815 = vmatpush1.bf16.msra.mxu0 %v3552
  %4816 = vmatprep.subr.bf16.mxu0 0
  %4817 = vmatpush1.bf16.msra.mxu0 %v3553
  %4818 = vmatprep.subr.bf16.mxu0 0
  %4819 = vmatpush1.bf16.msra.mxu0 %v3554
  %4820 = vmatprep.subr.bf16.mxu0 0
  %4821 = vmatpush1.bf16.msra.mxu0 %v3555
  %4822 = vmatprep.subr.bf16.mxu0 0
  %4823 = vmatpush1.bf16.msra.mxu0 %v3556
  %4824 = vmatprep.subr.bf16.mxu0 0
  %4825 = vmatpush1.bf16.msra.mxu0 %v3557
  %4826 = vmatprep.subr.bf16.mxu0 0
  %4827 = vmatpush1.bf16.msra.mxu0 %v3558
  %4828 = vmatprep.mubr.bf16.mxu0 %v1546
  %4829 = vmatmul.mubr.bf16.gmra.mrb[0].mxu0 %v1545
  %v4830 = vpop.f32.mrb[0].mxu0
  %v4831 = vadd.f32 %v4766, %v4830
  %v4832 = vpop.f32.mrb[0].mxu0
  %v4833 = vpop.f32.mrb[0].mxu0
  %v4834 = vadd.f32 %v4769, %v4833
  %v4835 = vpop.f32.mrb[0].mxu0
  %4836 = vmatprep.mubr.bf16.mxu0 %v1593
  %4837 = vmatmul.mubr.bf16.gmra.mrb[0].mxu0 %v1592
  %v4838 = vpop.f32.mrb[0].mxu0
  %v4839 = vadd.f32 %v4774, %v4838
  %v4840 = vpop.f32.mrb[0].mxu0
  %v4841 = vpop.f32.mrb[0].mxu0
  %v4842 = vadd.f32 %v4777, %v4841
  %v4843 = vpop.f32.mrb[0].mxu0
  %4844 = vmatprep.mubr.bf16.mxu0 %v1640
  %4845 = vmatmul.mubr.bf16.gmra.mrb[0].mxu0 %v1639
  %v4846 = vpop.f32.mrb[0].mxu0
  %v4847 = vadd.f32 %v4782, %v4846
  %v4848 = vpop.f32.mrb[0].mxu0
  %v4849 = vpop.f32.mrb[0].mxu0
  %v4850 = vadd.f32 %v4785, %v4849
  %v4851 = vpop.f32.mrb[0].mxu0
  %4852 = vmatprep.mubr.bf16.mxu0 %v1687
  %4853 = vmatmul.mubr.bf16.gmra.mrb[0].mxu0 %v1686
  %v4854 = vpop.f32.mrb[0].mxu0
  %v4855 = vadd.f32 %v4790, %v4854
  %v4856 = vpop.f32.mrb[0].mxu0
  %v4857 = vpop.f32.mrb[0].mxu0
  %v4858 = vadd.f32 %v4793, %v4857
  %v4859 = vpop.f32.mrb[0].mxu0
  %4860 = vdwg.mxu0
  %4861 = vmatprep.subr.bf16.mxu0 0
  %4862 = vmatpush1.bf16.msra.mxu0 %v3559
  %4863 = vmatprep.subr.bf16.mxu0 0
  %4864 = vmatpush1.bf16.msra.mxu0 %v3560
  %4865 = vmatprep.subr.bf16.mxu0 0
  %4866 = vmatpush1.bf16.msra.mxu0 %v3561
  %4867 = vmatprep.subr.bf16.mxu0 0
  %4868 = vmatpush1.bf16.msra.mxu0 %v3562
  %4869 = vmatprep.subr.bf16.mxu0 0
  %4870 = vmatpush1.bf16.msra.mxu0 %v3563
  %4871 = vmatprep.subr.bf16.mxu0 0
  %4872 = vmatpush1.bf16.msra.mxu0 %v3564
  %4873 = vmatprep.subr.bf16.mxu0 0
  %4874 = vmatpush1.bf16.msra.mxu0 %v3565
  %4875 = vmatprep.subr.bf16.mxu0 0
  %4876 = vmatpush1.bf16.msra.mxu0 %v3566
  %4877 = vmatprep.subr.bf16.mxu0 0
  %4878 = vmatpush1.bf16.msra.mxu0 %v3567
  %4879 = vmatprep.subr.bf16.mxu0 0
  %4880 = vmatpush1.bf16.msra.mxu0 %v3568
  %4881 = vmatprep.subr.bf16.mxu0 0
  %4882 = vmatpush1.bf16.msra.mxu0 %v3569
  %4883 = vmatprep.subr.bf16.mxu0 0
  %4884 = vmatpush1.bf16.msra.mxu0 %v3570
  %4885 = vmatprep.subr.bf16.mxu0 0
  %4886 = vmatpush1.bf16.msra.mxu0 %v3571
  %4887 = vmatprep.subr.bf16.mxu0 0
  %4888 = vmatpush1.bf16.msra.mxu0 %v3572
  %4889 = vmatprep.subr.bf16.mxu0 0
  %4890 = vmatpush1.bf16.msra.mxu0 %v3573
  %4891 = vmatprep.subr.bf16.mxu0 0
  %4892 = vmatpush1.bf16.msra.mxu0 %v3574
  %4893 = vmatprep.mubr.bf16.mxu0 %v1548
  %4894 = vmatmul.mubr.bf16.gmra.mrb[0].mxu0 %v1547
  %v4895 = vpop.f32.mrb[0].mxu0
  %v4896 = vadd.f32 %v4831, %v4895
  %v4897 = vpop.f32.mrb[0].mxu0
  %v4898 = vpop.f32.mrb[0].mxu0
  %v4899 = vadd.f32 %v4834, %v4898
  %v4900 = vpop.f32.mrb[0].mxu0
  %4901 = vmatprep.mubr.bf16.mxu0 %v1595
  %4902 = vmatmul.mubr.bf16.gmra.mrb[0].mxu0 %v1594
  %v4903 = vpop.f32.mrb[0].mxu0
  %v4904 = vadd.f32 %v4839, %v4903
  %v4905 = vpop.f32.mrb[0].mxu0
  %v4906 = vpop.f32.mrb[0].mxu0
  %v4907 = vadd.f32 %v4842, %v4906
  %v4908 = vpop.f32.mrb[0].mxu0
  %4909 = vmatprep.mubr.bf16.mxu0 %v1642
  %4910 = vmatmul.mubr.bf16.gmra.mrb[0].mxu0 %v1641
  %v4911 = vpop.f32.mrb[0].mxu0
  %v4912 = vadd.f32 %v4847, %v4911
  %v4913 = vpop.f32.mrb[0].mxu0
  %v4914 = vpop.f32.mrb[0].mxu0
  %v4915 = vadd.f32 %v4850, %v4914
  %v4916 = vpop.f32.mrb[0].mxu0
  %4917 = vmatprep.mubr.bf16.mxu0 %v1689
  %4918 = vmatmul.mubr.bf16.gmra.mrb[0].mxu0 %v1688
  %v4919 = vpop.f32.mrb[0].mxu0
  %v4920 = vadd.f32 %v4855, %v4919
  %v4921 = vpop.f32.mrb[0].mxu0
  %v4922 = vpop.f32.mrb[0].mxu0
  %v4923 = vadd.f32 %v4858, %v4922
  %v4924 = vpop.f32.mrb[0].mxu0
  %4925 = vdwg.mxu0
  %4926 = vmatprep.subr.bf16.mxu0 0
  %4927 = vmatpush1.bf16.msra.mxu0 %v3575
  %4928 = vmatprep.subr.bf16.mxu0 0
  %4929 = vmatpush1.bf16.msra.mxu0 %v3576
  %4930 = vmatprep.subr.bf16.mxu0 0
  %4931 = vmatpush1.bf16.msra.mxu0 %v3577
  %4932 = vmatprep.subr.bf16.mxu0 0
  %4933 = vmatpush1.bf16.msra.mxu0 %v3578
  %4934 = vmatprep.subr.bf16.mxu0 0
  %4935 = vmatpush1.bf16.msra.mxu0 %v3579
  %4936 = vmatprep.subr.bf16.mxu0 0
  %4937 = vmatpush1.bf16.msra.mxu0 %v3580
  %4938 = vmatprep.subr.bf16.mxu0 0
  %4939 = vmatpush1.bf16.msra.mxu0 %v3581
  %4940 = vmatprep.subr.bf16.mxu0 0
  %4941 = vmatpush1.bf16.msra.mxu0 %v3582
  %4942 = vmatprep.subr.bf16.mxu0 0
  %4943 = vmatpush1.bf16.msra.mxu0 %v3583
  %4944 = vmatprep.subr.bf16.mxu0 0
  %4945 = vmatpush1.bf16.msra.mxu0 %v3584
  %4946 = vmatprep.subr.bf16.mxu0 0
  %4947 = vmatpush1.bf16.msra.mxu0 %v3585
  %4948 = vmatprep.subr.bf16.mxu0 0
  %4949 = vmatpush1.bf16.msra.mxu0 %v3586
  %4950 = vmatprep.subr.bf16.mxu0 0
  %4951 = vmatpush1.bf16.msra.mxu0 %v3587
  %4952 = vmatprep.subr.bf16.mxu0 0
  %4953 = vmatpush1.bf16.msra.mxu0 %v3588
  %4954 = vmatprep.subr.bf16.mxu0 0
  %4955 = vmatpush1.bf16.msra.mxu0 %v3589
  %4956 = vmatprep.subr.bf16.mxu0 0
  %4957 = vmatpush1.bf16.msra.mxu0 %v3590
  %4958 = vmatprep.mubr.bf16.mxu0 %v1550
  %4959 = vmatmul.mubr.bf16.gmra.mrb[0].mxu0 %v1549
  %v4960 = vpop.f32.mrb[0].mxu0
  %v4961 = vadd.f32 %v4896, %v4960
  %v4962 = vpop.f32.mrb[0].mxu0
  %v4963 = vpop.f32.mrb[0].mxu0
  %v4964 = vadd.f32 %v4899, %v4963
  %v4965 = vpop.f32.mrb[0].mxu0
  %4966 = vmatprep.mubr.bf16.mxu0 %v1597
  %4967 = vmatmul.mubr.bf16.gmra.mrb[0].mxu0 %v1596
  %v4968 = vpop.f32.mrb[0].mxu0
  %v4969 = vadd.f32 %v4904, %v4968
  %v4970 = vpop.f32.mrb[0].mxu0
  %v4971 = vpop.f32.mrb[0].mxu0
  %v4972 = vadd.f32 %v4907, %v4971
  %v4973 = vpop.f32.mrb[0].mxu0
  %4974 = vmatprep.mubr.bf16.mxu0 %v1644
  %4975 = vmatmul.mubr.bf16.gmra.mrb[0].mxu0 %v1643
  %v4976 = vpop.f32.mrb[0].mxu0
  %v4977 = vadd.f32 %v4912, %v4976
  %v4978 = vpop.f32.mrb[0].mxu0
  %v4979 = vpop.f32.mrb[0].mxu0
  %v4980 = vadd.f32 %v4915, %v4979
  %v4981 = vpop.f32.mrb[0].mxu0
  %4982 = vmatprep.mubr.bf16.mxu0 %v1691
  %4983 = vmatmul.mubr.bf16.gmra.mrb[0].mxu0 %v1690
  %v4984 = vpop.f32.mrb[0].mxu0
  %v4985 = vadd.f32 %v4920, %v4984
  %v4986 = vpop.f32.mrb[0].mxu0
  %v4987 = vpop.f32.mrb[0].mxu0
  %v4988 = vadd.f32 %v4923, %v4987
  %v4989 = vpop.f32.mrb[0].mxu0
  %4990 = vdwg.mxu0
  %4991 = vmatprep.subr.bf16.mxu0 0
  %4992 = vmatpush1.bf16.msra.mxu0 %v3591
  %4993 = vmatprep.subr.bf16.mxu0 0
  %4994 = vmatpush1.bf16.msra.mxu0 %v3592
  %4995 = vmatprep.subr.bf16.mxu0 0
  %4996 = vmatpush1.bf16.msra.mxu0 %v3593
  %4997 = vmatprep.subr.bf16.mxu0 0
  %4998 = vmatpush1.bf16.msra.mxu0 %v3594
  %4999 = vmatprep.subr.bf16.mxu0 0
  %5000 = vmatpush1.bf16.msra.mxu0 %v3595
  %5001 = vmatprep.subr.bf16.mxu0 0
  %5002 = vmatpush1.bf16.msra.mxu0 %v3596
  %5003 = vmatprep.subr.bf16.mxu0 0
  %5004 = vmatpush1.bf16.msra.mxu0 %v3597
  %5005 = vmatprep.subr.bf16.mxu0 0
  %5006 = vmatpush1.bf16.msra.mxu0 %v3598
  %5007 = vmatprep.subr.bf16.mxu0 0
  %5008 = vmatpush1.bf16.msra.mxu0 %v3599
  %5009 = vmatprep.subr.bf16.mxu0 0
  %5010 = vmatpush1.bf16.msra.mxu0 %v3600
  %5011 = vmatprep.subr.bf16.mxu0 0
  %5012 = vmatpush1.bf16.msra.mxu0 %v3601
  %5013 = vmatprep.subr.bf16.mxu0 0
  %5014 = vmatpush1.bf16.msra.mxu0 %v3602
  %5015 = vmatprep.subr.bf16.mxu0 0
  %5016 = vmatpush1.bf16.msra.mxu0 %v3603
  %5017 = vmatprep.subr.bf16.mxu0 0
  %5018 = vmatpush1.bf16.msra.mxu0 %v3604
  %5019 = vmatprep.subr.bf16.mxu0 0
  %5020 = vmatpush1.bf16.msra.mxu0 %v3605
  %5021 = vmatprep.subr.bf16.mxu0 0
  %5022 = vmatpush1.bf16.msra.mxu0 %v3606
  %5023 = vmatprep.mubr.bf16.mxu0 %v1552
  %5024 = vmatmul.mubr.bf16.gmra.mrb[0].mxu0 %v1551
  %v5025 = vpop.f32.mrb[0].mxu0
  %v5026 = vadd.f32 %v4961, %v5025
  %v5027 = vpop.f32.mrb[0].mxu0
  %v5028 = vpop.f32.mrb[0].mxu0
  %v5029 = vadd.f32 %v4964, %v5028
  %v5030 = vpop.f32.mrb[0].mxu0
  %5031 = vmatprep.mubr.bf16.mxu0 %v1599
  %5032 = vmatmul.mubr.bf16.gmra.mrb[0].mxu0 %v1598
  %v5033 = vpop.f32.mrb[0].mxu0
  %v5034 = vadd.f32 %v4969, %v5033
  %v5035 = vpop.f32.mrb[0].mxu0
  %v5036 = vpop.f32.mrb[0].mxu0
  %v5037 = vadd.f32 %v4972, %v5036
  %v5038 = vpop.f32.mrb[0].mxu0
  %5039 = vmatprep.mubr.bf16.mxu0 %v1646
  %5040 = vmatmul.mubr.bf16.gmra.mrb[0].mxu0 %v1645
  %v5041 = vpop.f32.mrb[0].mxu0
  %v5042 = vadd.f32 %v4977, %v5041
  %v5043 = vpop.f32.mrb[0].mxu0
  %v5044 = vpop.f32.mrb[0].mxu0
  %v5045 = vadd.f32 %v4980, %v5044
  %v5046 = vpop.f32.mrb[0].mxu0
  %5047 = vmatprep.mubr.bf16.mxu0 %v1693
  %5048 = vmatmul.mubr.bf16.gmra.mrb[0].mxu0 %v1692
  %v5049 = vpop.f32.mrb[0].mxu0
  %v5050 = vadd.f32 %v4985, %v5049
  %v5051 = vpop.f32.mrb[0].mxu0
  %v5052 = vpop.f32.mrb[0].mxu0
  %v5053 = vadd.f32 %v4988, %v5052
  %v5054 = vpop.f32.mrb[0].mxu0
  %5055 = vdwg.mxu0
  %5056 = vmatprep.subr.bf16.mxu0 0
  %5057 = vmatpush1.bf16.msra.mxu0 %v3607
  %5058 = vmatprep.subr.bf16.mxu0 0
  %5059 = vmatpush1.bf16.msra.mxu0 %v3608
  %5060 = vmatprep.subr.bf16.mxu0 0
  %5061 = vmatpush1.bf16.msra.mxu0 %v3609
  %5062 = vmatprep.subr.bf16.mxu0 0
  %5063 = vmatpush1.bf16.msra.mxu0 %v3610
  %5064 = vmatprep.subr.bf16.mxu0 0
  %5065 = vmatpush1.bf16.msra.mxu0 %v3611
  %5066 = vmatprep.subr.bf16.mxu0 0
  %5067 = vmatpush1.bf16.msra.mxu0 %v3612
  %5068 = vmatprep.subr.bf16.mxu0 0
  %5069 = vmatpush1.bf16.msra.mxu0 %v3613
  %5070 = vmatprep.subr.bf16.mxu0 0
  %5071 = vmatpush1.bf16.msra.mxu0 %v3614
  %5072 = vmatprep.subr.bf16.mxu0 0
  %5073 = vmatpush1.bf16.msra.mxu0 %v3615
  %5074 = vmatprep.subr.bf16.mxu0 0
  %5075 = vmatpush1.bf16.msra.mxu0 %v3616
  %5076 = vmatprep.subr.bf16.mxu0 0
  %5077 = vmatpush1.bf16.msra.mxu0 %v3617
  %5078 = vmatprep.subr.bf16.mxu0 0
  %5079 = vmatpush1.bf16.msra.mxu0 %v3618
  %5080 = vmatprep.subr.bf16.mxu0 0
  %5081 = vmatpush1.bf16.msra.mxu0 %v3619
  %5082 = vmatprep.subr.bf16.mxu0 0
  %5083 = vmatpush1.bf16.msra.mxu0 %v3620
  %5084 = vmatprep.subr.bf16.mxu0 0
  %5085 = vmatpush1.bf16.msra.mxu0 %v3621
  %5086 = vmatprep.subr.bf16.mxu0 0
  %5087 = vmatpush1.bf16.msra.mxu0 %v3622
  %5088 = vmatprep.mubr.bf16.mxu0 %v1554
  %5089 = vmatmul.mubr.bf16.gmra.mrb[0].mxu0 %v1553
  %v5090 = vpop.f32.mrb[0].mxu0
  %v5091 = vadd.f32 %v5026, %v5090
  %v5092 = vpop.f32.mrb[0].mxu0
  %v5093 = vpop.f32.mrb[0].mxu0
  %v5094 = vadd.f32 %v5029, %v5093
  %v5095 = vpop.f32.mrb[0].mxu0
  %5096 = vmatprep.mubr.bf16.mxu0 %v1601
  %5097 = vmatmul.mubr.bf16.gmra.mrb[0].mxu0 %v1600
  %v5098 = vpop.f32.mrb[0].mxu0
  %v5099 = vadd.f32 %v5034, %v5098
  %v5100 = vpop.f32.mrb[0].mxu0
  %v5101 = vpop.f32.mrb[0].mxu0
  %v5102 = vadd.f32 %v5037, %v5101
  %v5103 = vpop.f32.mrb[0].mxu0
  %5104 = vmatprep.mubr.bf16.mxu0 %v1648
  %5105 = vmatmul.mubr.bf16.gmra.mrb[0].mxu0 %v1647
  %v5106 = vpop.f32.mrb[0].mxu0
  %v5107 = vadd.f32 %v5042, %v5106
  %v5108 = vpop.f32.mrb[0].mxu0
  %v5109 = vpop.f32.mrb[0].mxu0
  %v5110 = vadd.f32 %v5045, %v5109
  %v5111 = vpop.f32.mrb[0].mxu0
  %5112 = vmatprep.mubr.bf16.mxu0 %v1695
  %5113 = vmatmul.mubr.bf16.gmra.mrb[0].mxu0 %v1694
  %v5114 = vpop.f32.mrb[0].mxu0
  %v5115 = vadd.f32 %v5050, %v5114
  %v5116 = vpop.f32.mrb[0].mxu0
  %v5117 = vpop.f32.mrb[0].mxu0
  %v5118 = vadd.f32 %v5053, %v5117
  %v5119 = vpop.f32.mrb[0].mxu0
  %5120 = vdwg.mxu0
  %5121 = vmatprep.subr.bf16.mxu0 0
  %5122 = vmatpush1.bf16.msra.mxu0 %v3623
  %5123 = vmatprep.subr.bf16.mxu0 0
  %5124 = vmatpush1.bf16.msra.mxu0 %v3624
  %5125 = vmatprep.subr.bf16.mxu0 0
  %5126 = vmatpush1.bf16.msra.mxu0 %v3625
  %5127 = vmatprep.subr.bf16.mxu0 0
  %5128 = vmatpush1.bf16.msra.mxu0 %v3626
  %5129 = vmatprep.subr.bf16.mxu0 0
  %5130 = vmatpush1.bf16.msra.mxu0 %v3627
  %5131 = vmatprep.subr.bf16.mxu0 0
  %5132 = vmatpush1.bf16.msra.mxu0 %v3628
  %5133 = vmatprep.subr.bf16.mxu0 0
  %5134 = vmatpush1.bf16.msra.mxu0 %v3629
  %5135 = vmatprep.subr.bf16.mxu0 0
  %5136 = vmatpush1.bf16.msra.mxu0 %v3630
  %5137 = vmatprep.subr.bf16.mxu0 0
  %5138 = vmatpush1.bf16.msra.mxu0 %v3631
  %5139 = vmatprep.subr.bf16.mxu0 0
  %5140 = vmatpush1.bf16.msra.mxu0 %v3632
  %5141 = vmatprep.subr.bf16.mxu0 0
  %5142 = vmatpush1.bf16.msra.mxu0 %v3633
  %5143 = vmatprep.subr.bf16.mxu0 0
  %5144 = vmatpush1.bf16.msra.mxu0 %v3634
  %5145 = vmatprep.subr.bf16.mxu0 0
  %5146 = vmatpush1.bf16.msra.mxu0 %v3635
  %5147 = vmatprep.subr.bf16.mxu0 0
  %5148 = vmatpush1.bf16.msra.mxu0 %v3636
  %5149 = vmatprep.subr.bf16.mxu0 0
  %5150 = vmatpush1.bf16.msra.mxu0 %v3637
  %5151 = vmatprep.subr.bf16.mxu0 0
  %5152 = vmatpush1.bf16.msra.mxu0 %v3638
  %5153 = vmatprep.mubr.bf16.mxu0 %v1556
  %5154 = vmatmul.mubr.bf16.gmra.mrb[0].mxu0 %v1555
  %v5155 = vpop.f32.mrb[0].mxu0
  %v5156 = vadd.f32 %v5091, %v5155
  %v5157 = vpop.f32.mrb[0].mxu0
  %v5158 = vpop.f32.mrb[0].mxu0
  %v5159 = vadd.f32 %v5094, %v5158
  %v5160 = vpop.f32.mrb[0].mxu0
  %5161 = vmatprep.mubr.bf16.mxu0 %v1603
  %5162 = vmatmul.mubr.bf16.gmra.mrb[0].mxu0 %v1602
  %v5163 = vpop.f32.mrb[0].mxu0
  %v5164 = vadd.f32 %v5099, %v5163
  %v5165 = vpop.f32.mrb[0].mxu0
  %v5166 = vpop.f32.mrb[0].mxu0
  %v5167 = vadd.f32 %v5102, %v5166
  %v5168 = vpop.f32.mrb[0].mxu0
  %5169 = vmatprep.mubr.bf16.mxu0 %v1650
  %5170 = vmatmul.mubr.bf16.gmra.mrb[0].mxu0 %v1649
  %v5171 = vpop.f32.mrb[0].mxu0
  %v5172 = vadd.f32 %v5107, %v5171
  %v5173 = vpop.f32.mrb[0].mxu0
  %v5174 = vpop.f32.mrb[0].mxu0
  %v5175 = vadd.f32 %v5110, %v5174
  %v5176 = vpop.f32.mrb[0].mxu0
  %5177 = vmatprep.mubr.bf16.mxu0 %v1697
  %5178 = vmatmul.mubr.bf16.gmra.mrb[0].mxu0 %v1696
  %v5179 = vpop.f32.mrb[0].mxu0
  %v5180 = vadd.f32 %v5115, %v5179
  %v5181 = vpop.f32.mrb[0].mxu0
  %v5182 = vpop.f32.mrb[0].mxu0
  %v5183 = vadd.f32 %v5118, %v5182
  %v5184 = vpop.f32.mrb[0].mxu0
  %5185 = vdwg.mxu0
  %5186 = vmatprep.subr.bf16.mxu0 0
  %5187 = vmatpush1.bf16.msra.mxu0 %v3639
  %5188 = vmatprep.subr.bf16.mxu0 0
  %5189 = vmatpush1.bf16.msra.mxu0 %v3640
  %5190 = vmatprep.subr.bf16.mxu0 0
  %5191 = vmatpush1.bf16.msra.mxu0 %v3641
  %5192 = vmatprep.subr.bf16.mxu0 0
  %5193 = vmatpush1.bf16.msra.mxu0 %v3642
  %5194 = vmatprep.subr.bf16.mxu0 0
  %5195 = vmatpush1.bf16.msra.mxu0 %v3643
  %5196 = vmatprep.subr.bf16.mxu0 0
  %5197 = vmatpush1.bf16.msra.mxu0 %v3644
  %5198 = vmatprep.subr.bf16.mxu0 0
  %5199 = vmatpush1.bf16.msra.mxu0 %v3645
  %5200 = vmatprep.subr.bf16.mxu0 0
  %5201 = vmatpush1.bf16.msra.mxu0 %v3646
  %5202 = vmatprep.subr.bf16.mxu0 0
  %5203 = vmatpush1.bf16.msra.mxu0 %v3647
  %5204 = vmatprep.subr.bf16.mxu0 0
  %5205 = vmatpush1.bf16.msra.mxu0 %v3648
  %5206 = vmatprep.subr.bf16.mxu0 0
  %5207 = vmatpush1.bf16.msra.mxu0 %v3649
  %5208 = vmatprep.subr.bf16.mxu0 0
  %5209 = vmatpush1.bf16.msra.mxu0 %v3650
  %5210 = vmatprep.subr.bf16.mxu0 0
  %5211 = vmatpush1.bf16.msra.mxu0 %v3651
  %5212 = vmatprep.subr.bf16.mxu0 0
  %5213 = vmatpush1.bf16.msra.mxu0 %v3652
  %5214 = vmatprep.subr.bf16.mxu0 0
  %5215 = vmatpush1.bf16.msra.mxu0 %v3653
  %5216 = vmatprep.subr.bf16.mxu0 0
  %5217 = vmatpush1.bf16.msra.mxu0 %v3654
  %5218 = vmatprep.mubr.bf16.mxu0 %v1558
  %5219 = vmatmul.mubr.bf16.gmra.mrb[0].mxu0 %v1557
  %v5220 = vpop.f32.mrb[0].mxu0
  %v5221 = vadd.f32 %v5156, %v5220
  %v5222 = vpop.f32.mrb[0].mxu0
  %v5223 = vpop.f32.mrb[0].mxu0
  %v5224 = vadd.f32 %v5159, %v5223
  %v5225 = vpop.f32.mrb[0].mxu0
  %5226 = vmatprep.mubr.bf16.mxu0 %v1605
  %5227 = vmatmul.mubr.bf16.gmra.mrb[0].mxu0 %v1604
  %v5228 = vpop.f32.mrb[0].mxu0
  %v5229 = vadd.f32 %v5164, %v5228
  %v5230 = vpop.f32.mrb[0].mxu0
  %v5231 = vpop.f32.mrb[0].mxu0
  %v5232 = vadd.f32 %v5167, %v5231
  %v5233 = vpop.f32.mrb[0].mxu0
  %5234 = vmatprep.mubr.bf16.mxu0 %v1652
  %5235 = vmatmul.mubr.bf16.gmra.mrb[0].mxu0 %v1651
  %v5236 = vpop.f32.mrb[0].mxu0
  %v5237 = vadd.f32 %v5172, %v5236
  %v5238 = vpop.f32.mrb[0].mxu0
  %v5239 = vpop.f32.mrb[0].mxu0
  %v5240 = vadd.f32 %v5175, %v5239
  %v5241 = vpop.f32.mrb[0].mxu0
  %5242 = vmatprep.mubr.bf16.mxu0 %v1699
  %5243 = vmatmul.mubr.bf16.gmra.mrb[0].mxu0 %v1698
  %v5244 = vpop.f32.mrb[0].mxu0
  %v5245 = vadd.f32 %v5180, %v5244
  %v5246 = vpop.f32.mrb[0].mxu0
  %v5247 = vpop.f32.mrb[0].mxu0
  %v5248 = vadd.f32 %v5183, %v5247
  %v5249 = vpop.f32.mrb[0].mxu0
  %5250 = vdwg.mxu0
  %5251 = vmatprep.subr.bf16.mxu0 0
  %5252 = vmatpush1.bf16.msra.mxu0 %v3655
  %5253 = vmatprep.subr.bf16.mxu0 0
  %5254 = vmatpush1.bf16.msra.mxu0 %v3656
  %5255 = vmatprep.subr.bf16.mxu0 0
  %5256 = vmatpush1.bf16.msra.mxu0 %v3657
  %5257 = vmatprep.subr.bf16.mxu0 0
  %5258 = vmatpush1.bf16.msra.mxu0 %v3658
  %5259 = vmatprep.subr.bf16.mxu0 0
  %5260 = vmatpush1.bf16.msra.mxu0 %v3659
  %5261 = vmatprep.subr.bf16.mxu0 0
  %5262 = vmatpush1.bf16.msra.mxu0 %v3660
  %5263 = vmatprep.subr.bf16.mxu0 0
  %5264 = vmatpush1.bf16.msra.mxu0 %v3661
  %5265 = vmatprep.subr.bf16.mxu0 0
  %5266 = vmatpush1.bf16.msra.mxu0 %v3662
  %5267 = vmatprep.subr.bf16.mxu0 0
  %5268 = vmatpush1.bf16.msra.mxu0 %v3663
  %5269 = vmatprep.subr.bf16.mxu0 0
  %5270 = vmatpush1.bf16.msra.mxu0 %v3664
  %5271 = vmatprep.subr.bf16.mxu0 0
  %5272 = vmatpush1.bf16.msra.mxu0 %v3665
  %5273 = vmatprep.subr.bf16.mxu0 0
  %5274 = vmatpush1.bf16.msra.mxu0 %v3666
  %5275 = vmatprep.subr.bf16.mxu0 0
  %5276 = vmatpush1.bf16.msra.mxu0 %v3667
  %5277 = vmatprep.subr.bf16.mxu0 0
  %5278 = vmatpush1.bf16.msra.mxu0 %v3668
  %5279 = vmatprep.subr.bf16.mxu0 0
  %5280 = vmatpush1.bf16.msra.mxu0 %v3669
  %5281 = vmatprep.subr.bf16.mxu0 0
  %5282 = vmatpush1.bf16.msra.mxu0 %v3670
  %5283 = vmatprep.mubr.bf16.mxu0 %v1560
  %5284 = vmatmul.mubr.bf16.gmra.mrb[0].mxu0 %v1559
  %v5285 = vpop.f32.mrb[0].mxu0
  %v5286 = vadd.f32 %v5221, %v5285
  %v5287 = vpop.f32.mrb[0].mxu0
  %v5288 = vpop.f32.mrb[0].mxu0
  %v5289 = vadd.f32 %v5224, %v5288
  %v5290 = vpop.f32.mrb[0].mxu0
  %5291 = vmatprep.mubr.bf16.mxu0 %v1607
  %5292 = vmatmul.mubr.bf16.gmra.mrb[0].mxu0 %v1606
  %v5293 = vpop.f32.mrb[0].mxu0
  %v5294 = vadd.f32 %v5229, %v5293
  %v5295 = vpop.f32.mrb[0].mxu0
  %v5296 = vpop.f32.mrb[0].mxu0
  %v5297 = vadd.f32 %v5232, %v5296
  %v5298 = vpop.f32.mrb[0].mxu0
  %5299 = vmatprep.mubr.bf16.mxu0 %v1654
  %5300 = vmatmul.mubr.bf16.gmra.mrb[0].mxu0 %v1653
  %v5301 = vpop.f32.mrb[0].mxu0
  %v5302 = vadd.f32 %v5237, %v5301
  %v5303 = vpop.f32.mrb[0].mxu0
  %v5304 = vpop.f32.mrb[0].mxu0
  %v5305 = vadd.f32 %v5240, %v5304
  %v5306 = vpop.f32.mrb[0].mxu0
  %5307 = vmatprep.mubr.bf16.mxu0 %v1701
  %5308 = vmatmul.mubr.bf16.gmra.mrb[0].mxu0 %v1700
  %v5309 = vpop.f32.mrb[0].mxu0
  %v5310 = vadd.f32 %v5245, %v5309
  %v5311 = vpop.f32.mrb[0].mxu0
  %v5312 = vpop.f32.mrb[0].mxu0
  %v5313 = vadd.f32 %v5248, %v5312
  %v5314 = vpop.f32.mrb[0].mxu0
  %5315 = vdwg.mxu0
  %5316 = vmatprep.subr.bf16.mxu0 0
  %5317 = vmatpush1.bf16.msra.mxu0 %v3671
  %5318 = vmatprep.subr.bf16.mxu0 0
  %5319 = vmatpush1.bf16.msra.mxu0 %v3672
  %5320 = vmatprep.subr.bf16.mxu0 0
  %5321 = vmatpush1.bf16.msra.mxu0 %v3673
  %5322 = vmatprep.subr.bf16.mxu0 0
  %5323 = vmatpush1.bf16.msra.mxu0 %v3674
  %5324 = vmatprep.subr.bf16.mxu0 0
  %5325 = vmatpush1.bf16.msra.mxu0 %v3675
  %5326 = vmatprep.subr.bf16.mxu0 0
  %5327 = vmatpush1.bf16.msra.mxu0 %v3676
  %5328 = vmatprep.subr.bf16.mxu0 0
  %5329 = vmatpush1.bf16.msra.mxu0 %v3677
  %5330 = vmatprep.subr.bf16.mxu0 0
  %5331 = vmatpush1.bf16.msra.mxu0 %v3678
  %5332 = vmatprep.subr.bf16.mxu0 0
  %5333 = vmatpush1.bf16.msra.mxu0 %v3679
  %5334 = vmatprep.subr.bf16.mxu0 0
  %5335 = vmatpush1.bf16.msra.mxu0 %v3680
  %5336 = vmatprep.subr.bf16.mxu0 0
  %5337 = vmatpush1.bf16.msra.mxu0 %v3681
  %5338 = vmatprep.subr.bf16.mxu0 0
  %5339 = vmatpush1.bf16.msra.mxu0 %v3682
  %5340 = vmatprep.subr.bf16.mxu0 0
  %5341 = vmatpush1.bf16.msra.mxu0 %v3683
  %5342 = vmatprep.subr.bf16.mxu0 0
  %5343 = vmatpush1.bf16.msra.mxu0 %v3684
  %5344 = vmatprep.subr.bf16.mxu0 0
  %5345 = vmatpush1.bf16.msra.mxu0 %v3685
  %5346 = vmatprep.subr.bf16.mxu0 0
  %5347 = vmatpush1.bf16.msra.mxu0 %v3686
  %5348 = vmatprep.mubr.bf16.mxu0 %v1562
  %5349 = vmatmul.mubr.bf16.gmra.mrb[0].mxu0 %v1561
  %v5350 = vpop.f32.mrb[0].mxu0
  %v5351 = vadd.f32 %v5286, %v5350
  %v5352 = vpop.f32.mrb[0].mxu0
  %v5353 = vpop.f32.mrb[0].mxu0
  %v5354 = vadd.f32 %v5289, %v5353
  %v5355 = vpop.f32.mrb[0].mxu0
  %5356 = vmatprep.mubr.bf16.mxu0 %v1609
  %5357 = vmatmul.mubr.bf16.gmra.mrb[0].mxu0 %v1608
  %v5358 = vpop.f32.mrb[0].mxu0
  %v5359 = vadd.f32 %v5294, %v5358
  %v5360 = vpop.f32.mrb[0].mxu0
  %v5361 = vpop.f32.mrb[0].mxu0
  %v5362 = vadd.f32 %v5297, %v5361
  %v5363 = vpop.f32.mrb[0].mxu0
  %5364 = vmatprep.mubr.bf16.mxu0 %v1656
  %5365 = vmatmul.mubr.bf16.gmra.mrb[0].mxu0 %v1655
  %v5366 = vpop.f32.mrb[0].mxu0
  %v5367 = vadd.f32 %v5302, %v5366
  %v5368 = vpop.f32.mrb[0].mxu0
  %v5369 = vpop.f32.mrb[0].mxu0
  %v5370 = vadd.f32 %v5305, %v5369
  %v5371 = vpop.f32.mrb[0].mxu0
  %5372 = vmatprep.mubr.bf16.mxu0 %v1703
  %5373 = vmatmul.mubr.bf16.gmra.mrb[0].mxu0 %v1702
  %v5374 = vpop.f32.mrb[0].mxu0
  %v5375 = vadd.f32 %v5310, %v5374
  %v5376 = vpop.f32.mrb[0].mxu0
  %v5377 = vpop.f32.mrb[0].mxu0
  %v5378 = vadd.f32 %v5313, %v5377
  %v5379 = vpop.f32.mrb[0].mxu0
  %5380 = vdwg.mxu0
  %5381 = vmatprep.subr.bf16.mxu0 0
  %5382 = vmatpush1.bf16.msra.mxu0 %v3687
  %5383 = vmatprep.subr.bf16.mxu0 0
  %5384 = vmatpush1.bf16.msra.mxu0 %v3688
  %5385 = vmatprep.subr.bf16.mxu0 0
  %5386 = vmatpush1.bf16.msra.mxu0 %v3689
  %5387 = vmatprep.subr.bf16.mxu0 0
  %5388 = vmatpush1.bf16.msra.mxu0 %v3690
  %5389 = vmatprep.subr.bf16.mxu0 0
  %5390 = vmatpush1.bf16.msra.mxu0 %v3691
  %5391 = vmatprep.subr.bf16.mxu0 0
  %5392 = vmatpush1.bf16.msra.mxu0 %v3692
  %5393 = vmatprep.subr.bf16.mxu0 0
  %5394 = vmatpush1.bf16.msra.mxu0 %v3693
  %5395 = vmatprep.subr.bf16.mxu0 0
  %5396 = vmatpush1.bf16.msra.mxu0 %v3694
  %5397 = vmatprep.subr.bf16.mxu0 0
  %5398 = vmatpush1.bf16.msra.mxu0 %v3695
  %5399 = vmatprep.subr.bf16.mxu0 0
  %5400 = vmatpush1.bf16.msra.mxu0 %v3696
  %5401 = vmatprep.subr.bf16.mxu0 0
  %5402 = vmatpush1.bf16.msra.mxu0 %v3697
  %5403 = vmatprep.subr.bf16.mxu0 0
  %5404 = vmatpush1.bf16.msra.mxu0 %v3698
  %5405 = vmatprep.subr.bf16.mxu0 0
  %5406 = vmatpush1.bf16.msra.mxu0 %v3699
  %5407 = vmatprep.subr.bf16.mxu0 0
  %5408 = vmatpush1.bf16.msra.mxu0 %v3700
  %5409 = vmatprep.subr.bf16.mxu0 0
  %5410 = vmatpush1.bf16.msra.mxu0 %v3701
  %5411 = vmatprep.subr.bf16.mxu0 0
  %5412 = vmatpush1.bf16.msra.mxu0 %v3702
  %5413 = vmatprep.mubr.bf16.mxu0 %v1564
  %5414 = vmatmul.mubr.bf16.gmra.mrb[0].mxu0 %v1563
  %v5415 = vpop.f32.mrb[0].mxu0
  %v5416 = vadd.f32 %v5351, %v5415
  %v5417 = vpop.f32.mrb[0].mxu0
  %v5418 = vpop.f32.mrb[0].mxu0
  %v5419 = vadd.f32 %v5354, %v5418
  %v5420 = vpop.f32.mrb[0].mxu0
  %5421 = vmatprep.mubr.bf16.mxu0 %v1611
  %5422 = vmatmul.mubr.bf16.gmra.mrb[0].mxu0 %v1610
  %v5423 = vpop.f32.mrb[0].mxu0
  %v5424 = vadd.f32 %v5359, %v5423
  %v5425 = vpop.f32.mrb[0].mxu0
  %v5426 = vpop.f32.mrb[0].mxu0
  %v5427 = vadd.f32 %v5362, %v5426
  %v5428 = vpop.f32.mrb[0].mxu0
  %5429 = vmatprep.mubr.bf16.mxu0 %v1658
  %5430 = vmatmul.mubr.bf16.gmra.mrb[0].mxu0 %v1657
  %v5431 = vpop.f32.mrb[0].mxu0
  %v5432 = vadd.f32 %v5367, %v5431
  %v5433 = vpop.f32.mrb[0].mxu0
  %v5434 = vpop.f32.mrb[0].mxu0
  %v5435 = vadd.f32 %v5370, %v5434
  %v5436 = vpop.f32.mrb[0].mxu0
  %5437 = vmatprep.mubr.bf16.mxu0 %v1705
  %5438 = vmatmul.mubr.bf16.gmra.mrb[0].mxu0 %v1704
  %v5439 = vpop.f32.mrb[0].mxu0
  %v5440 = vadd.f32 %v5375, %v5439
  %v5441 = vpop.f32.mrb[0].mxu0
  %v5442 = vpop.f32.mrb[0].mxu0
  %v5443 = vadd.f32 %v5378, %v5442
  %v5444 = vpop.f32.mrb[0].mxu0
  %5445 = vdwg.mxu0
  %5446 = vmatprep.subr.bf16.mxu0 0
  %5447 = vmatpush1.bf16.msra.mxu0 %v3703
  %5448 = vmatprep.subr.bf16.mxu0 0
  %5449 = vmatpush1.bf16.msra.mxu0 %v3704
  %5450 = vmatprep.subr.bf16.mxu0 0
  %5451 = vmatpush1.bf16.msra.mxu0 %v3705
  %5452 = vmatprep.subr.bf16.mxu0 0
  %5453 = vmatpush1.bf16.msra.mxu0 %v3706
  %5454 = vmatprep.subr.bf16.mxu0 0
  %5455 = vmatpush1.bf16.msra.mxu0 %v3707
  %5456 = vmatprep.subr.bf16.mxu0 0
  %5457 = vmatpush1.bf16.msra.mxu0 %v3708
  %5458 = vmatprep.subr.bf16.mxu0 0
  %5459 = vmatpush1.bf16.msra.mxu0 %v3709
  %5460 = vmatprep.subr.bf16.mxu0 0
  %5461 = vmatpush1.bf16.msra.mxu0 %v3710
  %5462 = vmatprep.subr.bf16.mxu0 0
  %5463 = vmatpush1.bf16.msra.mxu0 %v3711
  %5464 = vmatprep.subr.bf16.mxu0 0
  %5465 = vmatpush1.bf16.msra.mxu0 %v3712
  %5466 = vmatprep.subr.bf16.mxu0 0
  %5467 = vmatpush1.bf16.msra.mxu0 %v3713
  %5468 = vmatprep.subr.bf16.mxu0 0
  %5469 = vmatpush1.bf16.msra.mxu0 %v3714
  %5470 = vmatprep.subr.bf16.mxu0 0
  %5471 = vmatpush1.bf16.msra.mxu0 %v3715
  %5472 = vmatprep.subr.bf16.mxu0 0
  %5473 = vmatpush1.bf16.msra.mxu0 %v3716
  %5474 = vmatprep.subr.bf16.mxu0 0
  %5475 = vmatpush1.bf16.msra.mxu0 %v3717
  %5476 = vmatprep.subr.bf16.mxu0 0
  %5477 = vmatpush1.bf16.msra.mxu0 %v3718
  %5478 = vmatprep.mubr.bf16.mxu0 %v1566
  %5479 = vmatmul.mubr.bf16.gmra.mrb[0].mxu0 %v1565
  %v5480 = vpop.f32.mrb[0].mxu0
  %v5481 = vadd.f32 %v5416, %v5480
  %v5482 = vpop.f32.mrb[0].mxu0
  %v5483 = vpop.f32.mrb[0].mxu0
  %v5484 = vadd.f32 %v5419, %v5483
  %v5485 = vpop.f32.mrb[0].mxu0
  %5486 = vmatprep.mubr.bf16.mxu0 %v1613
  %5487 = vmatmul.mubr.bf16.gmra.mrb[0].mxu0 %v1612
  %v5488 = vpop.f32.mrb[0].mxu0
  %v5489 = vadd.f32 %v5424, %v5488
  %v5490 = vpop.f32.mrb[0].mxu0
  %v5491 = vpop.f32.mrb[0].mxu0
  %v5492 = vadd.f32 %v5427, %v5491
  %v5493 = vpop.f32.mrb[0].mxu0
  %5494 = vmatprep.mubr.bf16.mxu0 %v1660
  %5495 = vmatmul.mubr.bf16.gmra.mrb[0].mxu0 %v1659
  %v5496 = vpop.f32.mrb[0].mxu0
  %v5497 = vadd.f32 %v5432, %v5496
  %v5498 = vpop.f32.mrb[0].mxu0
  %v5499 = vpop.f32.mrb[0].mxu0
  %v5500 = vadd.f32 %v5435, %v5499
  %v5501 = vpop.f32.mrb[0].mxu0
  %5502 = vmatprep.mubr.bf16.mxu0 %v1707
  %5503 = vmatmul.mubr.bf16.gmra.mrb[0].mxu0 %v1706
  %v5504 = vpop.f32.mrb[0].mxu0
  %v5505 = vadd.f32 %v5440, %v5504
  %v5506 = vpop.f32.mrb[0].mxu0
  %v5507 = vpop.f32.mrb[0].mxu0
  %v5508 = vadd.f32 %v5443, %v5507
  %v5509 = vpop.f32.mrb[0].mxu0
  %5510 = vdwg.mxu0
  %5511 = vmatprep.subr.bf16.mxu0 0
  %5512 = vmatpush1.bf16.msra.mxu0 %v3719
  %5513 = vmatprep.subr.bf16.mxu0 0
  %5514 = vmatpush1.bf16.msra.mxu0 %v3720
  %5515 = vmatprep.subr.bf16.mxu0 0
  %5516 = vmatpush1.bf16.msra.mxu0 %v3721
  %5517 = vmatprep.subr.bf16.mxu0 0
  %5518 = vmatpush1.bf16.msra.mxu0 %v3722
  %5519 = vmatprep.subr.bf16.mxu0 0
  %5520 = vmatpush1.bf16.msra.mxu0 %v3723
  %5521 = vmatprep.subr.bf16.mxu0 0
  %5522 = vmatpush1.bf16.msra.mxu0 %v3724
  %5523 = vmatprep.subr.bf16.mxu0 0
  %5524 = vmatpush1.bf16.msra.mxu0 %v3725
  %5525 = vmatprep.subr.bf16.mxu0 0
  %5526 = vmatpush1.bf16.msra.mxu0 %v3726
  %5527 = vmatprep.subr.bf16.mxu0 0
  %5528 = vmatpush1.bf16.msra.mxu0 %v3727
  %5529 = vmatprep.subr.bf16.mxu0 0
  %5530 = vmatpush1.bf16.msra.mxu0 %v3728
  %5531 = vmatprep.subr.bf16.mxu0 0
  %5532 = vmatpush1.bf16.msra.mxu0 %v3729
  %5533 = vmatprep.subr.bf16.mxu0 0
  %5534 = vmatpush1.bf16.msra.mxu0 %v3730
  %5535 = vmatprep.subr.bf16.mxu0 0
  %5536 = vmatpush1.bf16.msra.mxu0 %v3731
  %5537 = vmatprep.subr.bf16.mxu0 0
  %5538 = vmatpush1.bf16.msra.mxu0 %v3732
  %5539 = vmatprep.subr.bf16.mxu0 0
  %5540 = vmatpush1.bf16.msra.mxu0 %v3733
  %5541 = vmatprep.subr.bf16.mxu0 0
  %5542 = vmatpush1.bf16.msra.mxu0 %v3734
  %5543 = vmatprep.mubr.bf16.mxu0 %v1568
  %5544 = vmatmul.mubr.bf16.gmra.mrb[0].mxu0 %v1567
  %v5545 = vpop.f32.mrb[0].mxu0
  %v5546 = vadd.f32 %v5481, %v5545
  %v5547 = vpop.f32.mrb[0].mxu0
  %v5548 = vpop.f32.mrb[0].mxu0
  %v5549 = vadd.f32 %v5484, %v5548
  %v5550 = vpop.f32.mrb[0].mxu0
  %5551 = vmatprep.mubr.bf16.mxu0 %v1615
  %5552 = vmatmul.mubr.bf16.gmra.mrb[0].mxu0 %v1614
  %v5553 = vpop.f32.mrb[0].mxu0
  %v5554 = vadd.f32 %v5489, %v5553
  %v5555 = vpop.f32.mrb[0].mxu0
  %v5556 = vpop.f32.mrb[0].mxu0
  %v5557 = vadd.f32 %v5492, %v5556
  %v5558 = vpop.f32.mrb[0].mxu0
  %5559 = vmatprep.mubr.bf16.mxu0 %v1662
  %5560 = vmatmul.mubr.bf16.gmra.mrb[0].mxu0 %v1661
  %v5561 = vpop.f32.mrb[0].mxu0
  %v5562 = vadd.f32 %v5497, %v5561
  %v5563 = vpop.f32.mrb[0].mxu0
  %v5564 = vpop.f32.mrb[0].mxu0
  %v5565 = vadd.f32 %v5500, %v5564
  %v5566 = vpop.f32.mrb[0].mxu0
  %5567 = vmatprep.mubr.bf16.mxu0 %v1709
  %5568 = vmatmul.mubr.bf16.gmra.mrb[0].mxu0 %v1708
  %v5569 = vpop.f32.mrb[0].mxu0
  %v5570 = vadd.f32 %v5505, %v5569
  %v5571 = vpop.f32.mrb[0].mxu0
  %v5572 = vpop.f32.mrb[0].mxu0
  %v5573 = vadd.f32 %v5508, %v5572
  %v5574 = vpop.f32.mrb[0].mxu0
  %5575 = vdwg.mxu0
  %5576 = vmatprep.subr.bf16.mxu0 0
  %5577 = vmatpush1.bf16.msra.mxu0 %v3735
  %5578 = vmatprep.subr.bf16.mxu0 0
  %5579 = vmatpush1.bf16.msra.mxu0 %v3736
  %5580 = vmatprep.subr.bf16.mxu0 0
  %5581 = vmatpush1.bf16.msra.mxu0 %v3737
  %5582 = vmatprep.subr.bf16.mxu0 0
  %5583 = vmatpush1.bf16.msra.mxu0 %v3738
  %5584 = vmatprep.subr.bf16.mxu0 0
  %5585 = vmatpush1.bf16.msra.mxu0 %v3739
  %5586 = vmatprep.subr.bf16.mxu0 0
  %5587 = vmatpush1.bf16.msra.mxu0 %v3740
  %5588 = vmatprep.subr.bf16.mxu0 0
  %5589 = vmatpush1.bf16.msra.mxu0 %v3741
  %5590 = vmatprep.subr.bf16.mxu0 0
  %5591 = vmatpush1.bf16.msra.mxu0 %v3742
  %5592 = vmatprep.subr.bf16.mxu0 0
  %5593 = vmatpush1.bf16.msra.mxu0 %v3743
  %5594 = vmatprep.subr.bf16.mxu0 0
  %5595 = vmatpush1.bf16.msra.mxu0 %v3744
  %5596 = vmatprep.subr.bf16.mxu0 0
  %5597 = vmatpush1.bf16.msra.mxu0 %v3745
  %5598 = vmatprep.subr.bf16.mxu0 0
  %5599 = vmatpush1.bf16.msra.mxu0 %v3746
  %5600 = vmatprep.subr.bf16.mxu0 0
  %5601 = vmatpush1.bf16.msra.mxu0 %v3747
  %5602 = vmatprep.subr.bf16.mxu0 0
  %5603 = vmatpush1.bf16.msra.mxu0 %v3748
  %5604 = vmatprep.subr.bf16.mxu0 0
  %5605 = vmatpush1.bf16.msra.mxu0 %v3749
  %5606 = vmatprep.subr.bf16.mxu0 0
  %5607 = vmatpush1.bf16.msra.mxu0 %v3750
  %5608 = vmatprep.mubr.bf16.mxu0 %v1570
  %5609 = vmatmul.mubr.bf16.gmra.mrb[0].mxu0 %v1569
  %v5610 = vpop.f32.mrb[0].mxu0
  %v5611 = vadd.f32 %v5546, %v5610
  %v5612 = vpop.f32.mrb[0].mxu0
  %v5613 = vpop.f32.mrb[0].mxu0
  %v5614 = vadd.f32 %v5549, %v5613
  %v5615 = vpop.f32.mrb[0].mxu0
  %5616 = vmatprep.mubr.bf16.mxu0 %v1617
  %5617 = vmatmul.mubr.bf16.gmra.mrb[0].mxu0 %v1616
  %v5618 = vpop.f32.mrb[0].mxu0
  %v5619 = vadd.f32 %v5554, %v5618
  %v5620 = vpop.f32.mrb[0].mxu0
  %v5621 = vpop.f32.mrb[0].mxu0
  %v5622 = vadd.f32 %v5557, %v5621
  %v5623 = vpop.f32.mrb[0].mxu0
  %5624 = vmatprep.mubr.bf16.mxu0 %v1664
  %5625 = vmatmul.mubr.bf16.gmra.mrb[0].mxu0 %v1663
  %v5626 = vpop.f32.mrb[0].mxu0
  %v5627 = vadd.f32 %v5562, %v5626
  %v5628 = vpop.f32.mrb[0].mxu0
  %v5629 = vpop.f32.mrb[0].mxu0
  %v5630 = vadd.f32 %v5565, %v5629
  %v5631 = vpop.f32.mrb[0].mxu0
  %5632 = vmatprep.mubr.bf16.mxu0 %v1711
  %5633 = vmatmul.mubr.bf16.gmra.mrb[0].mxu0 %v1710
  %v5634 = vpop.f32.mrb[0].mxu0
  %v5635 = vadd.f32 %v5570, %v5634
  %v5636 = vpop.f32.mrb[0].mxu0
  %v5637 = vpop.f32.mrb[0].mxu0
  %v5638 = vadd.f32 %v5573, %v5637
  %v5639 = vpop.f32.mrb[0].mxu0
  %5640 = vdwg.mxu0
  %5641 = vmatprep.subr.bf16.mxu0 0
  %5642 = vmatpush1.bf16.msra.mxu0 %v3751
  %5643 = vmatprep.subr.bf16.mxu0 0
  %5644 = vmatpush1.bf16.msra.mxu0 %v3752
  %5645 = vmatprep.subr.bf16.mxu0 0
  %5646 = vmatpush1.bf16.msra.mxu0 %v3753
  %5647 = vmatprep.subr.bf16.mxu0 0
  %5648 = vmatpush1.bf16.msra.mxu0 %v4144
  %5649 = vmatprep.subr.bf16.mxu0 0
  %5650 = vmatpush1.bf16.msra.mxu0 0
  %5651 = vmatprep.subr.bf16.mxu0 0
  %5652 = vmatpush1.bf16.msra.mxu0 0
  %5653 = vmatprep.subr.bf16.mxu0 0
  %5654 = vmatpush1.bf16.msra.mxu0 0
  %5655 = vmatprep.subr.bf16.mxu0 0
  %5656 = vmatpush1.bf16.msra.mxu0 0
  %5657 = vmatprep.subr.bf16.mxu0 0
  %5658 = vmatpush1.bf16.msra.mxu0 0
  %5659 = vmatprep.subr.bf16.mxu0 0
  %5660 = vmatpush1.bf16.msra.mxu0 0
  %5661 = vmatprep.subr.bf16.mxu0 0
  %5662 = vmatpush1.bf16.msra.mxu0 0
  %5663 = vmatprep.subr.bf16.mxu0 0
  %5664 = vmatpush1.bf16.msra.mxu0 0
  %5665 = vmatprep.subr.bf16.mxu0 0
  %5666 = vmatpush1.bf16.msra.mxu0 0
  %5667 = vmatprep.subr.bf16.mxu0 0
  %5668 = vmatpush1.bf16.msra.mxu0 0
  %5669 = vmatprep.subr.bf16.mxu0 0
  %5670 = vmatpush1.bf16.msra.mxu0 0
  %5671 = vmatprep.subr.bf16.mxu0 0
  %5672 = vmatpush1.bf16.msra.mxu0 0
  %5673 = vmatprep.mubr.bf16.mxu0 0
  %5674 = vmatmul.mubr.bf16.gmra.mrb[0].mxu0 %v4128
  %v5675 = vpop.f32.mrb[0].mxu0
  %v5676 = vadd.f32 %v5611, %v5675
  %v5677 = vpop.f32.mrb[0].mxu0
  %v5678 = vpop.f32.mrb[0].mxu0
  %v5679 = vadd.f32 %v5614, %v5678
  %v5680 = vpop.f32.mrb[0].mxu0
  %5681 = vmatprep.mubr.bf16.mxu0 0
  %5682 = vmatmul.mubr.bf16.gmra.mrb[0].mxu0 %v4131
  %v5683 = vpop.f32.mrb[0].mxu0
  %v5684 = vadd.f32 %v5619, %v5683
  %v5685 = vpop.f32.mrb[0].mxu0
  %v5686 = vpop.f32.mrb[0].mxu0
  %v5687 = vadd.f32 %v5622, %v5686
  %v5688 = vpop.f32.mrb[0].mxu0
  %5689 = vmatprep.mubr.bf16.mxu0 0
  %5690 = vmatmul.mubr.bf16.gmra.mrb[0].mxu0 %v4134
  %v5691 = vpop.f32.mrb[0].mxu0
  %v5692 = vadd.f32 %v5627, %v5691
  %v5693 = vpop.f32.mrb[0].mxu0
  %v5694 = vpop.f32.mrb[0].mxu0
  %v5695 = vadd.f32 %v5630, %v5694
  %v5696 = vpop.f32.mrb[0].mxu0
  %5697 = vmatprep.mubr.bf16.mxu0 0
  %5698 = vmatmul.mubr.bf16.gmra.mrb[0].mxu0 %v4137
  %v5699 = vpop.f32.mrb[0].mxu0
  %v5700 = vadd.f32 %v5635, %v5699
  %v5701 = vpop.f32.mrb[0].mxu0
  %v5702 = vpop.f32.mrb[0].mxu0
  %v5703 = vadd.f32 %v5638, %v5702
  %v5704 = vpop.f32.mrb[0].mxu0
  %5705 = vdwg.mxu0
  %vm5706 = vcmask 261120
  %5707 = vst.msk [vmem:[%s3] sm:$0xff] %vm5706, %v5676
  %5708 = vst.msk [vmem:[%s3 + $0x8] sm:$0xff] %vm5706, %v5679
  %5709 = vst.msk [vmem:[%s3 + $0x10] sm:$0xff] %vm5706, %v5684
  %5710 = vst.msk [vmem:[%s3 + $0x18] sm:$0xff] %vm5706, %v5687
  %5711 = vst.msk [vmem:[%s3 + $0x20] sm:$0xff] %vm5706, %v5692
  %5712 = vst.msk [vmem:[%s3 + $0x28] sm:$0xff] %vm5706, %v5695
  %5713 = vst.msk [vmem:[%s3 + $0x30] sm:$0xff] %vm5706, %v5700
  %5714 = vst.msk [vmem:[%s3 + $0x38] sm:$0xff] %vm5706, %v5703
  // Predicated region
  $region14: #{tpu_custom_call.1} parent=0 // pred_check
    _
  $region15: #{tpu_custom_call.1} parent=0 // pred_check_branch
    %5716 = sbr.rel (0) target = $region17
  $region16: #{tpu_custom_call.1} parent=0 // pred_region
    _
  $region17: #{tpu_custom_call.1} parent=0 // pred_fallthru
    _
  // Predicated region
  $region18: #{tpu_custom_call.1} parent=0 // pred_check
    _
  $region19: #{tpu_custom_call.1} parent=0 // pred_check_branch
    %5718 = sbr.rel (0) target = $region21
  $region20: #{tpu_custom_call.1} parent=0 // pred_region
    _
  $region21: #{tpu_custom_call.1} parent=0 // pred_fallthru
    _

</llo_original>
